<compile_context>
chip_gen: v7x
topology: tpu7x:2x2x1
jax: 0.10.0
libtpu: 0.0.40
codegen_flags: <defaults>
</compile_context>

<pallas_src>
import jax
import jax.numpy as jnp
from jax.experimental import pallas as pl
from jax.experimental.pallas import tpu as pltpu


def _round_up(n, m):
    return (n + m - 1) // m * m


def _elu(x):
    # nn.ELU(alpha=1.0); clamp the exp argument so the discarded branch stays finite.
    return jnp.where(x > 0, x, jnp.exp(jnp.minimum(x, 0.0)) - 1.0)


def mlp_kernel(x_ref,
               w1_ref, b1_ref,
               w2_ref, b2_ref,
               w3_ref, b3_ref,
               w4_ref, b4_ref,
               o_ref):
    x = x_ref[...]                       # [TB, in_f] f32
    in_f = w1_ref.shape[0]

    # ---- layer 1: tiny contraction (K = in_f, typically 2) -> VPU, not MXU.
    if in_f <= 8:
        h = x[:, 0:1] * w1_ref[0:1, :]
        for k in range(1, in_f):
            h = h + x[:, k:k + 1] * w1_ref[k:k + 1, :]
        h = h + b1_ref[...]
    else:
        h = jnp.dot(x, w1_ref[...], preferred_element_type=jnp.float32) + b1_ref[...]
    h = _elu(h)

    # ---- layers 2-3: bf16 weights & activations, f32 MXU accumulation,
    #      bias add + ELU in f32.
    h = jnp.dot(h.astype(jnp.bfloat16), w2_ref[...],
                preferred_element_type=jnp.float32) + b2_ref[...]
    h = _elu(h)

    h = jnp.dot(h.astype(jnp.bfloat16), w3_ref[...],
                preferred_element_type=jnp.float32) + b3_ref[...]
    h = _elu(h)

    # ---- layer 4 (head padded to a lane-dense 128-wide slab) + ReLU.
    h = jnp.dot(h.astype(jnp.bfloat16), w4_ref[...],
                preferred_element_type=jnp.float32) + b4_ref[...]
    o_ref[...] = jnp.maximum(h, 0.0).astype(o_ref.dtype)


def mlp_error_est_2(x, params, *, block_b=128):
    """Fused forward.  x: [B, input_size] f32.  params: f32 weights [in, out], biases [1, out]."""
    B, in_f = x.shape
    num_classes = params["w4"].shape[1]
    h1 = params["w1"].shape[1]
    h2 = params["w2"].shape[1]
    h3 = params["w3"].shape[1]

    # Batch tiling: tile rows to a sublane-aligned (multiple-of-8) block.
    tb = min(block_b, _round_up(B, 8))
    b_pad = _round_up(B, tb)
    if b_pad != B:
        x = jnp.pad(x, ((0, b_pad - B), (0, 0)))

    # Pad the lane-1 head to 128 lanes so the last matmul / store are lane-dense.
    n4 = _round_up(num_classes, 128)
    w4p = jnp.zeros((h3, n4), jnp.float32).at[:, :num_classes].set(params["w4"])
    b4p = jnp.zeros((1, n4), jnp.float32).at[:, :num_classes].set(params["b4"])

    # Stream the large weights as bf16 (halves HBM traffic; MXU-native dtype).
    w2 = params["w2"].astype(jnp.bfloat16)
    w3 = params["w3"].astype(jnp.bfloat16)
    w4 = w4p.astype(jnp.bfloat16)

    args = (x,
            params["w1"], params["b1"],
            w2, params["b2"],
            w3, params["b3"],
            w4, b4p)

    def full_spec(a):
        # Weights/biases: same block every grid step -> DMA'd into VMEM once, reused.
        return pl.BlockSpec(a.shape, lambda i: (0,) * a.ndim)

    in_specs = ([pl.BlockSpec((tb, in_f), lambda i: (i, 0))]
                + [full_spec(a) for a in args[1:]])
    out_specs = pl.BlockSpec((tb, n4), lambda i: (i, 0))

    flops = 2 * b_pad * (in_f * h1 + h1 * h2 + h2 * h3 + h3 * n4)
    transcendentals = b_pad * (h1 + h2 + h3)
    bytes_accessed = (x.size * x.dtype.itemsize
                      + sum(a.size * a.dtype.itemsize for a in args[1:])
                      + b_pad * n4 * 4)

    # Only split the batch across TensorCores (megacore) when it is large
    # enough to amortize duplicating ~2.2 MB of weights into each core's VMEM.
    sem = "parallel" if b_pad >= 1024 else "arbitrary"

    out = pl.pallas_call(
        mlp_kernel,
        out_shape=jax.ShapeDtypeStruct((b_pad, n4), jnp.float32),
        grid=(b_pad // tb,),
        in_specs=in_specs,
        out_specs=out_specs,
        compiler_params=pltpu.CompilerParams(dimension_semantics=(sem,)),
        cost_estimate=pl.CostEstimate(flops=flops,
                                      transcendentals=transcendentals,
                                      bytes_accessed=bytes_accessed),
    )(*args)

    return out[:B, :num_classes]


def init_params(key, input_size=2, middle=512, num_classes=1):
    """Deterministic synthetic init (PyTorch-like uniform fan-in scaling), f32."""
    dims = [(input_size, middle),
            (middle, middle * 2),
            (middle * 2, middle),
            (middle, num_classes)]
    params = {}
    keys = jax.random.split(key, 2 * len(dims))
    for i, (fan_in, fan_out) in enumerate(dims):
        bound = 1.0 / (fan_in ** 0.5)
        w = jax.random.uniform(keys[2 * i], (fan_in, fan_out),
                               minval=-bound, maxval=bound, dtype=jnp.float32)
        b = jax.random.uniform(keys[2 * i + 1], (1, fan_out),
                               minval=-bound, maxval=bound, dtype=jnp.float32)
        params[f"w{i + 1}"] = w
        params[f"b{i + 1}"] = b
    return params


def reference_forward(x, params):
    """Pure-JAX reference mirroring the kernel's mixed precision (bf16 weights for l2..l4)."""
    f32, bf16 = jnp.float32, jnp.bfloat16
    h = jnp.dot(x, params["w1"], precision=jax.lax.Precision.HIGHEST) + params["b1"]
    h = _elu(h)
    h = jnp.dot(h.astype(bf16), params["w2"].astype(bf16),
                preferred_element_type=f32) + params["b2"]
    h = _elu(h)
    h = jnp.dot(h.astype(bf16), params["w3"].astype(bf16),
                preferred_element_type=f32) + params["b3"]
    h = _elu(h)
    h = jnp.dot(h.astype(bf16), params["w4"].astype(bf16),
                preferred_element_type=f32) + params["b4"]
    return jnp.maximum(h, 0.0)


if __name__ == "__main__":
    key = jax.random.PRNGKey(0)
    k_params, k_x = jax.random.split(key)

    B, INPUT_SIZE, MIDDLE, NUM_CLASSES = 8, 2, 512, 1

    params = init_params(k_params, INPUT_SIZE, MIDDLE, NUM_CLASSES)
    # The module flattens x to [B, -1]; build it already flat at [B, input_size].
    x = jax.random.normal(k_x, (B, INPUT_SIZE), dtype=jnp.float32)

    out = mlp_error_est_2(x, params)
    out = jax.block_until_ready(out)

    ref = reference_forward(x, params)
    assert out.shape == (B, NUM_CLASSES)
    # bf16 weight streaming drifts slightly from a pure-f32 forward; the reference
    # mirrors the kernel's precision, so a modest tolerance suffices.
    assert jnp.allclose(out, ref, atol=1e-2, rtol=1e-2), "mismatch vs reference"

    print("KERNEL_OK")
</pallas_src>

<mosaic_0001>
module attributes {stable_mosaic.version = 11 : i64} {
  func.func @mlp_kernel(%arg0: i32, %arg1: memref<8x2xf32, #tpu.memory_space<vmem>>, %arg2: memref<2x512xf32, #tpu.memory_space<vmem>>, %arg3: memref<1x512xf32, #tpu.memory_space<vmem>>, %arg4: memref<512x1024xbf16, #tpu.memory_space<vmem>>, %arg5: memref<1x1024xf32, #tpu.memory_space<vmem>>, %arg6: memref<1024x512xbf16, #tpu.memory_space<vmem>>, %arg7: memref<1x512xf32, #tpu.memory_space<vmem>>, %arg8: memref<512x128xbf16, #tpu.memory_space<vmem>>, %arg9: memref<1x128xf32, #tpu.memory_space<vmem>>, %arg10: memref<8x128xf32, #tpu.memory_space<vmem>>) attributes {dimension_semantics = [#tpu.dimension_semantics<arbitrary>], iteration_bounds = array<i64: 1>, scalar_prefetch = 0 : i64, scratch_operands = 0 : i64, tpu.core_type = #tpu.core_type<tc>, window_params = [{transform_indices = @transform_0, window_bounds = array<i64: 8, 2>}, {pipeline_mode = #tpu.pipeline_mode<synchronous>, transform_indices = @transform_1, window_bounds = array<i64: 2, 512>}, {pipeline_mode = #tpu.pipeline_mode<synchronous>, transform_indices = @transform_2, window_bounds = array<i64: 1, 512>}, {pipeline_mode = #tpu.pipeline_mode<synchronous>, transform_indices = @transform_3, window_bounds = array<i64: 512, 1024>}, {pipeline_mode = #tpu.pipeline_mode<synchronous>, transform_indices = @transform_4, window_bounds = array<i64: 1, 1024>}, {pipeline_mode = #tpu.pipeline_mode<synchronous>, transform_indices = @transform_5, window_bounds = array<i64: 1024, 512>}, {pipeline_mode = #tpu.pipeline_mode<synchronous>, transform_indices = @transform_6, window_bounds = array<i64: 1, 512>}, {pipeline_mode = #tpu.pipeline_mode<synchronous>, transform_indices = @transform_7, window_bounds = array<i64: 512, 128>}, {pipeline_mode = #tpu.pipeline_mode<synchronous>, transform_indices = @transform_8, window_bounds = array<i64: 1, 128>}, {transform_indices = @transform_9, window_bounds = array<i64: 8, 128>}]} {
    %c0 = arith.constant 0 : index
    %c0_0 = arith.constant 0 : index
    %0 = vector.load %arg1[%c0, %c0_0] : memref<8x2xf32, #tpu.memory_space<vmem>>, vector<8x2xf32>
    %1 = vector.extract_strided_slice %0 {offsets = [0, 0], sizes = [8, 1], strides = [1, 1]} : vector<8x2xf32> to vector<8x1xf32>
    %c0_1 = arith.constant 0 : index
    %c0_2 = arith.constant 0 : index
    %2 = vector.load %arg2[%c0_1, %c0_2] : memref<2x512xf32, #tpu.memory_space<vmem>>, vector<1x512xf32>
    %3 = vector.broadcast %1 : vector<8x1xf32> to vector<8x512xf32>
    %4 = vector.broadcast %2 : vector<1x512xf32> to vector<8x512xf32>
    %5 = arith.mulf %3, %4 : vector<8x512xf32>
    %6 = vector.extract_strided_slice %0 {offsets = [0, 1], sizes = [8, 1], strides = [1, 1]} : vector<8x2xf32> to vector<8x1xf32>
    %c1 = arith.constant 1 : index
    %c0_3 = arith.constant 0 : index
    %7 = vector.load %arg2[%c1, %c0_3] : memref<2x512xf32, #tpu.memory_space<vmem>>, vector<1x512xf32>
    %8 = vector.broadcast %6 : vector<8x1xf32> to vector<8x512xf32>
    %9 = vector.broadcast %7 : vector<1x512xf32> to vector<8x512xf32>
    %10 = arith.mulf %8, %9 : vector<8x512xf32>
    %11 = arith.addf %5, %10 : vector<8x512xf32>
    %c0_4 = arith.constant 0 : index
    %c0_5 = arith.constant 0 : index
    %12 = vector.load %arg3[%c0_4, %c0_5] : memref<1x512xf32, #tpu.memory_space<vmem>>, vector<1x512xf32>
    %13 = vector.broadcast %12 : vector<1x512xf32> to vector<8x512xf32>
    %14 = arith.addf %11, %13 : vector<8x512xf32>
    %cst = arith.constant 0.000000e+00 : f32
    %15 = vector.broadcast %cst : f32 to vector<8x512xf32>
    %16 = arith.cmpf ogt, %14, %15 : vector<8x512xf32>
    %cst_6 = arith.constant 0.000000e+00 : f32
    %17 = vector.broadcast %cst_6 : f32 to vector<8x512xf32>
    %18 = arith.minimumf %14, %17 : vector<8x512xf32>
    %19 = math.exp %18 : vector<8x512xf32>
    %cst_7 = arith.constant 1.000000e+00 : f32
    %20 = vector.broadcast %cst_7 : f32 to vector<8x512xf32>
    %21 = arith.subf %19, %20 : vector<8x512xf32>
    %22 = arith.select %16, %14, %21 : vector<8x512xi1>, vector<8x512xf32>
    %23 = arith.truncf %22 : vector<8x512xf32> to vector<8x512xbf16>
    %c0_8 = arith.constant 0 : index
    %c0_9 = arith.constant 0 : index
    %24 = vector.load %arg4[%c0_8, %c0_9] : memref<512x1024xbf16, #tpu.memory_space<vmem>>, vector<512x1024xbf16>
    %cst_10 = arith.constant dense<0.000000e+00> : vector<8x1024xf32>
    %25 = tpu.matmul %23, %24, %cst_10 {dimension_numbers = #tpu.dot_dimension_numbers<[1], [0], [0], [1], [0, 0, 1, 1], [], []>} : vector<8x512xbf16>, vector<512x1024xbf16>, vector<8x1024xf32> -> vector<8x1024xf32>
    %c0_11 = arith.constant 0 : index
    %c0_12 = arith.constant 0 : index
    %26 = vector.load %arg5[%c0_11, %c0_12] : memref<1x1024xf32, #tpu.memory_space<vmem>>, vector<1x1024xf32>
    %27 = vector.broadcast %26 : vector<1x1024xf32> to vector<8x1024xf32>
    %28 = arith.addf %25, %27 : vector<8x1024xf32>
    %cst_13 = arith.constant 0.000000e+00 : f32
    %29 = vector.broadcast %cst_13 : f32 to vector<8x1024xf32>
    %30 = arith.cmpf ogt, %28, %29 : vector<8x1024xf32>
    %cst_14 = arith.constant 0.000000e+00 : f32
    %31 = vector.broadcast %cst_14 : f32 to vector<8x1024xf32>
    %32 = arith.minimumf %28, %31 : vector<8x1024xf32>
    %33 = math.exp %32 : vector<8x1024xf32>
    %cst_15 = arith.constant 1.000000e+00 : f32
    %34 = vector.broadcast %cst_15 : f32 to vector<8x1024xf32>
    %35 = arith.subf %33, %34 : vector<8x1024xf32>
    %36 = arith.select %30, %28, %35 : vector<8x1024xi1>, vector<8x1024xf32>
    %37 = arith.truncf %36 : vector<8x1024xf32> to vector<8x1024xbf16>
    %c0_16 = arith.constant 0 : index
    %c0_17 = arith.constant 0 : index
    %38 = vector.load %arg6[%c0_16, %c0_17] : memref<1024x512xbf16, #tpu.memory_space<vmem>>, vector<1024x512xbf16>
    %cst_18 = arith.constant dense<0.000000e+00> : vector<8x512xf32>
    %39 = tpu.matmul %37, %38, %cst_18 {dimension_numbers = #tpu.dot_dimension_numbers<[1], [0], [0], [1], [0, 0, 1, 1], [], []>} : vector<8x1024xbf16>, vector<1024x512xbf16>, vector<8x512xf32> -> vector<8x512xf32>
    %c0_19 = arith.constant 0 : index
    %c0_20 = arith.constant 0 : index
    %40 = vector.load %arg7[%c0_19, %c0_20] : memref<1x512xf32, #tpu.memory_space<vmem>>, vector<1x512xf32>
    %41 = vector.broadcast %40 : vector<1x512xf32> to vector<8x512xf32>
    %42 = arith.addf %39, %41 : vector<8x512xf32>
    %cst_21 = arith.constant 0.000000e+00 : f32
    %43 = vector.broadcast %cst_21 : f32 to vector<8x512xf32>
    %44 = arith.cmpf ogt, %42, %43 : vector<8x512xf32>
    %cst_22 = arith.constant 0.000000e+00 : f32
    %45 = vector.broadcast %cst_22 : f32 to vector<8x512xf32>
    %46 = arith.minimumf %42, %45 : vector<8x512xf32>
    %47 = math.exp %46 : vector<8x512xf32>
    %cst_23 = arith.constant 1.000000e+00 : f32
    %48 = vector.broadcast %cst_23 : f32 to vector<8x512xf32>
    %49 = arith.subf %47, %48 : vector<8x512xf32>
    %50 = arith.select %44, %42, %49 : vector<8x512xi1>, vector<8x512xf32>
    %51 = arith.truncf %50 : vector<8x512xf32> to vector<8x512xbf16>
    %c0_24 = arith.constant 0 : index
    %c0_25 = arith.constant 0 : index
    %52 = vector.load %arg8[%c0_24, %c0_25] : memref<512x128xbf16, #tpu.memory_space<vmem>>, vector<512x128xbf16>
    %cst_26 = arith.constant dense<0.000000e+00> : vector<8x128xf32>
    %53 = tpu.matmul %51, %52, %cst_26 {dimension_numbers = #tpu.dot_dimension_numbers<[1], [0], [0], [1], [0, 0, 1, 1], [], []>} : vector<8x512xbf16>, vector<512x128xbf16>, vector<8x128xf32> -> vector<8x128xf32>
    %c0_27 = arith.constant 0 : index
    %c0_28 = arith.constant 0 : index
    %54 = vector.load %arg9[%c0_27, %c0_28] : memref<1x128xf32, #tpu.memory_space<vmem>>, vector<1x128xf32>
    %55 = vector.broadcast %54 : vector<1x128xf32> to vector<8x128xf32>
    %56 = arith.addf %53, %55 : vector<8x128xf32>
    %cst_29 = arith.constant 0.000000e+00 : f32
    %57 = vector.broadcast %cst_29 : f32 to vector<8x128xf32>
    %58 = arith.maximumf %56, %57 : vector<8x128xf32>
    %c0_30 = arith.constant 0 : index
    %c0_31 = arith.constant 0 : index
    %59 = vector.load %arg10[%c0_30, %c0_31] : memref<8x128xf32, #tpu.memory_space<vmem>>, vector<8x128xf32>
    tpu.vector_store %arg10[%c0_30, %c0_31], %58 {strides = array<i32>} : memref<8x128xf32, #tpu.memory_space<vmem>>, vector<8x128xf32>,
    return
  }
  func.func @transform_0(%arg0: i32) -> (i32, i32) {
    %c0_i32 = arith.constant 0 : i32
    %c0_i32_0 = arith.constant 0 : i32
    return %arg0, %c0_i32 : i32, i32
  }
  func.func @transform_1(%arg0: i32) -> (i32, i32) {
    %c0_i32 = arith.constant 0 : i32
    %c0_i32_0 = arith.constant 0 : i32
    %c0_i32_1 = arith.constant 0 : i32
    return %c0_i32, %c0_i32_0 : i32, i32
  }
  func.func @transform_2(%arg0: i32) -> (i32, i32) {
    %c0_i32 = arith.constant 0 : i32
    %c0_i32_0 = arith.constant 0 : i32
    %c0_i32_1 = arith.constant 0 : i32
    return %c0_i32, %c0_i32_0 : i32, i32
  }
  func.func @transform_3(%arg0: i32) -> (i32, i32) {
    %c0_i32 = arith.constant 0 : i32
    %c0_i32_0 = arith.constant 0 : i32
    %c0_i32_1 = arith.constant 0 : i32
    return %c0_i32, %c0_i32_0 : i32, i32
  }
  func.func @transform_4(%arg0: i32) -> (i32, i32) {
    %c0_i32 = arith.constant 0 : i32
    %c0_i32_0 = arith.constant 0 : i32
    %c0_i32_1 = arith.constant 0 : i32
    return %c0_i32, %c0_i32_0 : i32, i32
  }
  func.func @transform_5(%arg0: i32) -> (i32, i32) {
    %c0_i32 = arith.constant 0 : i32
    %c0_i32_0 = arith.constant 0 : i32
    %c0_i32_1 = arith.constant 0 : i32
    return %c0_i32, %c0_i32_0 : i32, i32
  }
  func.func @transform_6(%arg0: i32) -> (i32, i32) {
    %c0_i32 = arith.constant 0 : i32
    %c0_i32_0 = arith.constant 0 : i32
    %c0_i32_1 = arith.constant 0 : i32
    return %c0_i32, %c0_i32_0 : i32, i32
  }
  func.func @transform_7(%arg0: i32) -> (i32, i32) {
    %c0_i32 = arith.constant 0 : i32
    %c0_i32_0 = arith.constant 0 : i32
    %c0_i32_1 = arith.constant 0 : i32
    return %c0_i32, %c0_i32_0 : i32, i32
  }
  func.func @transform_8(%arg0: i32) -> (i32, i32) {
    %c0_i32 = arith.constant 0 : i32
    %c0_i32_0 = arith.constant 0 : i32
    %c0_i32_1 = arith.constant 0 : i32
    return %c0_i32, %c0_i32_0 : i32, i32
  }
  func.func @transform_9(%arg0: i32) -> (i32, i32) {
    %c0_i32 = arith.constant 0 : i32
    %c0_i32_0 = arith.constant 0 : i32
    return %arg0, %c0_i32 : i32, i32
  }
}

</mosaic_0001>

<llo_original>
// kernel: tpu_custom_call.1
$region0: #{tpu_custom_call.1}
  #allocation0 [shape = 'u32[]', space=smem, size = 0x4, offset = 0x4, fixed_abs, tag = 'smem constant byte address 0x4 - core index']
  #allocation1 [shape = 'u32[144,128]{1,0:T(1,128)}', space=vmem, size = 0x12000, scoped, tag = 'internal scratch']
  %s0 = inlined_call_operand.vmem [shape: f32[8,2], index: 0, kind: input, shape index: {}]
  %s1 = inlined_call_operand.vmem [shape: f32[2,512], index: 1, kind: input, shape index: {}]
  %s2 = inlined_call_operand.hbm [shape: f32[1,512], index: 2, kind: input, shape index: {}]
  %s3 = inlined_call_operand.hbm [shape: bf16[512,1024], index: 3, kind: input, shape index: {}]
  %s4 = inlined_call_operand.vmem [shape: f32[1,1024], index: 4, kind: input, shape index: {}]
  %s5 = inlined_call_operand.hbm [shape: bf16[1024,512], index: 5, kind: input, shape index: {}]
  %s6 = inlined_call_operand.vmem [shape: f32[1,512], index: 6, kind: input, shape index: {}]
  %s7 = inlined_call_operand.hbm [shape: bf16[512,128], index: 7, kind: input, shape index: {}]
  %s8 = inlined_call_operand.vmem [shape: f32[1,128], index: 8, kind: input, shape index: {}]
  %s9 = inlined_call_operand.hbm [shape: f32[8,128], index: 9, kind: output, shape index: {}]
  %s10 = sld [smem:[#allocation0]]
  $region62: #{tpu_custom_call.1} parent=0
    _
  %s12 = ssub.s32 1, %s10
  %s13 = scalar_select 0, %s12, %s10
  $region1: #{tpu_custom_call.1} parent=0
    #allocation2 [shape = 'u8[2048]{0}', space=vmem, size = 0x800, scoped, tag = 'input window, operand 2, single buffered']
    #allocation3 [shape = 's32[1]{0}', space=sflag, size = 0x4, scoped, tag = 'scoped memory for tpu_custom_call.1']
    #allocation4 [shape = 's32[1]{0}', space=sflag, size = 0x4, scoped, tag = 'scoped memory for tpu_custom_call.1']
    #allocation5 [shape = 'u8[1048576]{0}', space=vmem, size = 0x100000, scoped, tag = 'input window, operand 3, single buffered']
    #allocation6 [shape = 's32[1]{0}', space=sflag, size = 0x4, scoped, tag = 'scoped memory for tpu_custom_call.1']
    #allocation7 [shape = 'u8[1048576]{0}', space=vmem, size = 0x100000, scoped, tag = 'input window, operand 5, single buffered']
    #allocation8 [shape = 'u8[131072]{0}', space=vmem, size = 0x20000, scoped, tag = 'input window, operand 7, single buffered']
    #allocation9 [shape = 's32[1]{0}', space=sflag, size = 0x4, scoped, tag = 'scoped memory for tpu_custom_call.1']
    #allocation10 [shape = 'u8[4096]{0}', space=vmem, size = 0x1000, scoped, tag = 'output window, operand 0, single buffered']
    %14 = vsyncpa [#allocation3], 0
    %15 = vsyncpa [#allocation6], 0
    %16 = vsyncpa [#allocation9], 0
    %17 = vsyncpa [#allocation4], 0
    // Predicated region
    $region2: #{tpu_custom_call.1} parent=1 // pred_check
      _
    $region3: #{tpu_custom_call.1} parent=1 // pred_check_branch
      %19 = sbr.rel (0) target = $region5
    $region4: #{tpu_custom_call.1} parent=1 // pred_region
      _
    $region5: #{tpu_custom_call.1} parent=1 // pred_fallthru
      _
    // Predicated region
    $region6: #{tpu_custom_call.1} parent=1 // pred_check
      _
    $region7: #{tpu_custom_call.1} parent=1 // pred_check_branch
      %21 = sbr.rel (0) target = $region9
    $region8: #{tpu_custom_call.1} parent=1 // pred_region
      _
    $region9: #{tpu_custom_call.1} parent=1 // pred_fallthru
      _
    // Predicated region
    $region10: #{tpu_custom_call.1} parent=1 // pred_check
      _
    $region11: #{tpu_custom_call.1} parent=1 // pred_check_branch
      %23 = sbr.rel (0) target = $region13
    $region12: #{tpu_custom_call.1} parent=1 // pred_region
      %s25 = ssub.s32 64, 64
      %26 = vsyncadd [#allocation3], %s25
      %s28 = sshll.u32 [#allocation2], 4
      %s29 = int_to_ptr.vmem [resolvable:$true] %s28
      %31 = dma.hbm_to_vmem [thread:$0]  %s2, 64, %s29, [#allocation3]
    $region13: #{tpu_custom_call.1} parent=1 // pred_fallthru
      _
    // Predicated region
    $region14: #{tpu_custom_call.1} parent=1 // pred_check
      _
    $region15: #{tpu_custom_call.1} parent=1 // pred_check_branch
      %33 = sbr.rel (0) target = $region17
    $region16: #{tpu_custom_call.1} parent=1 // pred_region
      %s35 = ssub.s32 32768, 32768
      %36 = vsyncadd [#allocation6], %s35
      %s37 = sshll.u32 [#allocation5], 4
      %s38 = int_to_ptr.vmem [resolvable:$true] %s37
      %43 = dma.hbm_to_vmem [thread:$0]  %s3, 32768, %s38, [#allocation6], 512, 512, 32
    $region17: #{tpu_custom_call.1} parent=1 // pred_fallthru
      _
    // Predicated region
    $region18: #{tpu_custom_call.1} parent=1 // pred_check
      _
    $region19: #{tpu_custom_call.1} parent=1 // pred_check_branch
      %45 = sbr.rel (0) target = $region21
    $region20: #{tpu_custom_call.1} parent=1 // pred_region
      _
    $region21: #{tpu_custom_call.1} parent=1 // pred_fallthru
      _
    // Predicated region
    $region22: #{tpu_custom_call.1} parent=1 // pred_check
      _
    $region23: #{tpu_custom_call.1} parent=1 // pred_check_branch
      %47 = sbr.rel (0) target = $region25
    $region24: #{tpu_custom_call.1} parent=1 // pred_region
      %s49 = ssub.s32 32768, 32768
      %50 = vsyncadd [#allocation6], %s49
      %s51 = sshll.u32 [#allocation7], 4
      %s52 = int_to_ptr.vmem [resolvable:$true] %s51
      %57 = dma.hbm_to_vmem [thread:$0]  %s5, 32768, %s52, [#allocation6], 256, 256, 16
    $region25: #{tpu_custom_call.1} parent=1 // pred_fallthru
      _
    // Predicated region
    $region26: #{tpu_custom_call.1} parent=1 // pred_check
      _
    $region27: #{tpu_custom_call.1} parent=1 // pred_check_branch
      %59 = sbr.rel (0) target = $region29
    $region28: #{tpu_custom_call.1} parent=1 // pred_region
      _
    $region29: #{tpu_custom_call.1} parent=1 // pred_fallthru
      _
    // Predicated region
    $region30: #{tpu_custom_call.1} parent=1 // pred_check
      _
    $region31: #{tpu_custom_call.1} parent=1 // pred_check_branch
      %61 = sbr.rel (0) target = $region33
    $region32: #{tpu_custom_call.1} parent=1 // pred_region
      %s63 = ssub.s32 4096, 4096
      %64 = vsyncadd [#allocation9], %s63
      %s65 = sshll.u32 [#allocation8], 4
      %s66 = int_to_ptr.vmem [resolvable:$true] %s65
      %71 = dma.hbm_to_vmem [thread:$0]  %s7, 4096, %s66, [#allocation9], 64, 64, 4
    $region33: #{tpu_custom_call.1} parent=1 // pred_fallthru
      _
    // Predicated region
    $region34: #{tpu_custom_call.1} parent=1 // pred_check
      _
    $region35: #{tpu_custom_call.1} parent=1 // pred_check_branch
      %73 = sbr.rel (0) target = $region37
    $region36: #{tpu_custom_call.1} parent=1 // pred_region
      _
    $region37: #{tpu_custom_call.1} parent=1 // pred_fallthru
      _
    // Predicated region
    $region38: #{tpu_custom_call.1} parent=1 // pred_check
      _
    $region39: #{tpu_custom_call.1} parent=1 // pred_check_branch
      %75 = sbr.rel (0) target = $region41
    $region40: #{tpu_custom_call.1} parent=1 // pred_region
      %76 = dma.done [#allocation3], 64
    $region41: #{tpu_custom_call.1} parent=1 // pred_fallthru
      _
    // Predicated region
    $region42: #{tpu_custom_call.1} parent=1 // pred_check
      _
    $region43: #{tpu_custom_call.1} parent=1 // pred_check_branch
      %78 = sbr.rel (0) target = $region45
    $region44: #{tpu_custom_call.1} parent=1 // pred_region
      %79 = dma.done [#allocation6], 32768
    $region45: #{tpu_custom_call.1} parent=1 // pred_fallthru
      _
    // Predicated region
    $region46: #{tpu_custom_call.1} parent=1 // pred_check
      _
    $region47: #{tpu_custom_call.1} parent=1 // pred_check_branch
      %81 = sbr.rel (0) target = $region49
    $region48: #{tpu_custom_call.1} parent=1 // pred_region
      %82 = dma.done [#allocation6], 32768
    $region49: #{tpu_custom_call.1} parent=1 // pred_fallthru
      _
    // Predicated region
    $region50: #{tpu_custom_call.1} parent=1 // pred_check
      _
    $region51: #{tpu_custom_call.1} parent=1 // pred_check_branch
      %84 = sbr.rel (0) target = $region53
    $region52: #{tpu_custom_call.1} parent=1 // pred_region
      %85 = dma.done [#allocation9], 4096
    $region53: #{tpu_custom_call.1} parent=1 // pred_fallthru
      _
    %v87 = vld [vmem:[%s0] sm:$0xff]
    %v88 = vld [vmem:[%s1] ss:$2 sm:$0xf]
    %90 = vset.pattern.permute.xlu0 0
    %91 = vperm.xlu0 %90, %v87
    %v92 = vpop.permute.xlu0 %91
    %v95 = vlaneseq
    %v96 = vshrl.u32 %v95, 7
    %v97 = vsub.s32 0, %v96
    %v98 = vrot.slane %v88, %v97
    %v99 = vlaneseq
    %v100 = vshrl.u32 %v99, 7
    %v101 = vsub.s32 1, %v100
    %v102 = vrot.slane %v88, %v101
    %v103 = vlaneseq
    %v104 = vshrl.u32 %v103, 7
    %v105 = vsub.s32 2, %v104
    %v106 = vrot.slane %v88, %v105
    %v107 = vlaneseq
    %v108 = vshrl.u32 %v107, 7
    %v109 = vsub.s32 3, %v108
    %v110 = vrot.slane %v88, %v109
    %v115 = vmul.f32 %v92, %v98
    %v116 = vmul.f32 %v92, %v102
    %v117 = vmul.f32 %v92, %v106
    %v118 = vmul.f32 %v92, %v110
    %s119 = scalar_lea.vmem %s1, 1
    %v120 = vld [vmem:[%s119] ss:$2 sm:$0xf]
    %121 = vset.pattern.permute.xlu0 1
    %122 = vperm.xlu0 %121, %v87
    %v123 = vpop.permute.xlu0 %122
    %v126 = vlaneseq
    %v127 = vshrl.u32 %v126, 7
    %v128 = vsub.s32 0, %v127
    %v129 = vrot.slane %v120, %v128
    %v130 = vlaneseq
    %v131 = vshrl.u32 %v130, 7
    %v132 = vsub.s32 1, %v131
    %v133 = vrot.slane %v120, %v132
    %v134 = vlaneseq
    %v135 = vshrl.u32 %v134, 7
    %v136 = vsub.s32 2, %v135
    %v137 = vrot.slane %v120, %v136
    %v138 = vlaneseq
    %v139 = vshrl.u32 %v138, 7
    %v140 = vsub.s32 3, %v139
    %v141 = vrot.slane %v120, %v140
    %v146 = vmul.f32 %v123, %v129
    %v147 = vmul.f32 %v123, %v133
    %v148 = vmul.f32 %v123, %v137
    %v149 = vmul.f32 %v123, %v141
    %v150 = vadd.f32 %v115, %v146
    %v151 = vadd.f32 %v116, %v147
    %v152 = vadd.f32 %v117, %v148
    %v153 = vadd.f32 %v118, %v149
    %v154 = vld [vmem:[#allocation2] sm:$0xf]
    %v156 = vlaneseq
    %v157 = vshrl.u32 %v156, 7
    %v158 = vsub.s32 0, %v157
    %v159 = vrot.slane %v154, %v158
    %v160 = vlaneseq
    %v161 = vshrl.u32 %v160, 7
    %v162 = vsub.s32 1, %v161
    %v163 = vrot.slane %v154, %v162
    %v164 = vlaneseq
    %v165 = vshrl.u32 %v164, 7
    %v166 = vsub.s32 2, %v165
    %v167 = vrot.slane %v154, %v166
    %v168 = vlaneseq
    %v169 = vshrl.u32 %v168, 7
    %v170 = vsub.s32 3, %v169
    %v171 = vrot.slane %v154, %v170
    %v176 = vadd.f32 %v150, %v159
    %v177 = vadd.f32 %v151, %v163
    %v178 = vadd.f32 %v152, %v167
    %v179 = vadd.f32 %v153, %v171
    %vm180 = vcmp.gt.f32.partialorder %v176, 0.0
    %vm181 = vcmp.gt.f32.partialorder %v177, 0.0
    %vm182 = vcmp.gt.f32.partialorder %v178, 0.0
    %vm183 = vcmp.gt.f32.partialorder %v179, 0.0
    %v184 = vmin.f32 %v176, 0.0
    %v185 = vmin.f32 %v177, 0.0
    %v186 = vmin.f32 %v178, 0.0
    %v187 = vmin.f32 %v179, 0.0
    %v188 = vmul.f32 %v184, 1.442695
    %v189 = vpow.pop %v188
    %v190 = vmul.f32 %v185, 1.442695
    %v191 = vpow.pop %v190
    %v192 = vmul.f32 %v186, 1.442695
    %v193 = vpow.pop %v192
    %v194 = vmul.f32 %v187, 1.442695
    %v195 = vpow.pop %v194
    %v196 = vsub.f32 %v189, 1.0
    %v197 = vsub.f32 %v191, 1.0
    %v198 = vsub.f32 %v193, 1.0
    %v199 = vsub.f32 %v195, 1.0
    %v200 = vsel %vm180, %v176, %v196
    %v201 = vsel %vm181, %v177, %v197
    %v202 = vsel %vm182, %v178, %v198
    %v203 = vsel %vm183, %v179, %v199
    %v204 = vpack.c.bf16 %v200, %v200
    %v205 = vpack.c.bf16 %v201, %v201
    %v206 = vpack.c.bf16 %v202, %v202
    %v207 = vpack.c.bf16 %v203, %v203
    %v208 = vld [vmem:[#allocation5] sm:$0xff]
    %v209 = vld [vmem:[#allocation5 + $0x8] sm:$0xff]
    %v210 = vld [vmem:[#allocation5 + $0x10] sm:$0xff]
    %v211 = vld [vmem:[#allocation5 + $0x18] sm:$0xff]
    %v212 = vld [vmem:[#allocation5 + $0x20] sm:$0xff]
    %v213 = vld [vmem:[#allocation5 + $0x28] sm:$0xff]
    %v214 = vld [vmem:[#allocation5 + $0x30] sm:$0xff]
    %v215 = vld [vmem:[#allocation5 + $0x38] sm:$0xff]
    %v216 = vld [vmem:[#allocation5 + $0x40] sm:$0xff]
    %v217 = vld [vmem:[#allocation5 + $0x48] sm:$0xff]
    %v218 = vld [vmem:[#allocation5 + $0x50] sm:$0xff]
    %v219 = vld [vmem:[#allocation5 + $0x58] sm:$0xff]
    %v220 = vld [vmem:[#allocation5 + $0x60] sm:$0xff]
    %v221 = vld [vmem:[#allocation5 + $0x68] sm:$0xff]
    %v222 = vld [vmem:[#allocation5 + $0x70] sm:$0xff]
    %v223 = vld [vmem:[#allocation5 + $0x78] sm:$0xff]
    %v224 = vld [vmem:[#allocation5 + $0x80] sm:$0xff]
    %v225 = vld [vmem:[#allocation5 + $0x88] sm:$0xff]
    %v226 = vld [vmem:[#allocation5 + $0x90] sm:$0xff]
    %v227 = vld [vmem:[#allocation5 + $0x98] sm:$0xff]
    %v228 = vld [vmem:[#allocation5 + $0xa0] sm:$0xff]
    %v229 = vld [vmem:[#allocation5 + $0xa8] sm:$0xff]
    %v230 = vld [vmem:[#allocation5 + $0xb0] sm:$0xff]
    %v231 = vld [vmem:[#allocation5 + $0xb8] sm:$0xff]
    %v232 = vld [vmem:[#allocation5 + $0xc0] sm:$0xff]
    %v233 = vld [vmem:[#allocation5 + $0xc8] sm:$0xff]
    %v234 = vld [vmem:[#allocation5 + $0xd0] sm:$0xff]
    %v235 = vld [vmem:[#allocation5 + $0xd8] sm:$0xff]
    %v236 = vld [vmem:[#allocation5 + $0xe0] sm:$0xff]
    %v237 = vld [vmem:[#allocation5 + $0xe8] sm:$0xff]
    %v238 = vld [vmem:[#allocation5 + $0xf0] sm:$0xff]
    %v239 = vld [vmem:[#allocation5 + $0xf8] sm:$0xff]
    %v240 = vld [vmem:[#allocation5 + $0x100] sm:$0xff]
    %v241 = vld [vmem:[#allocation5 + $0x108] sm:$0xff]
    %v242 = vld [vmem:[#allocation5 + $0x110] sm:$0xff]
    %v243 = vld [vmem:[#allocation5 + $0x118] sm:$0xff]
    %v244 = vld [vmem:[#allocation5 + $0x120] sm:$0xff]
    %v245 = vld [vmem:[#allocation5 + $0x128] sm:$0xff]
    %v246 = vld [vmem:[#allocation5 + $0x130] sm:$0xff]
    %v247 = vld [vmem:[#allocation5 + $0x138] sm:$0xff]
    %v248 = vld [vmem:[#allocation5 + $0x140] sm:$0xff]
    %v249 = vld [vmem:[#allocation5 + $0x148] sm:$0xff]
    %v250 = vld [vmem:[#allocation5 + $0x150] sm:$0xff]
    %v251 = vld [vmem:[#allocation5 + $0x158] sm:$0xff]
    %v252 = vld [vmem:[#allocation5 + $0x160] sm:$0xff]
    %v253 = vld [vmem:[#allocation5 + $0x168] sm:$0xff]
    %v254 = vld [vmem:[#allocation5 + $0x170] sm:$0xff]
    %v255 = vld [vmem:[#allocation5 + $0x178] sm:$0xff]
    %v256 = vld [vmem:[#allocation5 + $0x180] sm:$0xff]
    %v257 = vld [vmem:[#allocation5 + $0x188] sm:$0xff]
    %v258 = vld [vmem:[#allocation5 + $0x190] sm:$0xff]
    %v259 = vld [vmem:[#allocation5 + $0x198] sm:$0xff]
    %v260 = vld [vmem:[#allocation5 + $0x1a0] sm:$0xff]
    %v261 = vld [vmem:[#allocation5 + $0x1a8] sm:$0xff]
    %v262 = vld [vmem:[#allocation5 + $0x1b0] sm:$0xff]
    %v263 = vld [vmem:[#allocation5 + $0x1b8] sm:$0xff]
    %v264 = vld [vmem:[#allocation5 + $0x1c0] sm:$0xff]
    %v265 = vld [vmem:[#allocation5 + $0x1c8] sm:$0xff]
    %v266 = vld [vmem:[#allocation5 + $0x1d0] sm:$0xff]
    %v267 = vld [vmem:[#allocation5 + $0x1d8] sm:$0xff]
    %v268 = vld [vmem:[#allocation5 + $0x1e0] sm:$0xff]
    %v269 = vld [vmem:[#allocation5 + $0x1e8] sm:$0xff]
    %v270 = vld [vmem:[#allocation5 + $0x1f0] sm:$0xff]
    %v271 = vld [vmem:[#allocation5 + $0x1f8] sm:$0xff]
    %v272 = vld [vmem:[#allocation5 + $0x200] sm:$0xff]
    %v273 = vld [vmem:[#allocation5 + $0x208] sm:$0xff]
    %v274 = vld [vmem:[#allocation5 + $0x210] sm:$0xff]
    %v275 = vld [vmem:[#allocation5 + $0x218] sm:$0xff]
    %v276 = vld [vmem:[#allocation5 + $0x220] sm:$0xff]
    %v277 = vld [vmem:[#allocation5 + $0x228] sm:$0xff]
    %v278 = vld [vmem:[#allocation5 + $0x230] sm:$0xff]
    %v279 = vld [vmem:[#allocation5 + $0x238] sm:$0xff]
    %v280 = vld [vmem:[#allocation5 + $0x240] sm:$0xff]
    %v281 = vld [vmem:[#allocation5 + $0x248] sm:$0xff]
    %v282 = vld [vmem:[#allocation5 + $0x250] sm:$0xff]
    %v283 = vld [vmem:[#allocation5 + $0x258] sm:$0xff]
    %v284 = vld [vmem:[#allocation5 + $0x260] sm:$0xff]
    %v285 = vld [vmem:[#allocation5 + $0x268] sm:$0xff]
    %v286 = vld [vmem:[#allocation5 + $0x270] sm:$0xff]
    %v287 = vld [vmem:[#allocation5 + $0x278] sm:$0xff]
    %v288 = vld [vmem:[#allocation5 + $0x280] sm:$0xff]
    %v289 = vld [vmem:[#allocation5 + $0x288] sm:$0xff]
    %v290 = vld [vmem:[#allocation5 + $0x290] sm:$0xff]
    %v291 = vld [vmem:[#allocation5 + $0x298] sm:$0xff]
    %v292 = vld [vmem:[#allocation5 + $0x2a0] sm:$0xff]
    %v293 = vld [vmem:[#allocation5 + $0x2a8] sm:$0xff]
    %v294 = vld [vmem:[#allocation5 + $0x2b0] sm:$0xff]
    %v295 = vld [vmem:[#allocation5 + $0x2b8] sm:$0xff]
    %v296 = vld [vmem:[#allocation5 + $0x2c0] sm:$0xff]
    %v297 = vld [vmem:[#allocation5 + $0x2c8] sm:$0xff]
    %v298 = vld [vmem:[#allocation5 + $0x2d0] sm:$0xff]
    %v299 = vld [vmem:[#allocation5 + $0x2d8] sm:$0xff]
    %v300 = vld [vmem:[#allocation5 + $0x2e0] sm:$0xff]
    %v301 = vld [vmem:[#allocation5 + $0x2e8] sm:$0xff]
    %v302 = vld [vmem:[#allocation5 + $0x2f0] sm:$0xff]
    %v303 = vld [vmem:[#allocation5 + $0x2f8] sm:$0xff]
    %v304 = vld [vmem:[#allocation5 + $0x300] sm:$0xff]
    %v305 = vld [vmem:[#allocation5 + $0x308] sm:$0xff]
    %v306 = vld [vmem:[#allocation5 + $0x310] sm:$0xff]
    %v307 = vld [vmem:[#allocation5 + $0x318] sm:$0xff]
    %v308 = vld [vmem:[#allocation5 + $0x320] sm:$0xff]
    %v309 = vld [vmem:[#allocation5 + $0x328] sm:$0xff]
    %v310 = vld [vmem:[#allocation5 + $0x330] sm:$0xff]
    %v311 = vld [vmem:[#allocation5 + $0x338] sm:$0xff]
    %v312 = vld [vmem:[#allocation5 + $0x340] sm:$0xff]
    %v313 = vld [vmem:[#allocation5 + $0x348] sm:$0xff]
    %v314 = vld [vmem:[#allocation5 + $0x350] sm:$0xff]
    %v315 = vld [vmem:[#allocation5 + $0x358] sm:$0xff]
    %v316 = vld [vmem:[#allocation5 + $0x360] sm:$0xff]
    %v317 = vld [vmem:[#allocation5 + $0x368] sm:$0xff]
    %v318 = vld [vmem:[#allocation5 + $0x370] sm:$0xff]
    %v319 = vld [vmem:[#allocation5 + $0x378] sm:$0xff]
    %v320 = vld [vmem:[#allocation5 + $0x380] sm:$0xff]
    %v321 = vld [vmem:[#allocation5 + $0x388] sm:$0xff]
    %v322 = vld [vmem:[#allocation5 + $0x390] sm:$0xff]
    %v323 = vld [vmem:[#allocation5 + $0x398] sm:$0xff]
    %v324 = vld [vmem:[#allocation5 + $0x3a0] sm:$0xff]
    %v325 = vld [vmem:[#allocation5 + $0x3a8] sm:$0xff]
    %v326 = vld [vmem:[#allocation5 + $0x3b0] sm:$0xff]
    %v327 = vld [vmem:[#allocation5 + $0x3b8] sm:$0xff]
    %v328 = vld [vmem:[#allocation5 + $0x3c0] sm:$0xff]
    %v329 = vld [vmem:[#allocation5 + $0x3c8] sm:$0xff]
    %v330 = vld [vmem:[#allocation5 + $0x3d0] sm:$0xff]
    %v331 = vld [vmem:[#allocation5 + $0x3d8] sm:$0xff]
    %v332 = vld [vmem:[#allocation5 + $0x3e0] sm:$0xff]
    %v333 = vld [vmem:[#allocation5 + $0x3e8] sm:$0xff]
    %v334 = vld [vmem:[#allocation5 + $0x3f0] sm:$0xff]
    %v335 = vld [vmem:[#allocation5 + $0x3f8] sm:$0xff]
    %v336 = vld [vmem:[#allocation5 + $0x400] sm:$0xff]
    %v337 = vld [vmem:[#allocation5 + $0x408] sm:$0xff]
    %v338 = vld [vmem:[#allocation5 + $0x410] sm:$0xff]
    %v339 = vld [vmem:[#allocation5 + $0x418] sm:$0xff]
    %v340 = vld [vmem:[#allocation5 + $0x420] sm:$0xff]
    %v341 = vld [vmem:[#allocation5 + $0x428] sm:$0xff]
    %v342 = vld [vmem:[#allocation5 + $0x430] sm:$0xff]
    %v343 = vld [vmem:[#allocation5 + $0x438] sm:$0xff]
    %v344 = vld [vmem:[#allocation5 + $0x440] sm:$0xff]
    %v345 = vld [vmem:[#allocation5 + $0x448] sm:$0xff]
    %v346 = vld [vmem:[#allocation5 + $0x450] sm:$0xff]
    %v347 = vld [vmem:[#allocation5 + $0x458] sm:$0xff]
    %v348 = vld [vmem:[#allocation5 + $0x460] sm:$0xff]
    %v349 = vld [vmem:[#allocation5 + $0x468] sm:$0xff]
    %v350 = vld [vmem:[#allocation5 + $0x470] sm:$0xff]
    %v351 = vld [vmem:[#allocation5 + $0x478] sm:$0xff]
    %v352 = vld [vmem:[#allocation5 + $0x480] sm:$0xff]
    %v353 = vld [vmem:[#allocation5 + $0x488] sm:$0xff]
    %v354 = vld [vmem:[#allocation5 + $0x490] sm:$0xff]
    %v355 = vld [vmem:[#allocation5 + $0x498] sm:$0xff]
    %v356 = vld [vmem:[#allocation5 + $0x4a0] sm:$0xff]
    %v357 = vld [vmem:[#allocation5 + $0x4a8] sm:$0xff]
    %v358 = vld [vmem:[#allocation5 + $0x4b0] sm:$0xff]
    %v359 = vld [vmem:[#allocation5 + $0x4b8] sm:$0xff]
    %v360 = vld [vmem:[#allocation5 + $0x4c0] sm:$0xff]
    %v361 = vld [vmem:[#allocation5 + $0x4c8] sm:$0xff]
    %v362 = vld [vmem:[#allocation5 + $0x4d0] sm:$0xff]
    %v363 = vld [vmem:[#allocation5 + $0x4d8] sm:$0xff]
    %v364 = vld [vmem:[#allocation5 + $0x4e0] sm:$0xff]
    %v365 = vld [vmem:[#allocation5 + $0x4e8] sm:$0xff]
    %v366 = vld [vmem:[#allocation5 + $0x4f0] sm:$0xff]
    %v367 = vld [vmem:[#allocation5 + $0x4f8] sm:$0xff]
    %v368 = vld [vmem:[#allocation5 + $0x500] sm:$0xff]
    %v369 = vld [vmem:[#allocation5 + $0x508] sm:$0xff]
    %v370 = vld [vmem:[#allocation5 + $0x510] sm:$0xff]
    %v371 = vld [vmem:[#allocation5 + $0x518] sm:$0xff]
    %v372 = vld [vmem:[#allocation5 + $0x520] sm:$0xff]
    %v373 = vld [vmem:[#allocation5 + $0x528] sm:$0xff]
    %v374 = vld [vmem:[#allocation5 + $0x530] sm:$0xff]
    %v375 = vld [vmem:[#allocation5 + $0x538] sm:$0xff]
    %v376 = vld [vmem:[#allocation5 + $0x540] sm:$0xff]
    %v377 = vld [vmem:[#allocation5 + $0x548] sm:$0xff]
    %v378 = vld [vmem:[#allocation5 + $0x550] sm:$0xff]
    %v379 = vld [vmem:[#allocation5 + $0x558] sm:$0xff]
    %v380 = vld [vmem:[#allocation5 + $0x560] sm:$0xff]
    %v381 = vld [vmem:[#allocation5 + $0x568] sm:$0xff]
    %v382 = vld [vmem:[#allocation5 + $0x570] sm:$0xff]
    %v383 = vld [vmem:[#allocation5 + $0x578] sm:$0xff]
    %v384 = vld [vmem:[#allocation5 + $0x580] sm:$0xff]
    %v385 = vld [vmem:[#allocation5 + $0x588] sm:$0xff]
    %v386 = vld [vmem:[#allocation5 + $0x590] sm:$0xff]
    %v387 = vld [vmem:[#allocation5 + $0x598] sm:$0xff]
    %v388 = vld [vmem:[#allocation5 + $0x5a0] sm:$0xff]
    %v389 = vld [vmem:[#allocation5 + $0x5a8] sm:$0xff]
    %v390 = vld [vmem:[#allocation5 + $0x5b0] sm:$0xff]
    %v391 = vld [vmem:[#allocation5 + $0x5b8] sm:$0xff]
    %v392 = vld [vmem:[#allocation5 + $0x5c0] sm:$0xff]
    %v393 = vld [vmem:[#allocation5 + $0x5c8] sm:$0xff]
    %v394 = vld [vmem:[#allocation5 + $0x5d0] sm:$0xff]
    %v395 = vld [vmem:[#allocation5 + $0x5d8] sm:$0xff]
    %v396 = vld [vmem:[#allocation5 + $0x5e0] sm:$0xff]
    %v397 = vld [vmem:[#allocation5 + $0x5e8] sm:$0xff]
    %v398 = vld [vmem:[#allocation5 + $0x5f0] sm:$0xff]
    %v399 = vld [vmem:[#allocation5 + $0x5f8] sm:$0xff]
    %v400 = vld [vmem:[#allocation5 + $0x600] sm:$0xff]
    %v401 = vld [vmem:[#allocation5 + $0x608] sm:$0xff]
    %v402 = vld [vmem:[#allocation5 + $0x610] sm:$0xff]
    %v403 = vld [vmem:[#allocation5 + $0x618] sm:$0xff]
    %v404 = vld [vmem:[#allocation5 + $0x620] sm:$0xff]
    %v405 = vld [vmem:[#allocation5 + $0x628] sm:$0xff]
    %v406 = vld [vmem:[#allocation5 + $0x630] sm:$0xff]
    %v407 = vld [vmem:[#allocation5 + $0x638] sm:$0xff]
    %v408 = vld [vmem:[#allocation5 + $0x640] sm:$0xff]
    %v409 = vld [vmem:[#allocation5 + $0x648] sm:$0xff]
    %v410 = vld [vmem:[#allocation5 + $0x650] sm:$0xff]
    %v411 = vld [vmem:[#allocation5 + $0x658] sm:$0xff]
    %v412 = vld [vmem:[#allocation5 + $0x660] sm:$0xff]
    %v413 = vld [vmem:[#allocation5 + $0x668] sm:$0xff]
    %v414 = vld [vmem:[#allocation5 + $0x670] sm:$0xff]
    %v415 = vld [vmem:[#allocation5 + $0x678] sm:$0xff]
    %v416 = vld [vmem:[#allocation5 + $0x680] sm:$0xff]
    %v417 = vld [vmem:[#allocation5 + $0x688] sm:$0xff]
    %v418 = vld [vmem:[#allocation5 + $0x690] sm:$0xff]
    %v419 = vld [vmem:[#allocation5 + $0x698] sm:$0xff]
    %v420 = vld [vmem:[#allocation5 + $0x6a0] sm:$0xff]
    %v421 = vld [vmem:[#allocation5 + $0x6a8] sm:$0xff]
    %v422 = vld [vmem:[#allocation5 + $0x6b0] sm:$0xff]
    %v423 = vld [vmem:[#allocation5 + $0x6b8] sm:$0xff]
    %v424 = vld [vmem:[#allocation5 + $0x6c0] sm:$0xff]
    %v425 = vld [vmem:[#allocation5 + $0x6c8] sm:$0xff]
    %v426 = vld [vmem:[#allocation5 + $0x6d0] sm:$0xff]
    %v427 = vld [vmem:[#allocation5 + $0x6d8] sm:$0xff]
    %v428 = vld [vmem:[#allocation5 + $0x6e0] sm:$0xff]
    %v429 = vld [vmem:[#allocation5 + $0x6e8] sm:$0xff]
    %v430 = vld [vmem:[#allocation5 + $0x6f0] sm:$0xff]
    %v431 = vld [vmem:[#allocation5 + $0x6f8] sm:$0xff]
    %v432 = vld [vmem:[#allocation5 + $0x700] sm:$0xff]
    %v433 = vld [vmem:[#allocation5 + $0x708] sm:$0xff]
    %v434 = vld [vmem:[#allocation5 + $0x710] sm:$0xff]
    %v435 = vld [vmem:[#allocation5 + $0x718] sm:$0xff]
    %v436 = vld [vmem:[#allocation5 + $0x720] sm:$0xff]
    %v437 = vld [vmem:[#allocation5 + $0x728] sm:$0xff]
    %v438 = vld [vmem:[#allocation5 + $0x730] sm:$0xff]
    %v439 = vld [vmem:[#allocation5 + $0x738] sm:$0xff]
    %v440 = vld [vmem:[#allocation5 + $0x740] sm:$0xff]
    %v441 = vld [vmem:[#allocation5 + $0x748] sm:$0xff]
    %v442 = vld [vmem:[#allocation5 + $0x750] sm:$0xff]
    %v443 = vld [vmem:[#allocation5 + $0x758] sm:$0xff]
    %v444 = vld [vmem:[#allocation5 + $0x760] sm:$0xff]
    %v445 = vld [vmem:[#allocation5 + $0x768] sm:$0xff]
    %v446 = vld [vmem:[#allocation5 + $0x770] sm:$0xff]
    %v447 = vld [vmem:[#allocation5 + $0x778] sm:$0xff]
    %v448 = vld [vmem:[#allocation5 + $0x780] sm:$0xff]
    %v449 = vld [vmem:[#allocation5 + $0x788] sm:$0xff]
    %v450 = vld [vmem:[#allocation5 + $0x790] sm:$0xff]
    %v451 = vld [vmem:[#allocation5 + $0x798] sm:$0xff]
    %v452 = vld [vmem:[#allocation5 + $0x7a0] sm:$0xff]
    %v453 = vld [vmem:[#allocation5 + $0x7a8] sm:$0xff]
    %v454 = vld [vmem:[#allocation5 + $0x7b0] sm:$0xff]
    %v455 = vld [vmem:[#allocation5 + $0x7b8] sm:$0xff]
    %v456 = vld [vmem:[#allocation5 + $0x7c0] sm:$0xff]
    %v457 = vld [vmem:[#allocation5 + $0x7c8] sm:$0xff]
    %v458 = vld [vmem:[#allocation5 + $0x7d0] sm:$0xff]
    %v459 = vld [vmem:[#allocation5 + $0x7d8] sm:$0xff]
    %v460 = vld [vmem:[#allocation5 + $0x7e0] sm:$0xff]
    %v461 = vld [vmem:[#allocation5 + $0x7e8] sm:$0xff]
    %v462 = vld [vmem:[#allocation5 + $0x7f0] sm:$0xff]
    %v463 = vld [vmem:[#allocation5 + $0x7f8] sm:$0xff]
    %v464 = vld [vmem:[%s4] sm:$0xff]
    %v466 = vlaneseq
    %v467 = vshrl.u32 %v466, 7
    %v468 = vsub.s32 0, %v467
    %v469 = vrot.slane %v464, %v468
    %v470 = vlaneseq
    %v471 = vshrl.u32 %v470, 7
    %v472 = vsub.s32 1, %v471
    %v473 = vrot.slane %v464, %v472
    %v474 = vlaneseq
    %v475 = vshrl.u32 %v474, 7
    %v476 = vsub.s32 2, %v475
    %v477 = vrot.slane %v464, %v476
    %v478 = vlaneseq
    %v479 = vshrl.u32 %v478, 7
    %v480 = vsub.s32 3, %v479
    %v481 = vrot.slane %v464, %v480
    %v482 = vlaneseq
    %v483 = vshrl.u32 %v482, 7
    %v484 = vsub.s32 4, %v483
    %v485 = vrot.slane %v464, %v484
    %v486 = vlaneseq
    %v487 = vshrl.u32 %v486, 7
    %v488 = vsub.s32 5, %v487
    %v489 = vrot.slane %v464, %v488
    %v490 = vlaneseq
    %v491 = vshrl.u32 %v490, 7
    %v492 = vsub.s32 6, %v491
    %v493 = vrot.slane %v464, %v492
    %v494 = vlaneseq
    %v495 = vshrl.u32 %v494, 7
    %v496 = vsub.s32 7, %v495
    %v497 = vrot.slane %v464, %v496
    %v762 = vunpack.c.l.b16 %v208
    %v763 = vunpack.c.h.b16 %v208
    %v764 = vunpack.c.l.b16 %v209
    %v765 = vunpack.c.h.b16 %v209
    %v766 = vunpack.c.l.b16 %v210
    %v767 = vunpack.c.h.b16 %v210
    %v768 = vunpack.c.l.b16 %v211
    %v769 = vunpack.c.h.b16 %v211
    %v770 = vunpack.c.l.b16 %v212
    %v771 = vunpack.c.h.b16 %v212
    %v772 = vunpack.c.l.b16 %v213
    %v773 = vunpack.c.h.b16 %v213
    %v774 = vunpack.c.l.b16 %v214
    %v775 = vunpack.c.h.b16 %v214
    %v776 = vunpack.c.l.b16 %v215
    %v777 = vunpack.c.h.b16 %v215
    %v778 = vunpack.c.l.b16 %v216
    %v779 = vunpack.c.h.b16 %v216
    %v780 = vunpack.c.l.b16 %v217
    %v781 = vunpack.c.h.b16 %v217
    %v782 = vunpack.c.l.b16 %v218
    %v783 = vunpack.c.h.b16 %v218
    %v784 = vunpack.c.l.b16 %v219
    %v785 = vunpack.c.h.b16 %v219
    %v786 = vunpack.c.l.b16 %v220
    %v787 = vunpack.c.h.b16 %v220
    %v788 = vunpack.c.l.b16 %v221
    %v789 = vunpack.c.h.b16 %v221
    %v790 = vunpack.c.l.b16 %v222
    %v791 = vunpack.c.h.b16 %v222
    %v792 = vunpack.c.l.b16 %v223
    %v793 = vunpack.c.h.b16 %v223
    %v794 = vunpack.c.l.b16 %v224
    %v795 = vunpack.c.h.b16 %v224
    %v796 = vunpack.c.l.b16 %v225
    %v797 = vunpack.c.h.b16 %v225
    %v798 = vunpack.c.l.b16 %v226
    %v799 = vunpack.c.h.b16 %v226
    %v800 = vunpack.c.l.b16 %v227
    %v801 = vunpack.c.h.b16 %v227
    %v802 = vunpack.c.l.b16 %v228
    %v803 = vunpack.c.h.b16 %v228
    %v804 = vunpack.c.l.b16 %v229
    %v805 = vunpack.c.h.b16 %v229
    %v806 = vunpack.c.l.b16 %v230
    %v807 = vunpack.c.h.b16 %v230
    %v808 = vunpack.c.l.b16 %v231
    %v809 = vunpack.c.h.b16 %v231
    %v810 = vunpack.c.l.b16 %v232
    %v811 = vunpack.c.h.b16 %v232
    %v812 = vunpack.c.l.b16 %v233
    %v813 = vunpack.c.h.b16 %v233
    %v814 = vunpack.c.l.b16 %v234
    %v815 = vunpack.c.h.b16 %v234
    %v816 = vunpack.c.l.b16 %v235
    %v817 = vunpack.c.h.b16 %v235
    %v818 = vunpack.c.l.b16 %v236
    %v819 = vunpack.c.h.b16 %v236
    %v820 = vunpack.c.l.b16 %v237
    %v821 = vunpack.c.h.b16 %v237
    %v822 = vunpack.c.l.b16 %v238
    %v823 = vunpack.c.h.b16 %v238
    %v824 = vunpack.c.l.b16 %v239
    %v825 = vunpack.c.h.b16 %v239
    %v826 = vunpack.c.l.b16 %v240
    %v827 = vunpack.c.h.b16 %v240
    %v828 = vunpack.c.l.b16 %v241
    %v829 = vunpack.c.h.b16 %v241
    %v830 = vunpack.c.l.b16 %v242
    %v831 = vunpack.c.h.b16 %v242
    %v832 = vunpack.c.l.b16 %v243
    %v833 = vunpack.c.h.b16 %v243
    %v834 = vunpack.c.l.b16 %v244
    %v835 = vunpack.c.h.b16 %v244
    %v836 = vunpack.c.l.b16 %v245
    %v837 = vunpack.c.h.b16 %v245
    %v838 = vunpack.c.l.b16 %v246
    %v839 = vunpack.c.h.b16 %v246
    %v840 = vunpack.c.l.b16 %v247
    %v841 = vunpack.c.h.b16 %v247
    %v842 = vunpack.c.l.b16 %v248
    %v843 = vunpack.c.h.b16 %v248
    %v844 = vunpack.c.l.b16 %v249
    %v845 = vunpack.c.h.b16 %v249
    %v846 = vunpack.c.l.b16 %v250
    %v847 = vunpack.c.h.b16 %v250
    %v848 = vunpack.c.l.b16 %v251
    %v849 = vunpack.c.h.b16 %v251
    %v850 = vunpack.c.l.b16 %v252
    %v851 = vunpack.c.h.b16 %v252
    %v852 = vunpack.c.l.b16 %v253
    %v853 = vunpack.c.h.b16 %v253
    %v854 = vunpack.c.l.b16 %v254
    %v855 = vunpack.c.h.b16 %v254
    %v856 = vunpack.c.l.b16 %v255
    %v857 = vunpack.c.h.b16 %v255
    %v858 = vunpack.c.l.b16 %v256
    %v859 = vunpack.c.h.b16 %v256
    %v860 = vunpack.c.l.b16 %v257
    %v861 = vunpack.c.h.b16 %v257
    %v862 = vunpack.c.l.b16 %v258
    %v863 = vunpack.c.h.b16 %v258
    %v864 = vunpack.c.l.b16 %v259
    %v865 = vunpack.c.h.b16 %v259
    %v866 = vunpack.c.l.b16 %v260
    %v867 = vunpack.c.h.b16 %v260
    %v868 = vunpack.c.l.b16 %v261
    %v869 = vunpack.c.h.b16 %v261
    %v870 = vunpack.c.l.b16 %v262
    %v871 = vunpack.c.h.b16 %v262
    %v872 = vunpack.c.l.b16 %v263
    %v873 = vunpack.c.h.b16 %v263
    %v874 = vunpack.c.l.b16 %v264
    %v875 = vunpack.c.h.b16 %v264
    %v876 = vunpack.c.l.b16 %v265
    %v877 = vunpack.c.h.b16 %v265
    %v878 = vunpack.c.l.b16 %v266
    %v879 = vunpack.c.h.b16 %v266
    %v880 = vunpack.c.l.b16 %v267
    %v881 = vunpack.c.h.b16 %v267
    %v882 = vunpack.c.l.b16 %v268
    %v883 = vunpack.c.h.b16 %v268
    %v884 = vunpack.c.l.b16 %v269
    %v885 = vunpack.c.h.b16 %v269
    %v886 = vunpack.c.l.b16 %v270
    %v887 = vunpack.c.h.b16 %v270
    %v888 = vunpack.c.l.b16 %v271
    %v889 = vunpack.c.h.b16 %v271
    %v890 = vunpack.c.l.b16 %v272
    %v891 = vunpack.c.h.b16 %v272
    %v892 = vunpack.c.l.b16 %v273
    %v893 = vunpack.c.h.b16 %v273
    %v894 = vunpack.c.l.b16 %v274
    %v895 = vunpack.c.h.b16 %v274
    %v896 = vunpack.c.l.b16 %v275
    %v897 = vunpack.c.h.b16 %v275
    %v898 = vunpack.c.l.b16 %v276
    %v899 = vunpack.c.h.b16 %v276
    %v900 = vunpack.c.l.b16 %v277
    %v901 = vunpack.c.h.b16 %v277
    %v902 = vunpack.c.l.b16 %v278
    %v903 = vunpack.c.h.b16 %v278
    %v904 = vunpack.c.l.b16 %v279
    %v905 = vunpack.c.h.b16 %v279
    %v906 = vunpack.c.l.b16 %v280
    %v907 = vunpack.c.h.b16 %v280
    %v908 = vunpack.c.l.b16 %v281
    %v909 = vunpack.c.h.b16 %v281
    %v910 = vunpack.c.l.b16 %v282
    %v911 = vunpack.c.h.b16 %v282
    %v912 = vunpack.c.l.b16 %v283
    %v913 = vunpack.c.h.b16 %v283
    %v914 = vunpack.c.l.b16 %v284
    %v915 = vunpack.c.h.b16 %v284
    %v916 = vunpack.c.l.b16 %v285
    %v917 = vunpack.c.h.b16 %v285
    %v918 = vunpack.c.l.b16 %v286
    %v919 = vunpack.c.h.b16 %v286
    %v920 = vunpack.c.l.b16 %v287
    %v921 = vunpack.c.h.b16 %v287
    %v922 = vunpack.c.l.b16 %v288
    %v923 = vunpack.c.h.b16 %v288
    %v924 = vunpack.c.l.b16 %v289
    %v925 = vunpack.c.h.b16 %v289
    %v926 = vunpack.c.l.b16 %v290
    %v927 = vunpack.c.h.b16 %v290
    %v928 = vunpack.c.l.b16 %v291
    %v929 = vunpack.c.h.b16 %v291
    %v930 = vunpack.c.l.b16 %v292
    %v931 = vunpack.c.h.b16 %v292
    %v932 = vunpack.c.l.b16 %v293
    %v933 = vunpack.c.h.b16 %v293
    %v934 = vunpack.c.l.b16 %v294
    %v935 = vunpack.c.h.b16 %v294
    %v936 = vunpack.c.l.b16 %v295
    %v937 = vunpack.c.h.b16 %v295
    %v938 = vunpack.c.l.b16 %v296
    %v939 = vunpack.c.h.b16 %v296
    %v940 = vunpack.c.l.b16 %v297
    %v941 = vunpack.c.h.b16 %v297
    %v942 = vunpack.c.l.b16 %v298
    %v943 = vunpack.c.h.b16 %v298
    %v944 = vunpack.c.l.b16 %v299
    %v945 = vunpack.c.h.b16 %v299
    %v946 = vunpack.c.l.b16 %v300
    %v947 = vunpack.c.h.b16 %v300
    %v948 = vunpack.c.l.b16 %v301
    %v949 = vunpack.c.h.b16 %v301
    %v950 = vunpack.c.l.b16 %v302
    %v951 = vunpack.c.h.b16 %v302
    %v952 = vunpack.c.l.b16 %v303
    %v953 = vunpack.c.h.b16 %v303
    %v954 = vunpack.c.l.b16 %v304
    %v955 = vunpack.c.h.b16 %v304
    %v956 = vunpack.c.l.b16 %v305
    %v957 = vunpack.c.h.b16 %v305
    %v958 = vunpack.c.l.b16 %v306
    %v959 = vunpack.c.h.b16 %v306
    %v960 = vunpack.c.l.b16 %v307
    %v961 = vunpack.c.h.b16 %v307
    %v962 = vunpack.c.l.b16 %v308
    %v963 = vunpack.c.h.b16 %v308
    %v964 = vunpack.c.l.b16 %v309
    %v965 = vunpack.c.h.b16 %v309
    %v966 = vunpack.c.l.b16 %v310
    %v967 = vunpack.c.h.b16 %v310
    %v968 = vunpack.c.l.b16 %v311
    %v969 = vunpack.c.h.b16 %v311
    %v970 = vunpack.c.l.b16 %v312
    %v971 = vunpack.c.h.b16 %v312
    %v972 = vunpack.c.l.b16 %v313
    %v973 = vunpack.c.h.b16 %v313
    %v974 = vunpack.c.l.b16 %v314
    %v975 = vunpack.c.h.b16 %v314
    %v976 = vunpack.c.l.b16 %v315
    %v977 = vunpack.c.h.b16 %v315
    %v978 = vunpack.c.l.b16 %v316
    %v979 = vunpack.c.h.b16 %v316
    %v980 = vunpack.c.l.b16 %v317
    %v981 = vunpack.c.h.b16 %v317
    %v982 = vunpack.c.l.b16 %v318
    %v983 = vunpack.c.h.b16 %v318
    %v984 = vunpack.c.l.b16 %v319
    %v985 = vunpack.c.h.b16 %v319
    %v986 = vunpack.c.l.b16 %v320
    %v987 = vunpack.c.h.b16 %v320
    %v988 = vunpack.c.l.b16 %v321
    %v989 = vunpack.c.h.b16 %v321
    %v990 = vunpack.c.l.b16 %v322
    %v991 = vunpack.c.h.b16 %v322
    %v992 = vunpack.c.l.b16 %v323
    %v993 = vunpack.c.h.b16 %v323
    %v994 = vunpack.c.l.b16 %v324
    %v995 = vunpack.c.h.b16 %v324
    %v996 = vunpack.c.l.b16 %v325
    %v997 = vunpack.c.h.b16 %v325
    %v998 = vunpack.c.l.b16 %v326
    %v999 = vunpack.c.h.b16 %v326
    %v1000 = vunpack.c.l.b16 %v327
    %v1001 = vunpack.c.h.b16 %v327
    %v1002 = vunpack.c.l.b16 %v328
    %v1003 = vunpack.c.h.b16 %v328
    %v1004 = vunpack.c.l.b16 %v329
    %v1005 = vunpack.c.h.b16 %v329
    %v1006 = vunpack.c.l.b16 %v330
    %v1007 = vunpack.c.h.b16 %v330
    %v1008 = vunpack.c.l.b16 %v331
    %v1009 = vunpack.c.h.b16 %v331
    %v1010 = vunpack.c.l.b16 %v332
    %v1011 = vunpack.c.h.b16 %v332
    %v1012 = vunpack.c.l.b16 %v333
    %v1013 = vunpack.c.h.b16 %v333
    %v1014 = vunpack.c.l.b16 %v334
    %v1015 = vunpack.c.h.b16 %v334
    %v1016 = vunpack.c.l.b16 %v335
    %v1017 = vunpack.c.h.b16 %v335
    %v1018 = vunpack.c.l.b16 %v336
    %v1019 = vunpack.c.h.b16 %v336
    %v1020 = vunpack.c.l.b16 %v337
    %v1021 = vunpack.c.h.b16 %v337
    %v1022 = vunpack.c.l.b16 %v338
    %v1023 = vunpack.c.h.b16 %v338
    %v1024 = vunpack.c.l.b16 %v339
    %v1025 = vunpack.c.h.b16 %v339
    %v1026 = vunpack.c.l.b16 %v340
    %v1027 = vunpack.c.h.b16 %v340
    %v1028 = vunpack.c.l.b16 %v341
    %v1029 = vunpack.c.h.b16 %v341
    %v1030 = vunpack.c.l.b16 %v342
    %v1031 = vunpack.c.h.b16 %v342
    %v1032 = vunpack.c.l.b16 %v343
    %v1033 = vunpack.c.h.b16 %v343
    %v1034 = vunpack.c.l.b16 %v344
    %v1035 = vunpack.c.h.b16 %v344
    %v1036 = vunpack.c.l.b16 %v345
    %v1037 = vunpack.c.h.b16 %v345
    %v1038 = vunpack.c.l.b16 %v346
    %v1039 = vunpack.c.h.b16 %v346
    %v1040 = vunpack.c.l.b16 %v347
    %v1041 = vunpack.c.h.b16 %v347
    %v1042 = vunpack.c.l.b16 %v348
    %v1043 = vunpack.c.h.b16 %v348
    %v1044 = vunpack.c.l.b16 %v349
    %v1045 = vunpack.c.h.b16 %v349
    %v1046 = vunpack.c.l.b16 %v350
    %v1047 = vunpack.c.h.b16 %v350
    %v1048 = vunpack.c.l.b16 %v351
    %v1049 = vunpack.c.h.b16 %v351
    %v1050 = vunpack.c.l.b16 %v352
    %v1051 = vunpack.c.h.b16 %v352
    %v1052 = vunpack.c.l.b16 %v353
    %v1053 = vunpack.c.h.b16 %v353
    %v1054 = vunpack.c.l.b16 %v354
    %v1055 = vunpack.c.h.b16 %v354
    %v1056 = vunpack.c.l.b16 %v355
    %v1057 = vunpack.c.h.b16 %v355
    %v1058 = vunpack.c.l.b16 %v356
    %v1059 = vunpack.c.h.b16 %v356
    %v1060 = vunpack.c.l.b16 %v357
    %v1061 = vunpack.c.h.b16 %v357
    %v1062 = vunpack.c.l.b16 %v358
    %v1063 = vunpack.c.h.b16 %v358
    %v1064 = vunpack.c.l.b16 %v359
    %v1065 = vunpack.c.h.b16 %v359
    %v1066 = vunpack.c.l.b16 %v360
    %v1067 = vunpack.c.h.b16 %v360
    %v1068 = vunpack.c.l.b16 %v361
    %v1069 = vunpack.c.h.b16 %v361
    %v1070 = vunpack.c.l.b16 %v362
    %v1071 = vunpack.c.h.b16 %v362
    %v1072 = vunpack.c.l.b16 %v363
    %v1073 = vunpack.c.h.b16 %v363
    %v1074 = vunpack.c.l.b16 %v364
    %v1075 = vunpack.c.h.b16 %v364
    %v1076 = vunpack.c.l.b16 %v365
    %v1077 = vunpack.c.h.b16 %v365
    %v1078 = vunpack.c.l.b16 %v366
    %v1079 = vunpack.c.h.b16 %v366
    %v1080 = vunpack.c.l.b16 %v367
    %v1081 = vunpack.c.h.b16 %v367
    %v1082 = vunpack.c.l.b16 %v368
    %v1083 = vunpack.c.h.b16 %v368
    %v1084 = vunpack.c.l.b16 %v369
    %v1085 = vunpack.c.h.b16 %v369
    %v1086 = vunpack.c.l.b16 %v370
    %v1087 = vunpack.c.h.b16 %v370
    %v1088 = vunpack.c.l.b16 %v371
    %v1089 = vunpack.c.h.b16 %v371
    %v1090 = vunpack.c.l.b16 %v372
    %v1091 = vunpack.c.h.b16 %v372
    %v1092 = vunpack.c.l.b16 %v373
    %v1093 = vunpack.c.h.b16 %v373
    %v1094 = vunpack.c.l.b16 %v374
    %v1095 = vunpack.c.h.b16 %v374
    %v1096 = vunpack.c.l.b16 %v375
    %v1097 = vunpack.c.h.b16 %v375
    %v1098 = vunpack.c.l.b16 %v376
    %v1099 = vunpack.c.h.b16 %v376
    %v1100 = vunpack.c.l.b16 %v377
    %v1101 = vunpack.c.h.b16 %v377
    %v1102 = vunpack.c.l.b16 %v378
    %v1103 = vunpack.c.h.b16 %v378
    %v1104 = vunpack.c.l.b16 %v379
    %v1105 = vunpack.c.h.b16 %v379
    %v1106 = vunpack.c.l.b16 %v380
    %v1107 = vunpack.c.h.b16 %v380
    %v1108 = vunpack.c.l.b16 %v381
    %v1109 = vunpack.c.h.b16 %v381
    %v1110 = vunpack.c.l.b16 %v382
    %v1111 = vunpack.c.h.b16 %v382
    %v1112 = vunpack.c.l.b16 %v383
    %v1113 = vunpack.c.h.b16 %v383
    %v1114 = vunpack.c.l.b16 %v384
    %v1115 = vunpack.c.h.b16 %v384
    %v1116 = vunpack.c.l.b16 %v385
    %v1117 = vunpack.c.h.b16 %v385
    %v1118 = vunpack.c.l.b16 %v386
    %v1119 = vunpack.c.h.b16 %v386
    %v1120 = vunpack.c.l.b16 %v387
    %v1121 = vunpack.c.h.b16 %v387
    %v1122 = vunpack.c.l.b16 %v388
    %v1123 = vunpack.c.h.b16 %v388
    %v1124 = vunpack.c.l.b16 %v389
    %v1125 = vunpack.c.h.b16 %v389
    %v1126 = vunpack.c.l.b16 %v390
    %v1127 = vunpack.c.h.b16 %v390
    %v1128 = vunpack.c.l.b16 %v391
    %v1129 = vunpack.c.h.b16 %v391
    %v1130 = vunpack.c.l.b16 %v392
    %v1131 = vunpack.c.h.b16 %v392
    %v1132 = vunpack.c.l.b16 %v393
    %v1133 = vunpack.c.h.b16 %v393
    %v1134 = vunpack.c.l.b16 %v394
    %v1135 = vunpack.c.h.b16 %v394
    %v1136 = vunpack.c.l.b16 %v395
    %v1137 = vunpack.c.h.b16 %v395
    %v1138 = vunpack.c.l.b16 %v396
    %v1139 = vunpack.c.h.b16 %v396
    %v1140 = vunpack.c.l.b16 %v397
    %v1141 = vunpack.c.h.b16 %v397
    %v1142 = vunpack.c.l.b16 %v398
    %v1143 = vunpack.c.h.b16 %v398
    %v1144 = vunpack.c.l.b16 %v399
    %v1145 = vunpack.c.h.b16 %v399
    %v1146 = vunpack.c.l.b16 %v400
    %v1147 = vunpack.c.h.b16 %v400
    %v1148 = vunpack.c.l.b16 %v401
    %v1149 = vunpack.c.h.b16 %v401
    %v1150 = vunpack.c.l.b16 %v402
    %v1151 = vunpack.c.h.b16 %v402
    %v1152 = vunpack.c.l.b16 %v403
    %v1153 = vunpack.c.h.b16 %v403
    %v1154 = vunpack.c.l.b16 %v404
    %v1155 = vunpack.c.h.b16 %v404
    %v1156 = vunpack.c.l.b16 %v405
    %v1157 = vunpack.c.h.b16 %v405
    %v1158 = vunpack.c.l.b16 %v406
    %v1159 = vunpack.c.h.b16 %v406
    %v1160 = vunpack.c.l.b16 %v407
    %v1161 = vunpack.c.h.b16 %v407
    %v1162 = vunpack.c.l.b16 %v408
    %v1163 = vunpack.c.h.b16 %v408
    %v1164 = vunpack.c.l.b16 %v409
    %v1165 = vunpack.c.h.b16 %v409
    %v1166 = vunpack.c.l.b16 %v410
    %v1167 = vunpack.c.h.b16 %v410
    %v1168 = vunpack.c.l.b16 %v411
    %v1169 = vunpack.c.h.b16 %v411
    %v1170 = vunpack.c.l.b16 %v412
    %v1171 = vunpack.c.h.b16 %v412
    %v1172 = vunpack.c.l.b16 %v413
    %v1173 = vunpack.c.h.b16 %v413
    %v1174 = vunpack.c.l.b16 %v414
    %v1175 = vunpack.c.h.b16 %v414
    %v1176 = vunpack.c.l.b16 %v415
    %v1177 = vunpack.c.h.b16 %v415
    %v1178 = vunpack.c.l.b16 %v416
    %v1179 = vunpack.c.h.b16 %v416
    %v1180 = vunpack.c.l.b16 %v417
    %v1181 = vunpack.c.h.b16 %v417
    %v1182 = vunpack.c.l.b16 %v418
    %v1183 = vunpack.c.h.b16 %v418
    %v1184 = vunpack.c.l.b16 %v419
    %v1185 = vunpack.c.h.b16 %v419
    %v1186 = vunpack.c.l.b16 %v420
    %v1187 = vunpack.c.h.b16 %v420
    %v1188 = vunpack.c.l.b16 %v421
    %v1189 = vunpack.c.h.b16 %v421
    %v1190 = vunpack.c.l.b16 %v422
    %v1191 = vunpack.c.h.b16 %v422
    %v1192 = vunpack.c.l.b16 %v423
    %v1193 = vunpack.c.h.b16 %v423
    %v1194 = vunpack.c.l.b16 %v424
    %v1195 = vunpack.c.h.b16 %v424
    %v1196 = vunpack.c.l.b16 %v425
    %v1197 = vunpack.c.h.b16 %v425
    %v1198 = vunpack.c.l.b16 %v426
    %v1199 = vunpack.c.h.b16 %v426
    %v1200 = vunpack.c.l.b16 %v427
    %v1201 = vunpack.c.h.b16 %v427
    %v1202 = vunpack.c.l.b16 %v428
    %v1203 = vunpack.c.h.b16 %v428
    %v1204 = vunpack.c.l.b16 %v429
    %v1205 = vunpack.c.h.b16 %v429
    %v1206 = vunpack.c.l.b16 %v430
    %v1207 = vunpack.c.h.b16 %v430
    %v1208 = vunpack.c.l.b16 %v431
    %v1209 = vunpack.c.h.b16 %v431
    %v1210 = vunpack.c.l.b16 %v432
    %v1211 = vunpack.c.h.b16 %v432
    %v1212 = vunpack.c.l.b16 %v433
    %v1213 = vunpack.c.h.b16 %v433
    %v1214 = vunpack.c.l.b16 %v434
    %v1215 = vunpack.c.h.b16 %v434
    %v1216 = vunpack.c.l.b16 %v435
    %v1217 = vunpack.c.h.b16 %v435
    %v1218 = vunpack.c.l.b16 %v436
    %v1219 = vunpack.c.h.b16 %v436
    %v1220 = vunpack.c.l.b16 %v437
    %v1221 = vunpack.c.h.b16 %v437
    %v1222 = vunpack.c.l.b16 %v438
    %v1223 = vunpack.c.h.b16 %v438
    %v1224 = vunpack.c.l.b16 %v439
    %v1225 = vunpack.c.h.b16 %v439
    %v1226 = vunpack.c.l.b16 %v440
    %v1227 = vunpack.c.h.b16 %v440
    %v1228 = vunpack.c.l.b16 %v441
    %v1229 = vunpack.c.h.b16 %v441
    %v1230 = vunpack.c.l.b16 %v442
    %v1231 = vunpack.c.h.b16 %v442
    %v1232 = vunpack.c.l.b16 %v443
    %v1233 = vunpack.c.h.b16 %v443
    %v1234 = vunpack.c.l.b16 %v444
    %v1235 = vunpack.c.h.b16 %v444
    %v1236 = vunpack.c.l.b16 %v445
    %v1237 = vunpack.c.h.b16 %v445
    %v1238 = vunpack.c.l.b16 %v446
    %v1239 = vunpack.c.h.b16 %v446
    %v1240 = vunpack.c.l.b16 %v447
    %v1241 = vunpack.c.h.b16 %v447
    %v1242 = vunpack.c.l.b16 %v448
    %v1243 = vunpack.c.h.b16 %v448
    %v1244 = vunpack.c.l.b16 %v449
    %v1245 = vunpack.c.h.b16 %v449
    %v1246 = vunpack.c.l.b16 %v450
    %v1247 = vunpack.c.h.b16 %v450
    %v1248 = vunpack.c.l.b16 %v451
    %v1249 = vunpack.c.h.b16 %v451
    %v1250 = vunpack.c.l.b16 %v452
    %v1251 = vunpack.c.h.b16 %v452
    %v1252 = vunpack.c.l.b16 %v453
    %v1253 = vunpack.c.h.b16 %v453
    %v1254 = vunpack.c.l.b16 %v454
    %v1255 = vunpack.c.h.b16 %v454
    %v1256 = vunpack.c.l.b16 %v455
    %v1257 = vunpack.c.h.b16 %v455
    %v1258 = vunpack.c.l.b16 %v456
    %v1259 = vunpack.c.h.b16 %v456
    %v1260 = vunpack.c.l.b16 %v457
    %v1261 = vunpack.c.h.b16 %v457
    %v1262 = vunpack.c.l.b16 %v458
    %v1263 = vunpack.c.h.b16 %v458
    %v1264 = vunpack.c.l.b16 %v459
    %v1265 = vunpack.c.h.b16 %v459
    %v1266 = vunpack.c.l.b16 %v460
    %v1267 = vunpack.c.h.b16 %v460
    %v1268 = vunpack.c.l.b16 %v461
    %v1269 = vunpack.c.h.b16 %v461
    %v1270 = vunpack.c.l.b16 %v462
    %v1271 = vunpack.c.h.b16 %v462
    %v1272 = vunpack.c.l.b16 %v463
    %v1273 = vunpack.c.h.b16 %v463
    %v1274 = vpack.c.b16 %v770, %v762
    %v1275 = vpack.c.b16 %v771, %v763
    %v1276 = vpack.c.b16 %v772, %v764
    %v1277 = vpack.c.b16 %v773, %v765
    %v1278 = vpack.c.b16 %v774, %v766
    %v1279 = vpack.c.b16 %v775, %v767
    %v1280 = vpack.c.b16 %v776, %v768
    %v1281 = vpack.c.b16 %v777, %v769
    %v1282 = vpack.c.b16 %v786, %v778
    %v1283 = vpack.c.b16 %v787, %v779
    %v1284 = vpack.c.b16 %v788, %v780
    %v1285 = vpack.c.b16 %v789, %v781
    %v1286 = vpack.c.b16 %v790, %v782
    %v1287 = vpack.c.b16 %v791, %v783
    %v1288 = vpack.c.b16 %v792, %v784
    %v1289 = vpack.c.b16 %v793, %v785
    %v1290 = vpack.c.b16 %v802, %v794
    %v1291 = vpack.c.b16 %v803, %v795
    %v1292 = vpack.c.b16 %v804, %v796
    %v1293 = vpack.c.b16 %v805, %v797
    %v1294 = vpack.c.b16 %v806, %v798
    %v1295 = vpack.c.b16 %v807, %v799
    %v1296 = vpack.c.b16 %v808, %v800
    %v1297 = vpack.c.b16 %v809, %v801
    %v1298 = vpack.c.b16 %v818, %v810
    %v1299 = vpack.c.b16 %v819, %v811
    %v1300 = vpack.c.b16 %v820, %v812
    %v1301 = vpack.c.b16 %v821, %v813
    %v1302 = vpack.c.b16 %v822, %v814
    %v1303 = vpack.c.b16 %v823, %v815
    %v1304 = vpack.c.b16 %v824, %v816
    %v1305 = vpack.c.b16 %v825, %v817
    %v1306 = vpack.c.b16 %v834, %v826
    %v1307 = vpack.c.b16 %v835, %v827
    %v1308 = vpack.c.b16 %v836, %v828
    %v1309 = vpack.c.b16 %v837, %v829
    %v1310 = vpack.c.b16 %v838, %v830
    %v1311 = vpack.c.b16 %v839, %v831
    %v1312 = vpack.c.b16 %v840, %v832
    %v1313 = vpack.c.b16 %v841, %v833
    %v1314 = vpack.c.b16 %v850, %v842
    %v1315 = vpack.c.b16 %v851, %v843
    %v1316 = vpack.c.b16 %v852, %v844
    %v1317 = vpack.c.b16 %v853, %v845
    %v1318 = vpack.c.b16 %v854, %v846
    %v1319 = vpack.c.b16 %v855, %v847
    %v1320 = vpack.c.b16 %v856, %v848
    %v1321 = vpack.c.b16 %v857, %v849
    %v1322 = vpack.c.b16 %v866, %v858
    %v1323 = vpack.c.b16 %v867, %v859
    %v1324 = vpack.c.b16 %v868, %v860
    %v1325 = vpack.c.b16 %v869, %v861
    %v1326 = vpack.c.b16 %v870, %v862
    %v1327 = vpack.c.b16 %v871, %v863
    %v1328 = vpack.c.b16 %v872, %v864
    %v1329 = vpack.c.b16 %v873, %v865
    %v1330 = vpack.c.b16 %v882, %v874
    %v1331 = vpack.c.b16 %v883, %v875
    %v1332 = vpack.c.b16 %v884, %v876
    %v1333 = vpack.c.b16 %v885, %v877
    %v1334 = vpack.c.b16 %v886, %v878
    %v1335 = vpack.c.b16 %v887, %v879
    %v1336 = vpack.c.b16 %v888, %v880
    %v1337 = vpack.c.b16 %v889, %v881
    %v1338 = vpack.c.b16 %v898, %v890
    %v1339 = vpack.c.b16 %v899, %v891
    %v1340 = vpack.c.b16 %v900, %v892
    %v1341 = vpack.c.b16 %v901, %v893
    %v1342 = vpack.c.b16 %v902, %v894
    %v1343 = vpack.c.b16 %v903, %v895
    %v1344 = vpack.c.b16 %v904, %v896
    %v1345 = vpack.c.b16 %v905, %v897
    %v1346 = vpack.c.b16 %v914, %v906
    %v1347 = vpack.c.b16 %v915, %v907
    %v1348 = vpack.c.b16 %v916, %v908
    %v1349 = vpack.c.b16 %v917, %v909
    %v1350 = vpack.c.b16 %v918, %v910
    %v1351 = vpack.c.b16 %v919, %v911
    %v1352 = vpack.c.b16 %v920, %v912
    %v1353 = vpack.c.b16 %v921, %v913
    %v1354 = vpack.c.b16 %v930, %v922
    %v1355 = vpack.c.b16 %v931, %v923
    %v1356 = vpack.c.b16 %v932, %v924
    %v1357 = vpack.c.b16 %v933, %v925
    %v1358 = vpack.c.b16 %v934, %v926
    %v1359 = vpack.c.b16 %v935, %v927
    %v1360 = vpack.c.b16 %v936, %v928
    %v1361 = vpack.c.b16 %v937, %v929
    %v1362 = vpack.c.b16 %v946, %v938
    %v1363 = vpack.c.b16 %v947, %v939
    %v1364 = vpack.c.b16 %v948, %v940
    %v1365 = vpack.c.b16 %v949, %v941
    %v1366 = vpack.c.b16 %v950, %v942
    %v1367 = vpack.c.b16 %v951, %v943
    %v1368 = vpack.c.b16 %v952, %v944
    %v1369 = vpack.c.b16 %v953, %v945
    %v1370 = vpack.c.b16 %v962, %v954
    %v1371 = vpack.c.b16 %v963, %v955
    %v1372 = vpack.c.b16 %v964, %v956
    %v1373 = vpack.c.b16 %v965, %v957
    %v1374 = vpack.c.b16 %v966, %v958
    %v1375 = vpack.c.b16 %v967, %v959
    %v1376 = vpack.c.b16 %v968, %v960
    %v1377 = vpack.c.b16 %v969, %v961
    %v1378 = vpack.c.b16 %v978, %v970
    %v1379 = vpack.c.b16 %v979, %v971
    %v1380 = vpack.c.b16 %v980, %v972
    %v1381 = vpack.c.b16 %v981, %v973
    %v1382 = vpack.c.b16 %v982, %v974
    %v1383 = vpack.c.b16 %v983, %v975
    %v1384 = vpack.c.b16 %v984, %v976
    %v1385 = vpack.c.b16 %v985, %v977
    %v1386 = vpack.c.b16 %v994, %v986
    %v1387 = vpack.c.b16 %v995, %v987
    %v1388 = vpack.c.b16 %v996, %v988
    %v1389 = vpack.c.b16 %v997, %v989
    %v1390 = vpack.c.b16 %v998, %v990
    %v1391 = vpack.c.b16 %v999, %v991
    %v1392 = vpack.c.b16 %v1000, %v992
    %v1393 = vpack.c.b16 %v1001, %v993
    %v1394 = vpack.c.b16 %v1010, %v1002
    %v1395 = vpack.c.b16 %v1011, %v1003
    %v1396 = vpack.c.b16 %v1012, %v1004
    %v1397 = vpack.c.b16 %v1013, %v1005
    %v1398 = vpack.c.b16 %v1014, %v1006
    %v1399 = vpack.c.b16 %v1015, %v1007
    %v1400 = vpack.c.b16 %v1016, %v1008
    %v1401 = vpack.c.b16 %v1017, %v1009
    %v1402 = vpack.c.b16 %v1026, %v1018
    %v1403 = vpack.c.b16 %v1027, %v1019
    %v1404 = vpack.c.b16 %v1028, %v1020
    %v1405 = vpack.c.b16 %v1029, %v1021
    %v1406 = vpack.c.b16 %v1030, %v1022
    %v1407 = vpack.c.b16 %v1031, %v1023
    %v1408 = vpack.c.b16 %v1032, %v1024
    %v1409 = vpack.c.b16 %v1033, %v1025
    %v1410 = vpack.c.b16 %v1042, %v1034
    %v1411 = vpack.c.b16 %v1043, %v1035
    %v1412 = vpack.c.b16 %v1044, %v1036
    %v1413 = vpack.c.b16 %v1045, %v1037
    %v1414 = vpack.c.b16 %v1046, %v1038
    %v1415 = vpack.c.b16 %v1047, %v1039
    %v1416 = vpack.c.b16 %v1048, %v1040
    %v1417 = vpack.c.b16 %v1049, %v1041
    %v1418 = vpack.c.b16 %v1058, %v1050
    %v1419 = vpack.c.b16 %v1059, %v1051
    %v1420 = vpack.c.b16 %v1060, %v1052
    %v1421 = vpack.c.b16 %v1061, %v1053
    %v1422 = vpack.c.b16 %v1062, %v1054
    %v1423 = vpack.c.b16 %v1063, %v1055
    %v1424 = vpack.c.b16 %v1064, %v1056
    %v1425 = vpack.c.b16 %v1065, %v1057
    %v1426 = vpack.c.b16 %v1074, %v1066
    %v1427 = vpack.c.b16 %v1075, %v1067
    %v1428 = vpack.c.b16 %v1076, %v1068
    %v1429 = vpack.c.b16 %v1077, %v1069
    %v1430 = vpack.c.b16 %v1078, %v1070
    %v1431 = vpack.c.b16 %v1079, %v1071
    %v1432 = vpack.c.b16 %v1080, %v1072
    %v1433 = vpack.c.b16 %v1081, %v1073
    %v1434 = vpack.c.b16 %v1090, %v1082
    %v1435 = vpack.c.b16 %v1091, %v1083
    %v1436 = vpack.c.b16 %v1092, %v1084
    %v1437 = vpack.c.b16 %v1093, %v1085
    %v1438 = vpack.c.b16 %v1094, %v1086
    %v1439 = vpack.c.b16 %v1095, %v1087
    %v1440 = vpack.c.b16 %v1096, %v1088
    %v1441 = vpack.c.b16 %v1097, %v1089
    %v1442 = vpack.c.b16 %v1106, %v1098
    %v1443 = vpack.c.b16 %v1107, %v1099
    %v1444 = vpack.c.b16 %v1108, %v1100
    %v1445 = vpack.c.b16 %v1109, %v1101
    %v1446 = vpack.c.b16 %v1110, %v1102
    %v1447 = vpack.c.b16 %v1111, %v1103
    %v1448 = vpack.c.b16 %v1112, %v1104
    %v1449 = vpack.c.b16 %v1113, %v1105
    %v1450 = vpack.c.b16 %v1122, %v1114
    %v1451 = vpack.c.b16 %v1123, %v1115
    %v1452 = vpack.c.b16 %v1124, %v1116
    %v1453 = vpack.c.b16 %v1125, %v1117
    %v1454 = vpack.c.b16 %v1126, %v1118
    %v1455 = vpack.c.b16 %v1127, %v1119
    %v1456 = vpack.c.b16 %v1128, %v1120
    %v1457 = vpack.c.b16 %v1129, %v1121
    %v1458 = vpack.c.b16 %v1138, %v1130
    %v1459 = vpack.c.b16 %v1139, %v1131
    %v1460 = vpack.c.b16 %v1140, %v1132
    %v1461 = vpack.c.b16 %v1141, %v1133
    %v1462 = vpack.c.b16 %v1142, %v1134
    %v1463 = vpack.c.b16 %v1143, %v1135
    %v1464 = vpack.c.b16 %v1144, %v1136
    %v1465 = vpack.c.b16 %v1145, %v1137
    %v1466 = vpack.c.b16 %v1154, %v1146
    %v1467 = vpack.c.b16 %v1155, %v1147
    %v1468 = vpack.c.b16 %v1156, %v1148
    %v1469 = vpack.c.b16 %v1157, %v1149
    %v1470 = vpack.c.b16 %v1158, %v1150
    %v1471 = vpack.c.b16 %v1159, %v1151
    %v1472 = vpack.c.b16 %v1160, %v1152
    %v1473 = vpack.c.b16 %v1161, %v1153
    %v1474 = vpack.c.b16 %v1170, %v1162
    %v1475 = vpack.c.b16 %v1171, %v1163
    %v1476 = vpack.c.b16 %v1172, %v1164
    %v1477 = vpack.c.b16 %v1173, %v1165
    %v1478 = vpack.c.b16 %v1174, %v1166
    %v1479 = vpack.c.b16 %v1175, %v1167
    %v1480 = vpack.c.b16 %v1176, %v1168
    %v1481 = vpack.c.b16 %v1177, %v1169
    %v1482 = vpack.c.b16 %v1186, %v1178
    %v1483 = vpack.c.b16 %v1187, %v1179
    %v1484 = vpack.c.b16 %v1188, %v1180
    %v1485 = vpack.c.b16 %v1189, %v1181
    %v1486 = vpack.c.b16 %v1190, %v1182
    %v1487 = vpack.c.b16 %v1191, %v1183
    %v1488 = vpack.c.b16 %v1192, %v1184
    %v1489 = vpack.c.b16 %v1193, %v1185
    %v1490 = vpack.c.b16 %v1202, %v1194
    %v1491 = vpack.c.b16 %v1203, %v1195
    %v1492 = vpack.c.b16 %v1204, %v1196
    %v1493 = vpack.c.b16 %v1205, %v1197
    %v1494 = vpack.c.b16 %v1206, %v1198
    %v1495 = vpack.c.b16 %v1207, %v1199
    %v1496 = vpack.c.b16 %v1208, %v1200
    %v1497 = vpack.c.b16 %v1209, %v1201
    %v1498 = vpack.c.b16 %v1218, %v1210
    %v1499 = vpack.c.b16 %v1219, %v1211
    %v1500 = vpack.c.b16 %v1220, %v1212
    %v1501 = vpack.c.b16 %v1221, %v1213
    %v1502 = vpack.c.b16 %v1222, %v1214
    %v1503 = vpack.c.b16 %v1223, %v1215
    %v1504 = vpack.c.b16 %v1224, %v1216
    %v1505 = vpack.c.b16 %v1225, %v1217
    %v1506 = vpack.c.b16 %v1234, %v1226
    %v1507 = vpack.c.b16 %v1235, %v1227
    %v1508 = vpack.c.b16 %v1236, %v1228
    %v1509 = vpack.c.b16 %v1237, %v1229
    %v1510 = vpack.c.b16 %v1238, %v1230
    %v1511 = vpack.c.b16 %v1239, %v1231
    %v1512 = vpack.c.b16 %v1240, %v1232
    %v1513 = vpack.c.b16 %v1241, %v1233
    %v1514 = vpack.c.b16 %v1250, %v1242
    %v1515 = vpack.c.b16 %v1251, %v1243
    %v1516 = vpack.c.b16 %v1252, %v1244
    %v1517 = vpack.c.b16 %v1253, %v1245
    %v1518 = vpack.c.b16 %v1254, %v1246
    %v1519 = vpack.c.b16 %v1255, %v1247
    %v1520 = vpack.c.b16 %v1256, %v1248
    %v1521 = vpack.c.b16 %v1257, %v1249
    %v1522 = vpack.c.b16 %v1266, %v1258
    %v1523 = vpack.c.b16 %v1267, %v1259
    %v1524 = vpack.c.b16 %v1268, %v1260
    %v1525 = vpack.c.b16 %v1269, %v1261
    %v1526 = vpack.c.b16 %v1270, %v1262
    %v1527 = vpack.c.b16 %v1271, %v1263
    %v1528 = vpack.c.b16 %v1272, %v1264
    %v1529 = vpack.c.b16 %v1273, %v1265
    %1786 = vmatprep.subr.bf16.mxu0 %v1275
    %1787 = vmatpush1.bf16.msra.mxu0 %v1274
    %1788 = vmatprep.subr.bf16.mxu0 %v1283
    %1789 = vmatpush1.bf16.msra.mxu0 %v1282
    %1790 = vmatprep.subr.bf16.mxu0 %v1291
    %1791 = vmatpush1.bf16.msra.mxu0 %v1290
    %1792 = vmatprep.subr.bf16.mxu0 %v1299
    %1793 = vmatpush1.bf16.msra.mxu0 %v1298
    %1794 = vmatprep.subr.bf16.mxu0 %v1307
    %1795 = vmatpush1.bf16.msra.mxu0 %v1306
    %1796 = vmatprep.subr.bf16.mxu0 %v1315
    %1797 = vmatpush1.bf16.msra.mxu0 %v1314
    %1798 = vmatprep.subr.bf16.mxu0 %v1323
    %1799 = vmatpush1.bf16.msra.mxu0 %v1322
    %1800 = vmatprep.subr.bf16.mxu0 %v1331
    %1801 = vmatpush1.bf16.msra.mxu0 %v1330
    %1802 = vmatprep.subr.bf16.mxu0 %v1339
    %1803 = vmatpush1.bf16.msra.mxu0 %v1338
    %1804 = vmatprep.subr.bf16.mxu0 %v1347
    %1805 = vmatpush1.bf16.msra.mxu0 %v1346
    %1806 = vmatprep.subr.bf16.mxu0 %v1355
    %1807 = vmatpush1.bf16.msra.mxu0 %v1354
    %1808 = vmatprep.subr.bf16.mxu0 %v1363
    %1809 = vmatpush1.bf16.msra.mxu0 %v1362
    %1810 = vmatprep.subr.bf16.mxu0 %v1371
    %1811 = vmatpush1.bf16.msra.mxu0 %v1370
    %1812 = vmatprep.subr.bf16.mxu0 %v1379
    %1813 = vmatpush1.bf16.msra.mxu0 %v1378
    %1814 = vmatprep.subr.bf16.mxu0 %v1387
    %1815 = vmatpush1.bf16.msra.mxu0 %v1386
    %1816 = vmatprep.subr.bf16.mxu0 %v1395
    %1817 = vmatpush1.bf16.msra.mxu0 %v1394
    %1818 = vmatprep.mubr.bf16.mxu0 %v205
    %1819 = vmatmul.mubr.bf16.gmra.mrb[0].mxu0 %v204
    %v1820 = vpop.f32.mrb[0].mxu0
    %v1821 = vadd.f32 %v469, %v1820
    %v1822 = vpop.f32.mrb[0].mxu0
    %v1823 = vadd.f32 %v473, %v1822
    %v1824 = vpop.f32.mrb[0].mxu0
    %v1825 = vpop.f32.mrb[0].mxu0
    %1826 = vdwg.mxu0
    %1827 = vmatprep.subr.bf16.mxu0 %v1403
    %1828 = vmatpush1.bf16.msra.mxu0 %v1402
    %1829 = vmatprep.subr.bf16.mxu0 %v1411
    %1830 = vmatpush1.bf16.msra.mxu0 %v1410
    %1831 = vmatprep.subr.bf16.mxu0 %v1419
    %1832 = vmatpush1.bf16.msra.mxu0 %v1418
    %1833 = vmatprep.subr.bf16.mxu0 %v1427
    %1834 = vmatpush1.bf16.msra.mxu0 %v1426
    %1835 = vmatprep.subr.bf16.mxu0 %v1435
    %1836 = vmatpush1.bf16.msra.mxu0 %v1434
    %1837 = vmatprep.subr.bf16.mxu0 %v1443
    %1838 = vmatpush1.bf16.msra.mxu0 %v1442
    %1839 = vmatprep.subr.bf16.mxu0 %v1451
    %1840 = vmatpush1.bf16.msra.mxu0 %v1450
    %1841 = vmatprep.subr.bf16.mxu0 %v1459
    %1842 = vmatpush1.bf16.msra.mxu0 %v1458
    %1843 = vmatprep.subr.bf16.mxu0 %v1467
    %1844 = vmatpush1.bf16.msra.mxu0 %v1466
    %1845 = vmatprep.subr.bf16.mxu0 %v1475
    %1846 = vmatpush1.bf16.msra.mxu0 %v1474
    %1847 = vmatprep.subr.bf16.mxu0 %v1483
    %1848 = vmatpush1.bf16.msra.mxu0 %v1482
    %1849 = vmatprep.subr.bf16.mxu0 %v1491
    %1850 = vmatpush1.bf16.msra.mxu0 %v1490
    %1851 = vmatprep.subr.bf16.mxu0 %v1499
    %1852 = vmatpush1.bf16.msra.mxu0 %v1498
    %1853 = vmatprep.subr.bf16.mxu0 %v1507
    %1854 = vmatpush1.bf16.msra.mxu0 %v1506
    %1855 = vmatprep.subr.bf16.mxu0 %v1515
    %1856 = vmatpush1.bf16.msra.mxu0 %v1514
    %1857 = vmatprep.subr.bf16.mxu0 %v1523
    %1858 = vmatpush1.bf16.msra.mxu0 %v1522
    %1859 = vmatprep.mubr.bf16.mxu0 %v207
    %1860 = vmatmul.mubr.bf16.gmra.mrb[0].mxu0 %v206
    %v1861 = vpop.f32.mrb[0].mxu0
    %v1862 = vadd.f32 %v1821, %v1861
    %v1863 = vpop.f32.mrb[0].mxu0
    %v1864 = vadd.f32 %v1823, %v1863
    %v1865 = vpop.f32.mrb[0].mxu0
    %v1866 = vpop.f32.mrb[0].mxu0
    %1867 = vdwg.mxu0
    %1868 = vmatprep.subr.bf16.mxu0 %v1277
    %1869 = vmatpush1.bf16.msra.mxu0 %v1276
    %1870 = vmatprep.subr.bf16.mxu0 %v1285
    %1871 = vmatpush1.bf16.msra.mxu0 %v1284
    %1872 = vmatprep.subr.bf16.mxu0 %v1293
    %1873 = vmatpush1.bf16.msra.mxu0 %v1292
    %1874 = vmatprep.subr.bf16.mxu0 %v1301
    %1875 = vmatpush1.bf16.msra.mxu0 %v1300
    %1876 = vmatprep.subr.bf16.mxu0 %v1309
    %1877 = vmatpush1.bf16.msra.mxu0 %v1308
    %1878 = vmatprep.subr.bf16.mxu0 %v1317
    %1879 = vmatpush1.bf16.msra.mxu0 %v1316
    %1880 = vmatprep.subr.bf16.mxu0 %v1325
    %1881 = vmatpush1.bf16.msra.mxu0 %v1324
    %1882 = vmatprep.subr.bf16.mxu0 %v1333
    %1883 = vmatpush1.bf16.msra.mxu0 %v1332
    %1884 = vmatprep.subr.bf16.mxu0 %v1341
    %1885 = vmatpush1.bf16.msra.mxu0 %v1340
    %1886 = vmatprep.subr.bf16.mxu0 %v1349
    %1887 = vmatpush1.bf16.msra.mxu0 %v1348
    %1888 = vmatprep.subr.bf16.mxu0 %v1357
    %1889 = vmatpush1.bf16.msra.mxu0 %v1356
    %1890 = vmatprep.subr.bf16.mxu0 %v1365
    %1891 = vmatpush1.bf16.msra.mxu0 %v1364
    %1892 = vmatprep.subr.bf16.mxu0 %v1373
    %1893 = vmatpush1.bf16.msra.mxu0 %v1372
    %1894 = vmatprep.subr.bf16.mxu0 %v1381
    %1895 = vmatpush1.bf16.msra.mxu0 %v1380
    %1896 = vmatprep.subr.bf16.mxu0 %v1389
    %1897 = vmatpush1.bf16.msra.mxu0 %v1388
    %1898 = vmatprep.subr.bf16.mxu0 %v1397
    %1899 = vmatpush1.bf16.msra.mxu0 %v1396
    %1900 = vmatprep.mubr.bf16.mxu0 %v205
    %1901 = vmatmul.mubr.bf16.gmra.mrb[0].mxu0 %v204
    %v1902 = vpop.f32.mrb[0].mxu0
    %v1903 = vadd.f32 %v477, %v1902
    %v1904 = vpop.f32.mrb[0].mxu0
    %v1905 = vadd.f32 %v481, %v1904
    %v1906 = vpop.f32.mrb[0].mxu0
    %v1907 = vpop.f32.mrb[0].mxu0
    %1908 = vdwg.mxu0
    %1909 = vmatprep.subr.bf16.mxu0 %v1405
    %1910 = vmatpush1.bf16.msra.mxu0 %v1404
    %1911 = vmatprep.subr.bf16.mxu0 %v1413
    %1912 = vmatpush1.bf16.msra.mxu0 %v1412
    %1913 = vmatprep.subr.bf16.mxu0 %v1421
    %1914 = vmatpush1.bf16.msra.mxu0 %v1420
    %1915 = vmatprep.subr.bf16.mxu0 %v1429
    %1916 = vmatpush1.bf16.msra.mxu0 %v1428
    %1917 = vmatprep.subr.bf16.mxu0 %v1437
    %1918 = vmatpush1.bf16.msra.mxu0 %v1436
    %1919 = vmatprep.subr.bf16.mxu0 %v1445
    %1920 = vmatpush1.bf16.msra.mxu0 %v1444
    %1921 = vmatprep.subr.bf16.mxu0 %v1453
    %1922 = vmatpush1.bf16.msra.mxu0 %v1452
    %1923 = vmatprep.subr.bf16.mxu0 %v1461
    %1924 = vmatpush1.bf16.msra.mxu0 %v1460
    %1925 = vmatprep.subr.bf16.mxu0 %v1469
    %1926 = vmatpush1.bf16.msra.mxu0 %v1468
    %1927 = vmatprep.subr.bf16.mxu0 %v1477
    %1928 = vmatpush1.bf16.msra.mxu0 %v1476
    %1929 = vmatprep.subr.bf16.mxu0 %v1485
    %1930 = vmatpush1.bf16.msra.mxu0 %v1484
    %1931 = vmatprep.subr.bf16.mxu0 %v1493
    %1932 = vmatpush1.bf16.msra.mxu0 %v1492
    %1933 = vmatprep.subr.bf16.mxu0 %v1501
    %1934 = vmatpush1.bf16.msra.mxu0 %v1500
    %1935 = vmatprep.subr.bf16.mxu0 %v1509
    %1936 = vmatpush1.bf16.msra.mxu0 %v1508
    %1937 = vmatprep.subr.bf16.mxu0 %v1517
    %1938 = vmatpush1.bf16.msra.mxu0 %v1516
    %1939 = vmatprep.subr.bf16.mxu0 %v1525
    %1940 = vmatpush1.bf16.msra.mxu0 %v1524
    %1941 = vmatprep.mubr.bf16.mxu0 %v207
    %1942 = vmatmul.mubr.bf16.gmra.mrb[0].mxu0 %v206
    %v1943 = vpop.f32.mrb[0].mxu0
    %v1944 = vadd.f32 %v1903, %v1943
    %v1945 = vpop.f32.mrb[0].mxu0
    %v1946 = vadd.f32 %v1905, %v1945
    %v1947 = vpop.f32.mrb[0].mxu0
    %v1948 = vpop.f32.mrb[0].mxu0
    %1949 = vdwg.mxu0
    %1950 = vmatprep.subr.bf16.mxu0 %v1279
    %1951 = vmatpush1.bf16.msra.mxu0 %v1278
    %1952 = vmatprep.subr.bf16.mxu0 %v1287
    %1953 = vmatpush1.bf16.msra.mxu0 %v1286
    %1954 = vmatprep.subr.bf16.mxu0 %v1295
    %1955 = vmatpush1.bf16.msra.mxu0 %v1294
    %1956 = vmatprep.subr.bf16.mxu0 %v1303
    %1957 = vmatpush1.bf16.msra.mxu0 %v1302
    %1958 = vmatprep.subr.bf16.mxu0 %v1311
    %1959 = vmatpush1.bf16.msra.mxu0 %v1310
    %1960 = vmatprep.subr.bf16.mxu0 %v1319
    %1961 = vmatpush1.bf16.msra.mxu0 %v1318
    %1962 = vmatprep.subr.bf16.mxu0 %v1327
    %1963 = vmatpush1.bf16.msra.mxu0 %v1326
    %1964 = vmatprep.subr.bf16.mxu0 %v1335
    %1965 = vmatpush1.bf16.msra.mxu0 %v1334
    %1966 = vmatprep.subr.bf16.mxu0 %v1343
    %1967 = vmatpush1.bf16.msra.mxu0 %v1342
    %1968 = vmatprep.subr.bf16.mxu0 %v1351
    %1969 = vmatpush1.bf16.msra.mxu0 %v1350
    %1970 = vmatprep.subr.bf16.mxu0 %v1359
    %1971 = vmatpush1.bf16.msra.mxu0 %v1358
    %1972 = vmatprep.subr.bf16.mxu0 %v1367
    %1973 = vmatpush1.bf16.msra.mxu0 %v1366
    %1974 = vmatprep.subr.bf16.mxu0 %v1375
    %1975 = vmatpush1.bf16.msra.mxu0 %v1374
    %1976 = vmatprep.subr.bf16.mxu0 %v1383
    %1977 = vmatpush1.bf16.msra.mxu0 %v1382
    %1978 = vmatprep.subr.bf16.mxu0 %v1391
    %1979 = vmatpush1.bf16.msra.mxu0 %v1390
    %1980 = vmatprep.subr.bf16.mxu0 %v1399
    %1981 = vmatpush1.bf16.msra.mxu0 %v1398
    %1982 = vmatprep.mubr.bf16.mxu0 %v205
    %1983 = vmatmul.mubr.bf16.gmra.mrb[0].mxu0 %v204
    %v1984 = vpop.f32.mrb[0].mxu0
    %v1985 = vadd.f32 %v485, %v1984
    %v1986 = vpop.f32.mrb[0].mxu0
    %v1987 = vadd.f32 %v489, %v1986
    %v1988 = vpop.f32.mrb[0].mxu0
    %v1989 = vpop.f32.mrb[0].mxu0
    %1990 = vdwg.mxu0
    %1991 = vmatprep.subr.bf16.mxu0 %v1407
    %1992 = vmatpush1.bf16.msra.mxu0 %v1406
    %1993 = vmatprep.subr.bf16.mxu0 %v1415
    %1994 = vmatpush1.bf16.msra.mxu0 %v1414
    %1995 = vmatprep.subr.bf16.mxu0 %v1423
    %1996 = vmatpush1.bf16.msra.mxu0 %v1422
    %1997 = vmatprep.subr.bf16.mxu0 %v1431
    %1998 = vmatpush1.bf16.msra.mxu0 %v1430
    %1999 = vmatprep.subr.bf16.mxu0 %v1439
    %2000 = vmatpush1.bf16.msra.mxu0 %v1438
    %2001 = vmatprep.subr.bf16.mxu0 %v1447
    %2002 = vmatpush1.bf16.msra.mxu0 %v1446
    %2003 = vmatprep.subr.bf16.mxu0 %v1455
    %2004 = vmatpush1.bf16.msra.mxu0 %v1454
    %2005 = vmatprep.subr.bf16.mxu0 %v1463
    %2006 = vmatpush1.bf16.msra.mxu0 %v1462
    %2007 = vmatprep.subr.bf16.mxu0 %v1471
    %2008 = vmatpush1.bf16.msra.mxu0 %v1470
    %2009 = vmatprep.subr.bf16.mxu0 %v1479
    %2010 = vmatpush1.bf16.msra.mxu0 %v1478
    %2011 = vmatprep.subr.bf16.mxu0 %v1487
    %2012 = vmatpush1.bf16.msra.mxu0 %v1486
    %2013 = vmatprep.subr.bf16.mxu0 %v1495
    %2014 = vmatpush1.bf16.msra.mxu0 %v1494
    %2015 = vmatprep.subr.bf16.mxu0 %v1503
    %2016 = vmatpush1.bf16.msra.mxu0 %v1502
    %2017 = vmatprep.subr.bf16.mxu0 %v1511
    %2018 = vmatpush1.bf16.msra.mxu0 %v1510
    %2019 = vmatprep.subr.bf16.mxu0 %v1519
    %2020 = vmatpush1.bf16.msra.mxu0 %v1518
    %2021 = vmatprep.subr.bf16.mxu0 %v1527
    %2022 = vmatpush1.bf16.msra.mxu0 %v1526
    %2023 = vmatprep.mubr.bf16.mxu0 %v207
    %2024 = vmatmul.mubr.bf16.gmra.mrb[0].mxu0 %v206
    %v2025 = vpop.f32.mrb[0].mxu0
    %v2026 = vadd.f32 %v1985, %v2025
    %v2027 = vpop.f32.mrb[0].mxu0
    %v2028 = vadd.f32 %v1987, %v2027
    %v2029 = vpop.f32.mrb[0].mxu0
    %v2030 = vpop.f32.mrb[0].mxu0
    %2031 = vdwg.mxu0
    %2032 = vmatprep.subr.bf16.mxu0 %v1281
    %2033 = vmatpush1.bf16.msra.mxu0 %v1280
    %2034 = vmatprep.subr.bf16.mxu0 %v1289
    %2035 = vmatpush1.bf16.msra.mxu0 %v1288
    %2036 = vmatprep.subr.bf16.mxu0 %v1297
    %2037 = vmatpush1.bf16.msra.mxu0 %v1296
    %2038 = vmatprep.subr.bf16.mxu0 %v1305
    %2039 = vmatpush1.bf16.msra.mxu0 %v1304
    %2040 = vmatprep.subr.bf16.mxu0 %v1313
    %2041 = vmatpush1.bf16.msra.mxu0 %v1312
    %2042 = vmatprep.subr.bf16.mxu0 %v1321
    %2043 = vmatpush1.bf16.msra.mxu0 %v1320
    %2044 = vmatprep.subr.bf16.mxu0 %v1329
    %2045 = vmatpush1.bf16.msra.mxu0 %v1328
    %2046 = vmatprep.subr.bf16.mxu0 %v1337
    %2047 = vmatpush1.bf16.msra.mxu0 %v1336
    %2048 = vmatprep.subr.bf16.mxu0 %v1345
    %2049 = vmatpush1.bf16.msra.mxu0 %v1344
    %2050 = vmatprep.subr.bf16.mxu0 %v1353
    %2051 = vmatpush1.bf16.msra.mxu0 %v1352
    %2052 = vmatprep.subr.bf16.mxu0 %v1361
    %2053 = vmatpush1.bf16.msra.mxu0 %v1360
    %2054 = vmatprep.subr.bf16.mxu0 %v1369
    %2055 = vmatpush1.bf16.msra.mxu0 %v1368
    %2056 = vmatprep.subr.bf16.mxu0 %v1377
    %2057 = vmatpush1.bf16.msra.mxu0 %v1376
    %2058 = vmatprep.subr.bf16.mxu0 %v1385
    %2059 = vmatpush1.bf16.msra.mxu0 %v1384
    %2060 = vmatprep.subr.bf16.mxu0 %v1393
    %2061 = vmatpush1.bf16.msra.mxu0 %v1392
    %2062 = vmatprep.subr.bf16.mxu0 %v1401
    %2063 = vmatpush1.bf16.msra.mxu0 %v1400
    %2064 = vmatprep.mubr.bf16.mxu0 %v205
    %2065 = vmatmul.mubr.bf16.gmra.mrb[0].mxu0 %v204
    %v2066 = vpop.f32.mrb[0].mxu0
    %v2067 = vadd.f32 %v493, %v2066
    %v2068 = vpop.f32.mrb[0].mxu0
    %v2069 = vadd.f32 %v497, %v2068
    %v2070 = vpop.f32.mrb[0].mxu0
    %v2071 = vpop.f32.mrb[0].mxu0
    %2072 = vdwg.mxu0
    %2073 = vmatprep.subr.bf16.mxu0 %v1409
    %2074 = vmatpush1.bf16.msra.mxu0 %v1408
    %2075 = vmatprep.subr.bf16.mxu0 %v1417
    %2076 = vmatpush1.bf16.msra.mxu0 %v1416
    %2077 = vmatprep.subr.bf16.mxu0 %v1425
    %2078 = vmatpush1.bf16.msra.mxu0 %v1424
    %2079 = vmatprep.subr.bf16.mxu0 %v1433
    %2080 = vmatpush1.bf16.msra.mxu0 %v1432
    %2081 = vmatprep.subr.bf16.mxu0 %v1441
    %2082 = vmatpush1.bf16.msra.mxu0 %v1440
    %2083 = vmatprep.subr.bf16.mxu0 %v1449
    %2084 = vmatpush1.bf16.msra.mxu0 %v1448
    %2085 = vmatprep.subr.bf16.mxu0 %v1457
    %2086 = vmatpush1.bf16.msra.mxu0 %v1456
    %2087 = vmatprep.subr.bf16.mxu0 %v1465
    %2088 = vmatpush1.bf16.msra.mxu0 %v1464
    %2089 = vmatprep.subr.bf16.mxu0 %v1473
    %2090 = vmatpush1.bf16.msra.mxu0 %v1472
    %2091 = vmatprep.subr.bf16.mxu0 %v1481
    %2092 = vmatpush1.bf16.msra.mxu0 %v1480
    %2093 = vmatprep.subr.bf16.mxu0 %v1489
    %2094 = vmatpush1.bf16.msra.mxu0 %v1488
    %2095 = vmatprep.subr.bf16.mxu0 %v1497
    %2096 = vmatpush1.bf16.msra.mxu0 %v1496
    %2097 = vmatprep.subr.bf16.mxu0 %v1505
    %2098 = vmatpush1.bf16.msra.mxu0 %v1504
    %2099 = vmatprep.subr.bf16.mxu0 %v1513
    %2100 = vmatpush1.bf16.msra.mxu0 %v1512
    %2101 = vmatprep.subr.bf16.mxu0 %v1521
    %2102 = vmatpush1.bf16.msra.mxu0 %v1520
    %2103 = vmatprep.subr.bf16.mxu0 %v1529
    %2104 = vmatpush1.bf16.msra.mxu0 %v1528
    %2105 = vmatprep.mubr.bf16.mxu0 %v207
    %2106 = vmatmul.mubr.bf16.gmra.mrb[0].mxu0 %v206
    %v2107 = vpop.f32.mrb[0].mxu0
    %v2108 = vadd.f32 %v2067, %v2107
    %v2109 = vpop.f32.mrb[0].mxu0
    %v2110 = vadd.f32 %v2069, %v2109
    %v2111 = vpop.f32.mrb[0].mxu0
    %v2112 = vpop.f32.mrb[0].mxu0
    %2113 = vdwg.mxu0
    %vm2114 = vcmp.gt.f32.partialorder %v1862, 0.0
    %vm2115 = vcmp.gt.f32.partialorder %v1864, 0.0
    %vm2116 = vcmp.gt.f32.partialorder %v1944, 0.0
    %vm2117 = vcmp.gt.f32.partialorder %v1946, 0.0
    %vm2118 = vcmp.gt.f32.partialorder %v2026, 0.0
    %vm2119 = vcmp.gt.f32.partialorder %v2028, 0.0
    %vm2120 = vcmp.gt.f32.partialorder %v2108, 0.0
    %vm2121 = vcmp.gt.f32.partialorder %v2110, 0.0
    %v2122 = vmin.f32 %v1862, 0.0
    %v2123 = vmin.f32 %v1864, 0.0
    %v2124 = vmin.f32 %v1944, 0.0
    %v2125 = vmin.f32 %v1946, 0.0
    %v2126 = vmin.f32 %v2026, 0.0
    %v2127 = vmin.f32 %v2028, 0.0
    %v2128 = vmin.f32 %v2108, 0.0
    %v2129 = vmin.f32 %v2110, 0.0
    %v2130 = vmul.f32 %v2122, 1.442695
    %v2131 = vpow.pop %v2130
    %v2132 = vmul.f32 %v2123, 1.442695
    %v2133 = vpow.pop %v2132
    %v2134 = vmul.f32 %v2124, 1.442695
    %v2135 = vpow.pop %v2134
    %v2136 = vmul.f32 %v2125, 1.442695
    %v2137 = vpow.pop %v2136
    %v2138 = vmul.f32 %v2126, 1.442695
    %v2139 = vpow.pop %v2138
    %v2140 = vmul.f32 %v2127, 1.442695
    %v2141 = vpow.pop %v2140
    %v2142 = vmul.f32 %v2128, 1.442695
    %v2143 = vpow.pop %v2142
    %v2144 = vmul.f32 %v2129, 1.442695
    %v2145 = vpow.pop %v2144
    %v2146 = vsub.f32 %v2131, 1.0
    %v2147 = vsub.f32 %v2133, 1.0
    %v2148 = vsub.f32 %v2135, 1.0
    %v2149 = vsub.f32 %v2137, 1.0
    %v2150 = vsub.f32 %v2139, 1.0
    %v2151 = vsub.f32 %v2141, 1.0
    %v2152 = vsub.f32 %v2143, 1.0
    %v2153 = vsub.f32 %v2145, 1.0
    %v2154 = vsel %vm2114, %v1862, %v2146
    %v2155 = vsel %vm2115, %v1864, %v2147
    %v2156 = vsel %vm2116, %v1944, %v2148
    %v2157 = vsel %vm2117, %v1946, %v2149
    %v2158 = vsel %vm2118, %v2026, %v2150
    %v2159 = vsel %vm2119, %v2028, %v2151
    %v2160 = vsel %vm2120, %v2108, %v2152
    %v2161 = vsel %vm2121, %v2110, %v2153
    %v2162 = vpack.c.bf16 %v2154, %v2154
    %v2163 = vpack.c.bf16 %v2155, %v2155
    %v2164 = vpack.c.bf16 %v2156, %v2156
    %v2165 = vpack.c.bf16 %v2157, %v2157
    %v2166 = vpack.c.bf16 %v2158, %v2158
    %v2167 = vpack.c.bf16 %v2159, %v2159
    %v2168 = vpack.c.bf16 %v2160, %v2160
    %v2169 = vpack.c.bf16 %v2161, %v2161
    %v2170 = vld [vmem:[#allocation7] sm:$0xff]
    %v2171 = vld [vmem:[#allocation7 + $0x8] sm:$0xff]
    %v2172 = vld [vmem:[#allocation7 + $0x10] sm:$0xff]
    %v2173 = vld [vmem:[#allocation7 + $0x18] sm:$0xff]
    %v2174 = vld [vmem:[#allocation7 + $0x20] sm:$0xff]
    %v2175 = vld [vmem:[#allocation7 + $0x28] sm:$0xff]
    %v2176 = vld [vmem:[#allocation7 + $0x30] sm:$0xff]
    %v2177 = vld [vmem:[#allocation7 + $0x38] sm:$0xff]
    %v2178 = vld [vmem:[#allocation7 + $0x40] sm:$0xff]
    %v2179 = vld [vmem:[#allocation7 + $0x48] sm:$0xff]
    %v2180 = vld [vmem:[#allocation7 + $0x50] sm:$0xff]
    %v2181 = vld [vmem:[#allocation7 + $0x58] sm:$0xff]
    %v2182 = vld [vmem:[#allocation7 + $0x60] sm:$0xff]
    %v2183 = vld [vmem:[#allocation7 + $0x68] sm:$0xff]
    %v2184 = vld [vmem:[#allocation7 + $0x70] sm:$0xff]
    %v2185 = vld [vmem:[#allocation7 + $0x78] sm:$0xff]
    %v2186 = vld [vmem:[#allocation7 + $0x80] sm:$0xff]
    %v2187 = vld [vmem:[#allocation7 + $0x88] sm:$0xff]
    %v2188 = vld [vmem:[#allocation7 + $0x90] sm:$0xff]
    %v2189 = vld [vmem:[#allocation7 + $0x98] sm:$0xff]
    %v2190 = vld [vmem:[#allocation7 + $0xa0] sm:$0xff]
    %v2191 = vld [vmem:[#allocation7 + $0xa8] sm:$0xff]
    %v2192 = vld [vmem:[#allocation7 + $0xb0] sm:$0xff]
    %v2193 = vld [vmem:[#allocation7 + $0xb8] sm:$0xff]
    %v2194 = vld [vmem:[#allocation7 + $0xc0] sm:$0xff]
    %v2195 = vld [vmem:[#allocation7 + $0xc8] sm:$0xff]
    %v2196 = vld [vmem:[#allocation7 + $0xd0] sm:$0xff]
    %v2197 = vld [vmem:[#allocation7 + $0xd8] sm:$0xff]
    %v2198 = vld [vmem:[#allocation7 + $0xe0] sm:$0xff]
    %v2199 = vld [vmem:[#allocation7 + $0xe8] sm:$0xff]
    %v2200 = vld [vmem:[#allocation7 + $0xf0] sm:$0xff]
    %v2201 = vld [vmem:[#allocation7 + $0xf8] sm:$0xff]
    %v2202 = vld [vmem:[#allocation7 + $0x100] sm:$0xff]
    %v2203 = vld [vmem:[#allocation7 + $0x108] sm:$0xff]
    %v2204 = vld [vmem:[#allocation7 + $0x110] sm:$0xff]
    %v2205 = vld [vmem:[#allocation7 + $0x118] sm:$0xff]
    %v2206 = vld [vmem:[#allocation7 + $0x120] sm:$0xff]
    %v2207 = vld [vmem:[#allocation7 + $0x128] sm:$0xff]
    %v2208 = vld [vmem:[#allocation7 + $0x130] sm:$0xff]
    %v2209 = vld [vmem:[#allocation7 + $0x138] sm:$0xff]
    %v2210 = vld [vmem:[#allocation7 + $0x140] sm:$0xff]
    %v2211 = vld [vmem:[#allocation7 + $0x148] sm:$0xff]
    %v2212 = vld [vmem:[#allocation7 + $0x150] sm:$0xff]
    %v2213 = vld [vmem:[#allocation7 + $0x158] sm:$0xff]
    %v2214 = vld [vmem:[#allocation7 + $0x160] sm:$0xff]
    %v2215 = vld [vmem:[#allocation7 + $0x168] sm:$0xff]
    %v2216 = vld [vmem:[#allocation7 + $0x170] sm:$0xff]
    %v2217 = vld [vmem:[#allocation7 + $0x178] sm:$0xff]
    %v2218 = vld [vmem:[#allocation7 + $0x180] sm:$0xff]
    %v2219 = vld [vmem:[#allocation7 + $0x188] sm:$0xff]
    %v2220 = vld [vmem:[#allocation7 + $0x190] sm:$0xff]
    %v2221 = vld [vmem:[#allocation7 + $0x198] sm:$0xff]
    %v2222 = vld [vmem:[#allocation7 + $0x1a0] sm:$0xff]
    %v2223 = vld [vmem:[#allocation7 + $0x1a8] sm:$0xff]
    %v2224 = vld [vmem:[#allocation7 + $0x1b0] sm:$0xff]
    %v2225 = vld [vmem:[#allocation7 + $0x1b8] sm:$0xff]
    %v2226 = vld [vmem:[#allocation7 + $0x1c0] sm:$0xff]
    %v2227 = vld [vmem:[#allocation7 + $0x1c8] sm:$0xff]
    %v2228 = vld [vmem:[#allocation7 + $0x1d0] sm:$0xff]
    %v2229 = vld [vmem:[#allocation7 + $0x1d8] sm:$0xff]
    %v2230 = vld [vmem:[#allocation7 + $0x1e0] sm:$0xff]
    %v2231 = vld [vmem:[#allocation7 + $0x1e8] sm:$0xff]
    %v2232 = vld [vmem:[#allocation7 + $0x1f0] sm:$0xff]
    %v2233 = vld [vmem:[#allocation7 + $0x1f8] sm:$0xff]
    %v2234 = vld [vmem:[#allocation7 + $0x200] sm:$0xff]
    %v2235 = vld [vmem:[#allocation7 + $0x208] sm:$0xff]
    %v2236 = vld [vmem:[#allocation7 + $0x210] sm:$0xff]
    %v2237 = vld [vmem:[#allocation7 + $0x218] sm:$0xff]
    %v2238 = vld [vmem:[#allocation7 + $0x220] sm:$0xff]
    %v2239 = vld [vmem:[#allocation7 + $0x228] sm:$0xff]
    %v2240 = vld [vmem:[#allocation7 + $0x230] sm:$0xff]
    %v2241 = vld [vmem:[#allocation7 + $0x238] sm:$0xff]
    %v2242 = vld [vmem:[#allocation7 + $0x240] sm:$0xff]
    %v2243 = vld [vmem:[#allocation7 + $0x248] sm:$0xff]
    %v2244 = vld [vmem:[#allocation7 + $0x250] sm:$0xff]
    %v2245 = vld [vmem:[#allocation7 + $0x258] sm:$0xff]
    %v2246 = vld [vmem:[#allocation7 + $0x260] sm:$0xff]
    %v2247 = vld [vmem:[#allocation7 + $0x268] sm:$0xff]
    %v2248 = vld [vmem:[#allocation7 + $0x270] sm:$0xff]
    %v2249 = vld [vmem:[#allocation7 + $0x278] sm:$0xff]
    %v2250 = vld [vmem:[#allocation7 + $0x280] sm:$0xff]
    %v2251 = vld [vmem:[#allocation7 + $0x288] sm:$0xff]
    %v2252 = vld [vmem:[#allocation7 + $0x290] sm:$0xff]
    %v2253 = vld [vmem:[#allocation7 + $0x298] sm:$0xff]
    %v2254 = vld [vmem:[#allocation7 + $0x2a0] sm:$0xff]
    %v2255 = vld [vmem:[#allocation7 + $0x2a8] sm:$0xff]
    %v2256 = vld [vmem:[#allocation7 + $0x2b0] sm:$0xff]
    %v2257 = vld [vmem:[#allocation7 + $0x2b8] sm:$0xff]
    %v2258 = vld [vmem:[#allocation7 + $0x2c0] sm:$0xff]
    %v2259 = vld [vmem:[#allocation7 + $0x2c8] sm:$0xff]
    %v2260 = vld [vmem:[#allocation7 + $0x2d0] sm:$0xff]
    %v2261 = vld [vmem:[#allocation7 + $0x2d8] sm:$0xff]
    %v2262 = vld [vmem:[#allocation7 + $0x2e0] sm:$0xff]
    %v2263 = vld [vmem:[#allocation7 + $0x2e8] sm:$0xff]
    %v2264 = vld [vmem:[#allocation7 + $0x2f0] sm:$0xff]
    %v2265 = vld [vmem:[#allocation7 + $0x2f8] sm:$0xff]
    %v2266 = vld [vmem:[#allocation7 + $0x300] sm:$0xff]
    %v2267 = vld [vmem:[#allocation7 + $0x308] sm:$0xff]
    %v2268 = vld [vmem:[#allocation7 + $0x310] sm:$0xff]
    %v2269 = vld [vmem:[#allocation7 + $0x318] sm:$0xff]
    %v2270 = vld [vmem:[#allocation7 + $0x320] sm:$0xff]
    %v2271 = vld [vmem:[#allocation7 + $0x328] sm:$0xff]
    %v2272 = vld [vmem:[#allocation7 + $0x330] sm:$0xff]
    %v2273 = vld [vmem:[#allocation7 + $0x338] sm:$0xff]
    %v2274 = vld [vmem:[#allocation7 + $0x340] sm:$0xff]
    %v2275 = vld [vmem:[#allocation7 + $0x348] sm:$0xff]
    %v2276 = vld [vmem:[#allocation7 + $0x350] sm:$0xff]
    %v2277 = vld [vmem:[#allocation7 + $0x358] sm:$0xff]
    %v2278 = vld [vmem:[#allocation7 + $0x360] sm:$0xff]
    %v2279 = vld [vmem:[#allocation7 + $0x368] sm:$0xff]
    %v2280 = vld [vmem:[#allocation7 + $0x370] sm:$0xff]
    %v2281 = vld [vmem:[#allocation7 + $0x378] sm:$0xff]
    %v2282 = vld [vmem:[#allocation7 + $0x380] sm:$0xff]
    %v2283 = vld [vmem:[#allocation7 + $0x388] sm:$0xff]
    %v2284 = vld [vmem:[#allocation7 + $0x390] sm:$0xff]
    %v2285 = vld [vmem:[#allocation7 + $0x398] sm:$0xff]
    %v2286 = vld [vmem:[#allocation7 + $0x3a0] sm:$0xff]
    %v2287 = vld [vmem:[#allocation7 + $0x3a8] sm:$0xff]
    %v2288 = vld [vmem:[#allocation7 + $0x3b0] sm:$0xff]
    %v2289 = vld [vmem:[#allocation7 + $0x3b8] sm:$0xff]
    %v2290 = vld [vmem:[#allocation7 + $0x3c0] sm:$0xff]
    %v2291 = vld [vmem:[#allocation7 + $0x3c8] sm:$0xff]
    %v2292 = vld [vmem:[#allocation7 + $0x3d0] sm:$0xff]
    %v2293 = vld [vmem:[#allocation7 + $0x3d8] sm:$0xff]
    %v2294 = vld [vmem:[#allocation7 + $0x3e0] sm:$0xff]
    %v2295 = vld [vmem:[#allocation7 + $0x3e8] sm:$0xff]
    %v2296 = vld [vmem:[#allocation7 + $0x3f0] sm:$0xff]
    %v2297 = vld [vmem:[#allocation7 + $0x3f8] sm:$0xff]
    %v2298 = vld [vmem:[#allocation7 + $0x400] sm:$0xff]
    %v2299 = vld [vmem:[#allocation7 + $0x408] sm:$0xff]
    %v2300 = vld [vmem:[#allocation7 + $0x410] sm:$0xff]
    %v2301 = vld [vmem:[#allocation7 + $0x418] sm:$0xff]
    %v2302 = vld [vmem:[#allocation7 + $0x420] sm:$0xff]
    %v2303 = vld [vmem:[#allocation7 + $0x428] sm:$0xff]
    %v2304 = vld [vmem:[#allocation7 + $0x430] sm:$0xff]
    %v2305 = vld [vmem:[#allocation7 + $0x438] sm:$0xff]
    %v2306 = vld [vmem:[#allocation7 + $0x440] sm:$0xff]
    %v2307 = vld [vmem:[#allocation7 + $0x448] sm:$0xff]
    %v2308 = vld [vmem:[#allocation7 + $0x450] sm:$0xff]
    %v2309 = vld [vmem:[#allocation7 + $0x458] sm:$0xff]
    %v2310 = vld [vmem:[#allocation7 + $0x460] sm:$0xff]
    %v2311 = vld [vmem:[#allocation7 + $0x468] sm:$0xff]
    %v2312 = vld [vmem:[#allocation7 + $0x470] sm:$0xff]
    %v2313 = vld [vmem:[#allocation7 + $0x478] sm:$0xff]
    %v2314 = vld [vmem:[#allocation7 + $0x480] sm:$0xff]
    %v2315 = vld [vmem:[#allocation7 + $0x488] sm:$0xff]
    %v2316 = vld [vmem:[#allocation7 + $0x490] sm:$0xff]
    %v2317 = vld [vmem:[#allocation7 + $0x498] sm:$0xff]
    %v2318 = vld [vmem:[#allocation7 + $0x4a0] sm:$0xff]
    %v2319 = vld [vmem:[#allocation7 + $0x4a8] sm:$0xff]
    %v2320 = vld [vmem:[#allocation7 + $0x4b0] sm:$0xff]
    %v2321 = vld [vmem:[#allocation7 + $0x4b8] sm:$0xff]
    %v2322 = vld [vmem:[#allocation7 + $0x4c0] sm:$0xff]
    %v2323 = vld [vmem:[#allocation7 + $0x4c8] sm:$0xff]
    %v2324 = vld [vmem:[#allocation7 + $0x4d0] sm:$0xff]
    %v2325 = vld [vmem:[#allocation7 + $0x4d8] sm:$0xff]
    %v2326 = vld [vmem:[#allocation7 + $0x4e0] sm:$0xff]
    %v2327 = vld [vmem:[#allocation7 + $0x4e8] sm:$0xff]
    %v2328 = vld [vmem:[#allocation7 + $0x4f0] sm:$0xff]
    %v2329 = vld [vmem:[#allocation7 + $0x4f8] sm:$0xff]
    %v2330 = vld [vmem:[#allocation7 + $0x500] sm:$0xff]
    %v2331 = vld [vmem:[#allocation7 + $0x508] sm:$0xff]
    %v2332 = vld [vmem:[#allocation7 + $0x510] sm:$0xff]
    %v2333 = vld [vmem:[#allocation7 + $0x518] sm:$0xff]
    %v2334 = vld [vmem:[#allocation7 + $0x520] sm:$0xff]
    %v2335 = vld [vmem:[#allocation7 + $0x528] sm:$0xff]
    %v2336 = vld [vmem:[#allocation7 + $0x530] sm:$0xff]
    %v2337 = vld [vmem:[#allocation7 + $0x538] sm:$0xff]
    %v2338 = vld [vmem:[#allocation7 + $0x540] sm:$0xff]
    %v2339 = vld [vmem:[#allocation7 + $0x548] sm:$0xff]
    %v2340 = vld [vmem:[#allocation7 + $0x550] sm:$0xff]
    %v2341 = vld [vmem:[#allocation7 + $0x558] sm:$0xff]
    %v2342 = vld [vmem:[#allocation7 + $0x560] sm:$0xff]
    %v2343 = vld [vmem:[#allocation7 + $0x568] sm:$0xff]
    %v2344 = vld [vmem:[#allocation7 + $0x570] sm:$0xff]
    %v2345 = vld [vmem:[#allocation7 + $0x578] sm:$0xff]
    %v2346 = vld [vmem:[#allocation7 + $0x580] sm:$0xff]
    %v2347 = vld [vmem:[#allocation7 + $0x588] sm:$0xff]
    %v2348 = vld [vmem:[#allocation7 + $0x590] sm:$0xff]
    %v2349 = vld [vmem:[#allocation7 + $0x598] sm:$0xff]
    %v2350 = vld [vmem:[#allocation7 + $0x5a0] sm:$0xff]
    %v2351 = vld [vmem:[#allocation7 + $0x5a8] sm:$0xff]
    %v2352 = vld [vmem:[#allocation7 + $0x5b0] sm:$0xff]
    %v2353 = vld [vmem:[#allocation7 + $0x5b8] sm:$0xff]
    %v2354 = vld [vmem:[#allocation7 + $0x5c0] sm:$0xff]
    %v2355 = vld [vmem:[#allocation7 + $0x5c8] sm:$0xff]
    %v2356 = vld [vmem:[#allocation7 + $0x5d0] sm:$0xff]
    %v2357 = vld [vmem:[#allocation7 + $0x5d8] sm:$0xff]
    %v2358 = vld [vmem:[#allocation7 + $0x5e0] sm:$0xff]
    %v2359 = vld [vmem:[#allocation7 + $0x5e8] sm:$0xff]
    %v2360 = vld [vmem:[#allocation7 + $0x5f0] sm:$0xff]
    %v2361 = vld [vmem:[#allocation7 + $0x5f8] sm:$0xff]
    %v2362 = vld [vmem:[#allocation7 + $0x600] sm:$0xff]
    %v2363 = vld [vmem:[#allocation7 + $0x608] sm:$0xff]
    %v2364 = vld [vmem:[#allocation7 + $0x610] sm:$0xff]
    %v2365 = vld [vmem:[#allocation7 + $0x618] sm:$0xff]
    %v2366 = vld [vmem:[#allocation7 + $0x620] sm:$0xff]
    %v2367 = vld [vmem:[#allocation7 + $0x628] sm:$0xff]
    %v2368 = vld [vmem:[#allocation7 + $0x630] sm:$0xff]
    %v2369 = vld [vmem:[#allocation7 + $0x638] sm:$0xff]
    %v2370 = vld [vmem:[#allocation7 + $0x640] sm:$0xff]
    %v2371 = vld [vmem:[#allocation7 + $0x648] sm:$0xff]
    %v2372 = vld [vmem:[#allocation7 + $0x650] sm:$0xff]
    %v2373 = vld [vmem:[#allocation7 + $0x658] sm:$0xff]
    %v2374 = vld [vmem:[#allocation7 + $0x660] sm:$0xff]
    %v2375 = vld [vmem:[#allocation7 + $0x668] sm:$0xff]
    %v2376 = vld [vmem:[#allocation7 + $0x670] sm:$0xff]
    %v2377 = vld [vmem:[#allocation7 + $0x678] sm:$0xff]
    %v2378 = vld [vmem:[#allocation7 + $0x680] sm:$0xff]
    %v2379 = vld [vmem:[#allocation7 + $0x688] sm:$0xff]
    %v2380 = vld [vmem:[#allocation7 + $0x690] sm:$0xff]
    %v2381 = vld [vmem:[#allocation7 + $0x698] sm:$0xff]
    %v2382 = vld [vmem:[#allocation7 + $0x6a0] sm:$0xff]
    %v2383 = vld [vmem:[#allocation7 + $0x6a8] sm:$0xff]
    %v2384 = vld [vmem:[#allocation7 + $0x6b0] sm:$0xff]
    %v2385 = vld [vmem:[#allocation7 + $0x6b8] sm:$0xff]
    %v2386 = vld [vmem:[#allocation7 + $0x6c0] sm:$0xff]
    %v2387 = vld [vmem:[#allocation7 + $0x6c8] sm:$0xff]
    %v2388 = vld [vmem:[#allocation7 + $0x6d0] sm:$0xff]
    %v2389 = vld [vmem:[#allocation7 + $0x6d8] sm:$0xff]
    %v2390 = vld [vmem:[#allocation7 + $0x6e0] sm:$0xff]
    %v2391 = vld [vmem:[#allocation7 + $0x6e8] sm:$0xff]
    %v2392 = vld [vmem:[#allocation7 + $0x6f0] sm:$0xff]
    %v2393 = vld [vmem:[#allocation7 + $0x6f8] sm:$0xff]
    %v2394 = vld [vmem:[#allocation7 + $0x700] sm:$0xff]
    %v2395 = vld [vmem:[#allocation7 + $0x708] sm:$0xff]
    %v2396 = vld [vmem:[#allocation7 + $0x710] sm:$0xff]
    %v2397 = vld [vmem:[#allocation7 + $0x718] sm:$0xff]
    %v2398 = vld [vmem:[#allocation7 + $0x720] sm:$0xff]
    %v2399 = vld [vmem:[#allocation7 + $0x728] sm:$0xff]
    %v2400 = vld [vmem:[#allocation7 + $0x730] sm:$0xff]
    %v2401 = vld [vmem:[#allocation7 + $0x738] sm:$0xff]
    %v2402 = vld [vmem:[#allocation7 + $0x740] sm:$0xff]
    %v2403 = vld [vmem:[#allocation7 + $0x748] sm:$0xff]
    %v2404 = vld [vmem:[#allocation7 + $0x750] sm:$0xff]
    %v2405 = vld [vmem:[#allocation7 + $0x758] sm:$0xff]
    %v2406 = vld [vmem:[#allocation7 + $0x760] sm:$0xff]
    %v2407 = vld [vmem:[#allocation7 + $0x768] sm:$0xff]
    %v2408 = vld [vmem:[#allocation7 + $0x770] sm:$0xff]
    %v2409 = vld [vmem:[#allocation7 + $0x778] sm:$0xff]
    %v2410 = vld [vmem:[#allocation7 + $0x780] sm:$0xff]
    %v2411 = vld [vmem:[#allocation7 + $0x788] sm:$0xff]
    %v2412 = vld [vmem:[#allocation7 + $0x790] sm:$0xff]
    %v2413 = vld [vmem:[#allocation7 + $0x798] sm:$0xff]
    %v2414 = vld [vmem:[#allocation7 + $0x7a0] sm:$0xff]
    %v2415 = vld [vmem:[#allocation7 + $0x7a8] sm:$0xff]
    %v2416 = vld [vmem:[#allocation7 + $0x7b0] sm:$0xff]
    %v2417 = vld [vmem:[#allocation7 + $0x7b8] sm:$0xff]
    %v2418 = vld [vmem:[#allocation7 + $0x7c0] sm:$0xff]
    %v2419 = vld [vmem:[#allocation7 + $0x7c8] sm:$0xff]
    %v2420 = vld [vmem:[#allocation7 + $0x7d0] sm:$0xff]
    %v2421 = vld [vmem:[#allocation7 + $0x7d8] sm:$0xff]
    %v2422 = vld [vmem:[#allocation7 + $0x7e0] sm:$0xff]
    %v2423 = vld [vmem:[#allocation7 + $0x7e8] sm:$0xff]
    %v2424 = vld [vmem:[#allocation7 + $0x7f0] sm:$0xff]
    %v2425 = vld [vmem:[#allocation7 + $0x7f8] sm:$0xff]
    %v2426 = vld [vmem:[%s6] sm:$0xf]
    %v2428 = vlaneseq
    %v2429 = vshrl.u32 %v2428, 7
    %v2430 = vsub.s32 0, %v2429
    %v2431 = vrot.slane %v2426, %v2430
    %v2432 = vlaneseq
    %v2433 = vshrl.u32 %v2432, 7
    %v2434 = vsub.s32 1, %v2433
    %v2435 = vrot.slane %v2426, %v2434
    %v2436 = vlaneseq
    %v2437 = vshrl.u32 %v2436, 7
    %v2438 = vsub.s32 2, %v2437
    %v2439 = vrot.slane %v2426, %v2438
    %v2440 = vlaneseq
    %v2441 = vshrl.u32 %v2440, 7
    %v2442 = vsub.s32 3, %v2441
    %v2443 = vrot.slane %v2426, %v2442
    %v2704 = vunpack.c.l.b16 %v2170
    %v2705 = vunpack.c.h.b16 %v2170
    %v2706 = vunpack.c.l.b16 %v2171
    %v2707 = vunpack.c.h.b16 %v2171
    %v2708 = vunpack.c.l.b16 %v2172
    %v2709 = vunpack.c.h.b16 %v2172
    %v2710 = vunpack.c.l.b16 %v2173
    %v2711 = vunpack.c.h.b16 %v2173
    %v2712 = vunpack.c.l.b16 %v2174
    %v2713 = vunpack.c.h.b16 %v2174
    %v2714 = vunpack.c.l.b16 %v2175
    %v2715 = vunpack.c.h.b16 %v2175
    %v2716 = vunpack.c.l.b16 %v2176
    %v2717 = vunpack.c.h.b16 %v2176
    %v2718 = vunpack.c.l.b16 %v2177
    %v2719 = vunpack.c.h.b16 %v2177
    %v2720 = vunpack.c.l.b16 %v2178
    %v2721 = vunpack.c.h.b16 %v2178
    %v2722 = vunpack.c.l.b16 %v2179
    %v2723 = vunpack.c.h.b16 %v2179
    %v2724 = vunpack.c.l.b16 %v2180
    %v2725 = vunpack.c.h.b16 %v2180
    %v2726 = vunpack.c.l.b16 %v2181
    %v2727 = vunpack.c.h.b16 %v2181
    %v2728 = vunpack.c.l.b16 %v2182
    %v2729 = vunpack.c.h.b16 %v2182
    %v2730 = vunpack.c.l.b16 %v2183
    %v2731 = vunpack.c.h.b16 %v2183
    %v2732 = vunpack.c.l.b16 %v2184
    %v2733 = vunpack.c.h.b16 %v2184
    %v2734 = vunpack.c.l.b16 %v2185
    %v2735 = vunpack.c.h.b16 %v2185
    %v2736 = vunpack.c.l.b16 %v2186
    %v2737 = vunpack.c.h.b16 %v2186
    %v2738 = vunpack.c.l.b16 %v2187
    %v2739 = vunpack.c.h.b16 %v2187
    %v2740 = vunpack.c.l.b16 %v2188
    %v2741 = vunpack.c.h.b16 %v2188
    %v2742 = vunpack.c.l.b16 %v2189
    %v2743 = vunpack.c.h.b16 %v2189
    %v2744 = vunpack.c.l.b16 %v2190
    %v2745 = vunpack.c.h.b16 %v2190
    %v2746 = vunpack.c.l.b16 %v2191
    %v2747 = vunpack.c.h.b16 %v2191
    %v2748 = vunpack.c.l.b16 %v2192
    %v2749 = vunpack.c.h.b16 %v2192
    %v2750 = vunpack.c.l.b16 %v2193
    %v2751 = vunpack.c.h.b16 %v2193
    %v2752 = vunpack.c.l.b16 %v2194
    %v2753 = vunpack.c.h.b16 %v2194
    %v2754 = vunpack.c.l.b16 %v2195
    %v2755 = vunpack.c.h.b16 %v2195
    %v2756 = vunpack.c.l.b16 %v2196
    %v2757 = vunpack.c.h.b16 %v2196
    %v2758 = vunpack.c.l.b16 %v2197
    %v2759 = vunpack.c.h.b16 %v2197
    %v2760 = vunpack.c.l.b16 %v2198
    %v2761 = vunpack.c.h.b16 %v2198
    %v2762 = vunpack.c.l.b16 %v2199
    %v2763 = vunpack.c.h.b16 %v2199
    %v2764 = vunpack.c.l.b16 %v2200
    %v2765 = vunpack.c.h.b16 %v2200
    %v2766 = vunpack.c.l.b16 %v2201
    %v2767 = vunpack.c.h.b16 %v2201
    %v2768 = vunpack.c.l.b16 %v2202
    %v2769 = vunpack.c.h.b16 %v2202
    %v2770 = vunpack.c.l.b16 %v2203
    %v2771 = vunpack.c.h.b16 %v2203
    %v2772 = vunpack.c.l.b16 %v2204
    %v2773 = vunpack.c.h.b16 %v2204
    %v2774 = vunpack.c.l.b16 %v2205
    %v2775 = vunpack.c.h.b16 %v2205
    %v2776 = vunpack.c.l.b16 %v2206
    %v2777 = vunpack.c.h.b16 %v2206
    %v2778 = vunpack.c.l.b16 %v2207
    %v2779 = vunpack.c.h.b16 %v2207
    %v2780 = vunpack.c.l.b16 %v2208
    %v2781 = vunpack.c.h.b16 %v2208
    %v2782 = vunpack.c.l.b16 %v2209
    %v2783 = vunpack.c.h.b16 %v2209
    %v2784 = vunpack.c.l.b16 %v2210
    %v2785 = vunpack.c.h.b16 %v2210
    %v2786 = vunpack.c.l.b16 %v2211
    %v2787 = vunpack.c.h.b16 %v2211
    %v2788 = vunpack.c.l.b16 %v2212
    %v2789 = vunpack.c.h.b16 %v2212
    %v2790 = vunpack.c.l.b16 %v2213
    %v2791 = vunpack.c.h.b16 %v2213
    %v2792 = vunpack.c.l.b16 %v2214
    %v2793 = vunpack.c.h.b16 %v2214
    %v2794 = vunpack.c.l.b16 %v2215
    %v2795 = vunpack.c.h.b16 %v2215
    %v2796 = vunpack.c.l.b16 %v2216
    %v2797 = vunpack.c.h.b16 %v2216
    %v2798 = vunpack.c.l.b16 %v2217
    %v2799 = vunpack.c.h.b16 %v2217
    %v2800 = vunpack.c.l.b16 %v2218
    %v2801 = vunpack.c.h.b16 %v2218
    %v2802 = vunpack.c.l.b16 %v2219
    %v2803 = vunpack.c.h.b16 %v2219
    %v2804 = vunpack.c.l.b16 %v2220
    %v2805 = vunpack.c.h.b16 %v2220
    %v2806 = vunpack.c.l.b16 %v2221
    %v2807 = vunpack.c.h.b16 %v2221
    %v2808 = vunpack.c.l.b16 %v2222
    %v2809 = vunpack.c.h.b16 %v2222
    %v2810 = vunpack.c.l.b16 %v2223
    %v2811 = vunpack.c.h.b16 %v2223
    %v2812 = vunpack.c.l.b16 %v2224
    %v2813 = vunpack.c.h.b16 %v2224
    %v2814 = vunpack.c.l.b16 %v2225
    %v2815 = vunpack.c.h.b16 %v2225
    %v2816 = vunpack.c.l.b16 %v2226
    %v2817 = vunpack.c.h.b16 %v2226
    %v2818 = vunpack.c.l.b16 %v2227
    %v2819 = vunpack.c.h.b16 %v2227
    %v2820 = vunpack.c.l.b16 %v2228
    %v2821 = vunpack.c.h.b16 %v2228
    %v2822 = vunpack.c.l.b16 %v2229
    %v2823 = vunpack.c.h.b16 %v2229
    %v2824 = vunpack.c.l.b16 %v2230
    %v2825 = vunpack.c.h.b16 %v2230
    %v2826 = vunpack.c.l.b16 %v2231
    %v2827 = vunpack.c.h.b16 %v2231
    %v2828 = vunpack.c.l.b16 %v2232
    %v2829 = vunpack.c.h.b16 %v2232
    %v2830 = vunpack.c.l.b16 %v2233
    %v2831 = vunpack.c.h.b16 %v2233
    %v2832 = vunpack.c.l.b16 %v2234
    %v2833 = vunpack.c.h.b16 %v2234
    %v2834 = vunpack.c.l.b16 %v2235
    %v2835 = vunpack.c.h.b16 %v2235
    %v2836 = vunpack.c.l.b16 %v2236
    %v2837 = vunpack.c.h.b16 %v2236
    %v2838 = vunpack.c.l.b16 %v2237
    %v2839 = vunpack.c.h.b16 %v2237
    %v2840 = vunpack.c.l.b16 %v2238
    %v2841 = vunpack.c.h.b16 %v2238
    %v2842 = vunpack.c.l.b16 %v2239
    %v2843 = vunpack.c.h.b16 %v2239
    %v2844 = vunpack.c.l.b16 %v2240
    %v2845 = vunpack.c.h.b16 %v2240
    %v2846 = vunpack.c.l.b16 %v2241
    %v2847 = vunpack.c.h.b16 %v2241
    %v2848 = vunpack.c.l.b16 %v2242
    %v2849 = vunpack.c.h.b16 %v2242
    %v2850 = vunpack.c.l.b16 %v2243
    %v2851 = vunpack.c.h.b16 %v2243
    %v2852 = vunpack.c.l.b16 %v2244
    %v2853 = vunpack.c.h.b16 %v2244
    %v2854 = vunpack.c.l.b16 %v2245
    %v2855 = vunpack.c.h.b16 %v2245
    %v2856 = vunpack.c.l.b16 %v2246
    %v2857 = vunpack.c.h.b16 %v2246
    %v2858 = vunpack.c.l.b16 %v2247
    %v2859 = vunpack.c.h.b16 %v2247
    %v2860 = vunpack.c.l.b16 %v2248
    %v2861 = vunpack.c.h.b16 %v2248
    %v2862 = vunpack.c.l.b16 %v2249
    %v2863 = vunpack.c.h.b16 %v2249
    %v2864 = vunpack.c.l.b16 %v2250
    %v2865 = vunpack.c.h.b16 %v2250
    %v2866 = vunpack.c.l.b16 %v2251
    %v2867 = vunpack.c.h.b16 %v2251
    %v2868 = vunpack.c.l.b16 %v2252
    %v2869 = vunpack.c.h.b16 %v2252
    %v2870 = vunpack.c.l.b16 %v2253
    %v2871 = vunpack.c.h.b16 %v2253
    %v2872 = vunpack.c.l.b16 %v2254
    %v2873 = vunpack.c.h.b16 %v2254
    %v2874 = vunpack.c.l.b16 %v2255
    %v2875 = vunpack.c.h.b16 %v2255
    %v2876 = vunpack.c.l.b16 %v2256
    %v2877 = vunpack.c.h.b16 %v2256
    %v2878 = vunpack.c.l.b16 %v2257
    %v2879 = vunpack.c.h.b16 %v2257
    %v2880 = vunpack.c.l.b16 %v2258
    %v2881 = vunpack.c.h.b16 %v2258
    %v2882 = vunpack.c.l.b16 %v2259
    %v2883 = vunpack.c.h.b16 %v2259
    %v2884 = vunpack.c.l.b16 %v2260
    %v2885 = vunpack.c.h.b16 %v2260
    %v2886 = vunpack.c.l.b16 %v2261
    %v2887 = vunpack.c.h.b16 %v2261
    %v2888 = vunpack.c.l.b16 %v2262
    %v2889 = vunpack.c.h.b16 %v2262
    %v2890 = vunpack.c.l.b16 %v2263
    %v2891 = vunpack.c.h.b16 %v2263
    %v2892 = vunpack.c.l.b16 %v2264
    %v2893 = vunpack.c.h.b16 %v2264
    %v2894 = vunpack.c.l.b16 %v2265
    %v2895 = vunpack.c.h.b16 %v2265
    %v2896 = vunpack.c.l.b16 %v2266
    %v2897 = vunpack.c.h.b16 %v2266
    %v2898 = vunpack.c.l.b16 %v2267
    %v2899 = vunpack.c.h.b16 %v2267
    %v2900 = vunpack.c.l.b16 %v2268
    %v2901 = vunpack.c.h.b16 %v2268
    %v2902 = vunpack.c.l.b16 %v2269
    %v2903 = vunpack.c.h.b16 %v2269
    %v2904 = vunpack.c.l.b16 %v2270
    %v2905 = vunpack.c.h.b16 %v2270
    %v2906 = vunpack.c.l.b16 %v2271
    %v2907 = vunpack.c.h.b16 %v2271
    %v2908 = vunpack.c.l.b16 %v2272
    %v2909 = vunpack.c.h.b16 %v2272
    %v2910 = vunpack.c.l.b16 %v2273
    %v2911 = vunpack.c.h.b16 %v2273
    %v2912 = vunpack.c.l.b16 %v2274
    %v2913 = vunpack.c.h.b16 %v2274
    %v2914 = vunpack.c.l.b16 %v2275
    %v2915 = vunpack.c.h.b16 %v2275
    %v2916 = vunpack.c.l.b16 %v2276
    %v2917 = vunpack.c.h.b16 %v2276
    %v2918 = vunpack.c.l.b16 %v2277
    %v2919 = vunpack.c.h.b16 %v2277
    %v2920 = vunpack.c.l.b16 %v2278
    %v2921 = vunpack.c.h.b16 %v2278
    %v2922 = vunpack.c.l.b16 %v2279
    %v2923 = vunpack.c.h.b16 %v2279
    %v2924 = vunpack.c.l.b16 %v2280
    %v2925 = vunpack.c.h.b16 %v2280
    %v2926 = vunpack.c.l.b16 %v2281
    %v2927 = vunpack.c.h.b16 %v2281
    %v2928 = vunpack.c.l.b16 %v2282
    %v2929 = vunpack.c.h.b16 %v2282
    %v2930 = vunpack.c.l.b16 %v2283
    %v2931 = vunpack.c.h.b16 %v2283
    %v2932 = vunpack.c.l.b16 %v2284
    %v2933 = vunpack.c.h.b16 %v2284
    %v2934 = vunpack.c.l.b16 %v2285
    %v2935 = vunpack.c.h.b16 %v2285
    %v2936 = vunpack.c.l.b16 %v2286
    %v2937 = vunpack.c.h.b16 %v2286
    %v2938 = vunpack.c.l.b16 %v2287
    %v2939 = vunpack.c.h.b16 %v2287
    %v2940 = vunpack.c.l.b16 %v2288
    %v2941 = vunpack.c.h.b16 %v2288
    %v2942 = vunpack.c.l.b16 %v2289
    %v2943 = vunpack.c.h.b16 %v2289
    %v2944 = vunpack.c.l.b16 %v2290
    %v2945 = vunpack.c.h.b16 %v2290
    %v2946 = vunpack.c.l.b16 %v2291
    %v2947 = vunpack.c.h.b16 %v2291
    %v2948 = vunpack.c.l.b16 %v2292
    %v2949 = vunpack.c.h.b16 %v2292
    %v2950 = vunpack.c.l.b16 %v2293
    %v2951 = vunpack.c.h.b16 %v2293
    %v2952 = vunpack.c.l.b16 %v2294
    %v2953 = vunpack.c.h.b16 %v2294
    %v2954 = vunpack.c.l.b16 %v2295
    %v2955 = vunpack.c.h.b16 %v2295
    %v2956 = vunpack.c.l.b16 %v2296
    %v2957 = vunpack.c.h.b16 %v2296
    %v2958 = vunpack.c.l.b16 %v2297
    %v2959 = vunpack.c.h.b16 %v2297
    %v2960 = vunpack.c.l.b16 %v2298
    %v2961 = vunpack.c.h.b16 %v2298
    %v2962 = vunpack.c.l.b16 %v2299
    %v2963 = vunpack.c.h.b16 %v2299
    %v2964 = vunpack.c.l.b16 %v2300
    %v2965 = vunpack.c.h.b16 %v2300
    %v2966 = vunpack.c.l.b16 %v2301
    %v2967 = vunpack.c.h.b16 %v2301
    %v2968 = vunpack.c.l.b16 %v2302
    %v2969 = vunpack.c.h.b16 %v2302
    %v2970 = vunpack.c.l.b16 %v2303
    %v2971 = vunpack.c.h.b16 %v2303
    %v2972 = vunpack.c.l.b16 %v2304
    %v2973 = vunpack.c.h.b16 %v2304
    %v2974 = vunpack.c.l.b16 %v2305
    %v2975 = vunpack.c.h.b16 %v2305
    %v2976 = vunpack.c.l.b16 %v2306
    %v2977 = vunpack.c.h.b16 %v2306
    %v2978 = vunpack.c.l.b16 %v2307
    %v2979 = vunpack.c.h.b16 %v2307
    %v2980 = vunpack.c.l.b16 %v2308
    %v2981 = vunpack.c.h.b16 %v2308
    %v2982 = vunpack.c.l.b16 %v2309
    %v2983 = vunpack.c.h.b16 %v2309
    %v2984 = vunpack.c.l.b16 %v2310
    %v2985 = vunpack.c.h.b16 %v2310
    %v2986 = vunpack.c.l.b16 %v2311
    %v2987 = vunpack.c.h.b16 %v2311
    %v2988 = vunpack.c.l.b16 %v2312
    %v2989 = vunpack.c.h.b16 %v2312
    %v2990 = vunpack.c.l.b16 %v2313
    %v2991 = vunpack.c.h.b16 %v2313
    %v2992 = vunpack.c.l.b16 %v2314
    %v2993 = vunpack.c.h.b16 %v2314
    %v2994 = vunpack.c.l.b16 %v2315
    %v2995 = vunpack.c.h.b16 %v2315
    %v2996 = vunpack.c.l.b16 %v2316
    %v2997 = vunpack.c.h.b16 %v2316
    %v2998 = vunpack.c.l.b16 %v2317
    %v2999 = vunpack.c.h.b16 %v2317
    %v3000 = vunpack.c.l.b16 %v2318
    %v3001 = vunpack.c.h.b16 %v2318
    %v3002 = vunpack.c.l.b16 %v2319
    %v3003 = vunpack.c.h.b16 %v2319
    %v3004 = vunpack.c.l.b16 %v2320
    %v3005 = vunpack.c.h.b16 %v2320
    %v3006 = vunpack.c.l.b16 %v2321
    %v3007 = vunpack.c.h.b16 %v2321
    %v3008 = vunpack.c.l.b16 %v2322
    %v3009 = vunpack.c.h.b16 %v2322
    %v3010 = vunpack.c.l.b16 %v2323
    %v3011 = vunpack.c.h.b16 %v2323
    %v3012 = vunpack.c.l.b16 %v2324
    %v3013 = vunpack.c.h.b16 %v2324
    %v3014 = vunpack.c.l.b16 %v2325
    %v3015 = vunpack.c.h.b16 %v2325
    %v3016 = vunpack.c.l.b16 %v2326
    %v3017 = vunpack.c.h.b16 %v2326
    %v3018 = vunpack.c.l.b16 %v2327
    %v3019 = vunpack.c.h.b16 %v2327
    %v3020 = vunpack.c.l.b16 %v2328
    %v3021 = vunpack.c.h.b16 %v2328
    %v3022 = vunpack.c.l.b16 %v2329
    %v3023 = vunpack.c.h.b16 %v2329
    %v3024 = vunpack.c.l.b16 %v2330
    %v3025 = vunpack.c.h.b16 %v2330
    %v3026 = vunpack.c.l.b16 %v2331
    %v3027 = vunpack.c.h.b16 %v2331
    %v3028 = vunpack.c.l.b16 %v2332
    %v3029 = vunpack.c.h.b16 %v2332
    %v3030 = vunpack.c.l.b16 %v2333
    %v3031 = vunpack.c.h.b16 %v2333
    %v3032 = vunpack.c.l.b16 %v2334
    %v3033 = vunpack.c.h.b16 %v2334
    %v3034 = vunpack.c.l.b16 %v2335
    %v3035 = vunpack.c.h.b16 %v2335
    %v3036 = vunpack.c.l.b16 %v2336
    %v3037 = vunpack.c.h.b16 %v2336
    %v3038 = vunpack.c.l.b16 %v2337
    %v3039 = vunpack.c.h.b16 %v2337
    %v3040 = vunpack.c.l.b16 %v2338
    %v3041 = vunpack.c.h.b16 %v2338
    %v3042 = vunpack.c.l.b16 %v2339
    %v3043 = vunpack.c.h.b16 %v2339
    %v3044 = vunpack.c.l.b16 %v2340
    %v3045 = vunpack.c.h.b16 %v2340
    %v3046 = vunpack.c.l.b16 %v2341
    %v3047 = vunpack.c.h.b16 %v2341
    %v3048 = vunpack.c.l.b16 %v2342
    %v3049 = vunpack.c.h.b16 %v2342
    %v3050 = vunpack.c.l.b16 %v2343
    %v3051 = vunpack.c.h.b16 %v2343
    %v3052 = vunpack.c.l.b16 %v2344
    %v3053 = vunpack.c.h.b16 %v2344
    %v3054 = vunpack.c.l.b16 %v2345
    %v3055 = vunpack.c.h.b16 %v2345
    %v3056 = vunpack.c.l.b16 %v2346
    %v3057 = vunpack.c.h.b16 %v2346
    %v3058 = vunpack.c.l.b16 %v2347
    %v3059 = vunpack.c.h.b16 %v2347
    %v3060 = vunpack.c.l.b16 %v2348
    %v3061 = vunpack.c.h.b16 %v2348
    %v3062 = vunpack.c.l.b16 %v2349
    %v3063 = vunpack.c.h.b16 %v2349
    %v3064 = vunpack.c.l.b16 %v2350
    %v3065 = vunpack.c.h.b16 %v2350
    %v3066 = vunpack.c.l.b16 %v2351
    %v3067 = vunpack.c.h.b16 %v2351
    %v3068 = vunpack.c.l.b16 %v2352
    %v3069 = vunpack.c.h.b16 %v2352
    %v3070 = vunpack.c.l.b16 %v2353
    %v3071 = vunpack.c.h.b16 %v2353
    %v3072 = vunpack.c.l.b16 %v2354
    %v3073 = vunpack.c.h.b16 %v2354
    %v3074 = vunpack.c.l.b16 %v2355
    %v3075 = vunpack.c.h.b16 %v2355
    %v3076 = vunpack.c.l.b16 %v2356
    %v3077 = vunpack.c.h.b16 %v2356
    %v3078 = vunpack.c.l.b16 %v2357
    %v3079 = vunpack.c.h.b16 %v2357
    %v3080 = vunpack.c.l.b16 %v2358
    %v3081 = vunpack.c.h.b16 %v2358
    %v3082 = vunpack.c.l.b16 %v2359
    %v3083 = vunpack.c.h.b16 %v2359
    %v3084 = vunpack.c.l.b16 %v2360
    %v3085 = vunpack.c.h.b16 %v2360
    %v3086 = vunpack.c.l.b16 %v2361
    %v3087 = vunpack.c.h.b16 %v2361
    %v3088 = vunpack.c.l.b16 %v2362
    %v3089 = vunpack.c.h.b16 %v2362
    %v3090 = vunpack.c.l.b16 %v2363
    %v3091 = vunpack.c.h.b16 %v2363
    %v3092 = vunpack.c.l.b16 %v2364
    %v3093 = vunpack.c.h.b16 %v2364
    %v3094 = vunpack.c.l.b16 %v2365
    %v3095 = vunpack.c.h.b16 %v2365
    %v3096 = vunpack.c.l.b16 %v2366
    %v3097 = vunpack.c.h.b16 %v2366
    %v3098 = vunpack.c.l.b16 %v2367
    %v3099 = vunpack.c.h.b16 %v2367
    %v3100 = vunpack.c.l.b16 %v2368
    %v3101 = vunpack.c.h.b16 %v2368
    %v3102 = vunpack.c.l.b16 %v2369
    %v3103 = vunpack.c.h.b16 %v2369
    %v3104 = vunpack.c.l.b16 %v2370
    %v3105 = vunpack.c.h.b16 %v2370
    %v3106 = vunpack.c.l.b16 %v2371
    %v3107 = vunpack.c.h.b16 %v2371
    %v3108 = vunpack.c.l.b16 %v2372
    %v3109 = vunpack.c.h.b16 %v2372
    %v3110 = vunpack.c.l.b16 %v2373
    %v3111 = vunpack.c.h.b16 %v2373
    %v3112 = vunpack.c.l.b16 %v2374
    %v3113 = vunpack.c.h.b16 %v2374
    %v3114 = vunpack.c.l.b16 %v2375
    %v3115 = vunpack.c.h.b16 %v2375
    %v3116 = vunpack.c.l.b16 %v2376
    %v3117 = vunpack.c.h.b16 %v2376
    %v3118 = vunpack.c.l.b16 %v2377
    %v3119 = vunpack.c.h.b16 %v2377
    %v3120 = vunpack.c.l.b16 %v2378
    %v3121 = vunpack.c.h.b16 %v2378
    %v3122 = vunpack.c.l.b16 %v2379
    %v3123 = vunpack.c.h.b16 %v2379
    %v3124 = vunpack.c.l.b16 %v2380
    %v3125 = vunpack.c.h.b16 %v2380
    %v3126 = vunpack.c.l.b16 %v2381
    %v3127 = vunpack.c.h.b16 %v2381
    %v3128 = vunpack.c.l.b16 %v2382
    %v3129 = vunpack.c.h.b16 %v2382
    %v3130 = vunpack.c.l.b16 %v2383
    %v3131 = vunpack.c.h.b16 %v2383
    %v3132 = vunpack.c.l.b16 %v2384
    %v3133 = vunpack.c.h.b16 %v2384
    %v3134 = vunpack.c.l.b16 %v2385
    %v3135 = vunpack.c.h.b16 %v2385
    %v3136 = vunpack.c.l.b16 %v2386
    %v3137 = vunpack.c.h.b16 %v2386
    %v3138 = vunpack.c.l.b16 %v2387
    %v3139 = vunpack.c.h.b16 %v2387
    %v3140 = vunpack.c.l.b16 %v2388
    %v3141 = vunpack.c.h.b16 %v2388
    %v3142 = vunpack.c.l.b16 %v2389
    %v3143 = vunpack.c.h.b16 %v2389
    %v3144 = vunpack.c.l.b16 %v2390
    %v3145 = vunpack.c.h.b16 %v2390
    %v3146 = vunpack.c.l.b16 %v2391
    %v3147 = vunpack.c.h.b16 %v2391
    %v3148 = vunpack.c.l.b16 %v2392
    %v3149 = vunpack.c.h.b16 %v2392
    %v3150 = vunpack.c.l.b16 %v2393
    %v3151 = vunpack.c.h.b16 %v2393
    %v3152 = vunpack.c.l.b16 %v2394
    %v3153 = vunpack.c.h.b16 %v2394
    %v3154 = vunpack.c.l.b16 %v2395
    %v3155 = vunpack.c.h.b16 %v2395
    %v3156 = vunpack.c.l.b16 %v2396
    %v3157 = vunpack.c.h.b16 %v2396
    %v3158 = vunpack.c.l.b16 %v2397
    %v3159 = vunpack.c.h.b16 %v2397
    %v3160 = vunpack.c.l.b16 %v2398
    %v3161 = vunpack.c.h.b16 %v2398
    %v3162 = vunpack.c.l.b16 %v2399
    %v3163 = vunpack.c.h.b16 %v2399
    %v3164 = vunpack.c.l.b16 %v2400
    %v3165 = vunpack.c.h.b16 %v2400
    %v3166 = vunpack.c.l.b16 %v2401
    %v3167 = vunpack.c.h.b16 %v2401
    %v3168 = vunpack.c.l.b16 %v2402
    %v3169 = vunpack.c.h.b16 %v2402
    %v3170 = vunpack.c.l.b16 %v2403
    %v3171 = vunpack.c.h.b16 %v2403
    %v3172 = vunpack.c.l.b16 %v2404
    %v3173 = vunpack.c.h.b16 %v2404
    %v3174 = vunpack.c.l.b16 %v2405
    %v3175 = vunpack.c.h.b16 %v2405
    %v3176 = vunpack.c.l.b16 %v2406
    %v3177 = vunpack.c.h.b16 %v2406
    %v3178 = vunpack.c.l.b16 %v2407
    %v3179 = vunpack.c.h.b16 %v2407
    %v3180 = vunpack.c.l.b16 %v2408
    %v3181 = vunpack.c.h.b16 %v2408
    %v3182 = vunpack.c.l.b16 %v2409
    %v3183 = vunpack.c.h.b16 %v2409
    %v3184 = vunpack.c.l.b16 %v2410
    %v3185 = vunpack.c.h.b16 %v2410
    %v3186 = vunpack.c.l.b16 %v2411
    %v3187 = vunpack.c.h.b16 %v2411
    %v3188 = vunpack.c.l.b16 %v2412
    %v3189 = vunpack.c.h.b16 %v2412
    %v3190 = vunpack.c.l.b16 %v2413
    %v3191 = vunpack.c.h.b16 %v2413
    %v3192 = vunpack.c.l.b16 %v2414
    %v3193 = vunpack.c.h.b16 %v2414
    %v3194 = vunpack.c.l.b16 %v2415
    %v3195 = vunpack.c.h.b16 %v2415
    %v3196 = vunpack.c.l.b16 %v2416
    %v3197 = vunpack.c.h.b16 %v2416
    %v3198 = vunpack.c.l.b16 %v2417
    %v3199 = vunpack.c.h.b16 %v2417
    %v3200 = vunpack.c.l.b16 %v2418
    %v3201 = vunpack.c.h.b16 %v2418
    %v3202 = vunpack.c.l.b16 %v2419
    %v3203 = vunpack.c.h.b16 %v2419
    %v3204 = vunpack.c.l.b16 %v2420
    %v3205 = vunpack.c.h.b16 %v2420
    %v3206 = vunpack.c.l.b16 %v2421
    %v3207 = vunpack.c.h.b16 %v2421
    %v3208 = vunpack.c.l.b16 %v2422
    %v3209 = vunpack.c.h.b16 %v2422
    %v3210 = vunpack.c.l.b16 %v2423
    %v3211 = vunpack.c.h.b16 %v2423
    %v3212 = vunpack.c.l.b16 %v2424
    %v3213 = vunpack.c.h.b16 %v2424
    %v3214 = vunpack.c.l.b16 %v2425
    %v3215 = vunpack.c.h.b16 %v2425
    %v3216 = vpack.c.b16 %v2708, %v2704
    %v3217 = vpack.c.b16 %v2709, %v2705
    %v3218 = vpack.c.b16 %v2710, %v2706
    %v3219 = vpack.c.b16 %v2711, %v2707
    %v3220 = vpack.c.b16 %v2716, %v2712
    %v3221 = vpack.c.b16 %v2717, %v2713
    %v3222 = vpack.c.b16 %v2718, %v2714
    %v3223 = vpack.c.b16 %v2719, %v2715
    %v3224 = vpack.c.b16 %v2724, %v2720
    %v3225 = vpack.c.b16 %v2725, %v2721
    %v3226 = vpack.c.b16 %v2726, %v2722
    %v3227 = vpack.c.b16 %v2727, %v2723
    %v3228 = vpack.c.b16 %v2732, %v2728
    %v3229 = vpack.c.b16 %v2733, %v2729
    %v3230 = vpack.c.b16 %v2734, %v2730
    %v3231 = vpack.c.b16 %v2735, %v2731
    %v3232 = vpack.c.b16 %v2740, %v2736
    %v3233 = vpack.c.b16 %v2741, %v2737
    %v3234 = vpack.c.b16 %v2742, %v2738
    %v3235 = vpack.c.b16 %v2743, %v2739
    %v3236 = vpack.c.b16 %v2748, %v2744
    %v3237 = vpack.c.b16 %v2749, %v2745
    %v3238 = vpack.c.b16 %v2750, %v2746
    %v3239 = vpack.c.b16 %v2751, %v2747
    %v3240 = vpack.c.b16 %v2756, %v2752
    %v3241 = vpack.c.b16 %v2757, %v2753
    %v3242 = vpack.c.b16 %v2758, %v2754
    %v3243 = vpack.c.b16 %v2759, %v2755
    %v3244 = vpack.c.b16 %v2764, %v2760
    %v3245 = vpack.c.b16 %v2765, %v2761
    %v3246 = vpack.c.b16 %v2766, %v2762
    %v3247 = vpack.c.b16 %v2767, %v2763
    %v3248 = vpack.c.b16 %v2772, %v2768
    %v3249 = vpack.c.b16 %v2773, %v2769
    %v3250 = vpack.c.b16 %v2774, %v2770
    %v3251 = vpack.c.b16 %v2775, %v2771
    %v3252 = vpack.c.b16 %v2780, %v2776
    %v3253 = vpack.c.b16 %v2781, %v2777
    %v3254 = vpack.c.b16 %v2782, %v2778
    %v3255 = vpack.c.b16 %v2783, %v2779
    %v3256 = vpack.c.b16 %v2788, %v2784
    %v3257 = vpack.c.b16 %v2789, %v2785
    %v3258 = vpack.c.b16 %v2790, %v2786
    %v3259 = vpack.c.b16 %v2791, %v2787
    %v3260 = vpack.c.b16 %v2796, %v2792
    %v3261 = vpack.c.b16 %v2797, %v2793
    %v3262 = vpack.c.b16 %v2798, %v2794
    %v3263 = vpack.c.b16 %v2799, %v2795
    %v3264 = vpack.c.b16 %v2804, %v2800
    %v3265 = vpack.c.b16 %v2805, %v2801
    %v3266 = vpack.c.b16 %v2806, %v2802
    %v3267 = vpack.c.b16 %v2807, %v2803
    %v3268 = vpack.c.b16 %v2812, %v2808
    %v3269 = vpack.c.b16 %v2813, %v2809
    %v3270 = vpack.c.b16 %v2814, %v2810
    %v3271 = vpack.c.b16 %v2815, %v2811
    %v3272 = vpack.c.b16 %v2820, %v2816
    %v3273 = vpack.c.b16 %v2821, %v2817
    %v3274 = vpack.c.b16 %v2822, %v2818
    %v3275 = vpack.c.b16 %v2823, %v2819
    %v3276 = vpack.c.b16 %v2828, %v2824
    %v3277 = vpack.c.b16 %v2829, %v2825
    %v3278 = vpack.c.b16 %v2830, %v2826
    %v3279 = vpack.c.b16 %v2831, %v2827
    %v3280 = vpack.c.b16 %v2836, %v2832
    %v3281 = vpack.c.b16 %v2837, %v2833
    %v3282 = vpack.c.b16 %v2838, %v2834
    %v3283 = vpack.c.b16 %v2839, %v2835
    %v3284 = vpack.c.b16 %v2844, %v2840
    %v3285 = vpack.c.b16 %v2845, %v2841
    %v3286 = vpack.c.b16 %v2846, %v2842
    %v3287 = vpack.c.b16 %v2847, %v2843
    %v3288 = vpack.c.b16 %v2852, %v2848
    %v3289 = vpack.c.b16 %v2853, %v2849
    %v3290 = vpack.c.b16 %v2854, %v2850
    %v3291 = vpack.c.b16 %v2855, %v2851
    %v3292 = vpack.c.b16 %v2860, %v2856
    %v3293 = vpack.c.b16 %v2861, %v2857
    %v3294 = vpack.c.b16 %v2862, %v2858
    %v3295 = vpack.c.b16 %v2863, %v2859
    %v3296 = vpack.c.b16 %v2868, %v2864
    %v3297 = vpack.c.b16 %v2869, %v2865
    %v3298 = vpack.c.b16 %v2870, %v2866
    %v3299 = vpack.c.b16 %v2871, %v2867
    %v3300 = vpack.c.b16 %v2876, %v2872
    %v3301 = vpack.c.b16 %v2877, %v2873
    %v3302 = vpack.c.b16 %v2878, %v2874
    %v3303 = vpack.c.b16 %v2879, %v2875
    %v3304 = vpack.c.b16 %v2884, %v2880
    %v3305 = vpack.c.b16 %v2885, %v2881
    %v3306 = vpack.c.b16 %v2886, %v2882
    %v3307 = vpack.c.b16 %v2887, %v2883
    %v3308 = vpack.c.b16 %v2892, %v2888
    %v3309 = vpack.c.b16 %v2893, %v2889
    %v3310 = vpack.c.b16 %v2894, %v2890
    %v3311 = vpack.c.b16 %v2895, %v2891
    %v3312 = vpack.c.b16 %v2900, %v2896
    %v3313 = vpack.c.b16 %v2901, %v2897
    %v3314 = vpack.c.b16 %v2902, %v2898
    %v3315 = vpack.c.b16 %v2903, %v2899
    %v3316 = vpack.c.b16 %v2908, %v2904
    %v3317 = vpack.c.b16 %v2909, %v2905
    %v3318 = vpack.c.b16 %v2910, %v2906
    %v3319 = vpack.c.b16 %v2911, %v2907
    %v3320 = vpack.c.b16 %v2916, %v2912
    %v3321 = vpack.c.b16 %v2917, %v2913
    %v3322 = vpack.c.b16 %v2918, %v2914
    %v3323 = vpack.c.b16 %v2919, %v2915
    %v3324 = vpack.c.b16 %v2924, %v2920
    %v3325 = vpack.c.b16 %v2925, %v2921
    %v3326 = vpack.c.b16 %v2926, %v2922
    %v3327 = vpack.c.b16 %v2927, %v2923
    %v3328 = vpack.c.b16 %v2932, %v2928
    %v3329 = vpack.c.b16 %v2933, %v2929
    %v3330 = vpack.c.b16 %v2934, %v2930
    %v3331 = vpack.c.b16 %v2935, %v2931
    %v3332 = vpack.c.b16 %v2940, %v2936
    %v3333 = vpack.c.b16 %v2941, %v2937
    %v3334 = vpack.c.b16 %v2942, %v2938
    %v3335 = vpack.c.b16 %v2943, %v2939
    %v3336 = vpack.c.b16 %v2948, %v2944
    %v3337 = vpack.c.b16 %v2949, %v2945
    %v3338 = vpack.c.b16 %v2950, %v2946
    %v3339 = vpack.c.b16 %v2951, %v2947
    %v3340 = vpack.c.b16 %v2956, %v2952
    %v3341 = vpack.c.b16 %v2957, %v2953
    %v3342 = vpack.c.b16 %v2958, %v2954
    %v3343 = vpack.c.b16 %v2959, %v2955
    %v3344 = vpack.c.b16 %v2964, %v2960
    %v3345 = vpack.c.b16 %v2965, %v2961
    %v3346 = vpack.c.b16 %v2966, %v2962
    %v3347 = vpack.c.b16 %v2967, %v2963
    %v3348 = vpack.c.b16 %v2972, %v2968
    %v3349 = vpack.c.b16 %v2973, %v2969
    %v3350 = vpack.c.b16 %v2974, %v2970
    %v3351 = vpack.c.b16 %v2975, %v2971
    %v3352 = vpack.c.b16 %v2980, %v2976
    %v3353 = vpack.c.b16 %v2981, %v2977
    %v3354 = vpack.c.b16 %v2982, %v2978
    %v3355 = vpack.c.b16 %v2983, %v2979
    %v3356 = vpack.c.b16 %v2988, %v2984
    %v3357 = vpack.c.b16 %v2989, %v2985
    %v3358 = vpack.c.b16 %v2990, %v2986
    %v3359 = vpack.c.b16 %v2991, %v2987
    %v3360 = vpack.c.b16 %v2996, %v2992
    %v3361 = vpack.c.b16 %v2997, %v2993
    %v3362 = vpack.c.b16 %v2998, %v2994
    %v3363 = vpack.c.b16 %v2999, %v2995
    %v3364 = vpack.c.b16 %v3004, %v3000
    %v3365 = vpack.c.b16 %v3005, %v3001
    %v3366 = vpack.c.b16 %v3006, %v3002
    %v3367 = vpack.c.b16 %v3007, %v3003
    %v3368 = vpack.c.b16 %v3012, %v3008
    %v3369 = vpack.c.b16 %v3013, %v3009
    %v3370 = vpack.c.b16 %v3014, %v3010
    %v3371 = vpack.c.b16 %v3015, %v3011
    %v3372 = vpack.c.b16 %v3020, %v3016
    %v3373 = vpack.c.b16 %v3021, %v3017
    %v3374 = vpack.c.b16 %v3022, %v3018
    %v3375 = vpack.c.b16 %v3023, %v3019
    %v3376 = vpack.c.b16 %v3028, %v3024
    %v3377 = vpack.c.b16 %v3029, %v3025
    %v3378 = vpack.c.b16 %v3030, %v3026
    %v3379 = vpack.c.b16 %v3031, %v3027
    %v3380 = vpack.c.b16 %v3036, %v3032
    %v3381 = vpack.c.b16 %v3037, %v3033
    %v3382 = vpack.c.b16 %v3038, %v3034
    %v3383 = vpack.c.b16 %v3039, %v3035
    %v3384 = vpack.c.b16 %v3044, %v3040
    %v3385 = vpack.c.b16 %v3045, %v3041
    %v3386 = vpack.c.b16 %v3046, %v3042
    %v3387 = vpack.c.b16 %v3047, %v3043
    %v3388 = vpack.c.b16 %v3052, %v3048
    %v3389 = vpack.c.b16 %v3053, %v3049
    %v3390 = vpack.c.b16 %v3054, %v3050
    %v3391 = vpack.c.b16 %v3055, %v3051
    %v3392 = vpack.c.b16 %v3060, %v3056
    %v3393 = vpack.c.b16 %v3061, %v3057
    %v3394 = vpack.c.b16 %v3062, %v3058
    %v3395 = vpack.c.b16 %v3063, %v3059
    %v3396 = vpack.c.b16 %v3068, %v3064
    %v3397 = vpack.c.b16 %v3069, %v3065
    %v3398 = vpack.c.b16 %v3070, %v3066
    %v3399 = vpack.c.b16 %v3071, %v3067
    %v3400 = vpack.c.b16 %v3076, %v3072
    %v3401 = vpack.c.b16 %v3077, %v3073
    %v3402 = vpack.c.b16 %v3078, %v3074
    %v3403 = vpack.c.b16 %v3079, %v3075
    %v3404 = vpack.c.b16 %v3084, %v3080
    %v3405 = vpack.c.b16 %v3085, %v3081
    %v3406 = vpack.c.b16 %v3086, %v3082
    %v3407 = vpack.c.b16 %v3087, %v3083
    %v3408 = vpack.c.b16 %v3092, %v3088
    %v3409 = vpack.c.b16 %v3093, %v3089
    %v3410 = vpack.c.b16 %v3094, %v3090
    %v3411 = vpack.c.b16 %v3095, %v3091
    %v3412 = vpack.c.b16 %v3100, %v3096
    %v3413 = vpack.c.b16 %v3101, %v3097
    %v3414 = vpack.c.b16 %v3102, %v3098
    %v3415 = vpack.c.b16 %v3103, %v3099
    %v3416 = vpack.c.b16 %v3108, %v3104
    %v3417 = vpack.c.b16 %v3109, %v3105
    %v3418 = vpack.c.b16 %v3110, %v3106
    %v3419 = vpack.c.b16 %v3111, %v3107
    %v3420 = vpack.c.b16 %v3116, %v3112
    %v3421 = vpack.c.b16 %v3117, %v3113
    %v3422 = vpack.c.b16 %v3118, %v3114
    %v3423 = vpack.c.b16 %v3119, %v3115
    %v3424 = vpack.c.b16 %v3124, %v3120
    %v3425 = vpack.c.b16 %v3125, %v3121
    %v3426 = vpack.c.b16 %v3126, %v3122
    %v3427 = vpack.c.b16 %v3127, %v3123
    %v3428 = vpack.c.b16 %v3132, %v3128
    %v3429 = vpack.c.b16 %v3133, %v3129
    %v3430 = vpack.c.b16 %v3134, %v3130
    %v3431 = vpack.c.b16 %v3135, %v3131
    %v3432 = vpack.c.b16 %v3140, %v3136
    %v3433 = vpack.c.b16 %v3141, %v3137
    %v3434 = vpack.c.b16 %v3142, %v3138
    %v3435 = vpack.c.b16 %v3143, %v3139
    %v3436 = vpack.c.b16 %v3148, %v3144
    %v3437 = vpack.c.b16 %v3149, %v3145
    %v3438 = vpack.c.b16 %v3150, %v3146
    %v3439 = vpack.c.b16 %v3151, %v3147
    %v3440 = vpack.c.b16 %v3156, %v3152
    %v3441 = vpack.c.b16 %v3157, %v3153
    %v3442 = vpack.c.b16 %v3158, %v3154
    %v3443 = vpack.c.b16 %v3159, %v3155
    %v3444 = vpack.c.b16 %v3164, %v3160
    %v3445 = vpack.c.b16 %v3165, %v3161
    %v3446 = vpack.c.b16 %v3166, %v3162
    %v3447 = vpack.c.b16 %v3167, %v3163
    %v3448 = vpack.c.b16 %v3172, %v3168
    %v3449 = vpack.c.b16 %v3173, %v3169
    %v3450 = vpack.c.b16 %v3174, %v3170
    %v3451 = vpack.c.b16 %v3175, %v3171
    %v3452 = vpack.c.b16 %v3180, %v3176
    %v3453 = vpack.c.b16 %v3181, %v3177
    %v3454 = vpack.c.b16 %v3182, %v3178
    %v3455 = vpack.c.b16 %v3183, %v3179
    %v3456 = vpack.c.b16 %v3188, %v3184
    %v3457 = vpack.c.b16 %v3189, %v3185
    %v3458 = vpack.c.b16 %v3190, %v3186
    %v3459 = vpack.c.b16 %v3191, %v3187
    %v3460 = vpack.c.b16 %v3196, %v3192
    %v3461 = vpack.c.b16 %v3197, %v3193
    %v3462 = vpack.c.b16 %v3198, %v3194
    %v3463 = vpack.c.b16 %v3199, %v3195
    %v3464 = vpack.c.b16 %v3204, %v3200
    %v3465 = vpack.c.b16 %v3205, %v3201
    %v3466 = vpack.c.b16 %v3206, %v3202
    %v3467 = vpack.c.b16 %v3207, %v3203
    %v3468 = vpack.c.b16 %v3212, %v3208
    %v3469 = vpack.c.b16 %v3213, %v3209
    %v3470 = vpack.c.b16 %v3214, %v3210
    %v3471 = vpack.c.b16 %v3215, %v3211
    %3728 = vmatprep.subr.bf16.mxu0 %v3217
    %3729 = vmatpush1.bf16.msra.mxu0 %v3216
    %3730 = vmatprep.subr.bf16.mxu0 %v3221
    %3731 = vmatpush1.bf16.msra.mxu0 %v3220
    %3732 = vmatprep.subr.bf16.mxu0 %v3225
    %3733 = vmatpush1.bf16.msra.mxu0 %v3224
    %3734 = vmatprep.subr.bf16.mxu0 %v3229
    %3735 = vmatpush1.bf16.msra.mxu0 %v3228
    %3736 = vmatprep.subr.bf16.mxu0 %v3233
    %3737 = vmatpush1.bf16.msra.mxu0 %v3232
    %3738 = vmatprep.subr.bf16.mxu0 %v3237
    %3739 = vmatpush1.bf16.msra.mxu0 %v3236
    %3740 = vmatprep.subr.bf16.mxu0 %v3241
    %3741 = vmatpush1.bf16.msra.mxu0 %v3240
    %3742 = vmatprep.subr.bf16.mxu0 %v3245
    %3743 = vmatpush1.bf16.msra.mxu0 %v3244
    %3744 = vmatprep.subr.bf16.mxu0 %v3249
    %3745 = vmatpush1.bf16.msra.mxu0 %v3248
    %3746 = vmatprep.subr.bf16.mxu0 %v3253
    %3747 = vmatpush1.bf16.msra.mxu0 %v3252
    %3748 = vmatprep.subr.bf16.mxu0 %v3257
    %3749 = vmatpush1.bf16.msra.mxu0 %v3256
    %3750 = vmatprep.subr.bf16.mxu0 %v3261
    %3751 = vmatpush1.bf16.msra.mxu0 %v3260
    %3752 = vmatprep.subr.bf16.mxu0 %v3265
    %3753 = vmatpush1.bf16.msra.mxu0 %v3264
    %3754 = vmatprep.subr.bf16.mxu0 %v3269
    %3755 = vmatpush1.bf16.msra.mxu0 %v3268
    %3756 = vmatprep.subr.bf16.mxu0 %v3273
    %3757 = vmatpush1.bf16.msra.mxu0 %v3272
    %3758 = vmatprep.subr.bf16.mxu0 %v3277
    %3759 = vmatpush1.bf16.msra.mxu0 %v3276
    %3760 = vmatprep.mubr.bf16.mxu0 %v2163
    %3761 = vmatmul.mubr.bf16.gmra.mrb[0].mxu0 %v2162
    %v3762 = vpop.f32.mrb[0].mxu0
    %v3763 = vadd.f32 %v2431, %v3762
    %v3764 = vpop.f32.mrb[0].mxu0
    %v3765 = vadd.f32 %v2435, %v3764
    %v3766 = vpop.f32.mrb[0].mxu0
    %v3767 = vpop.f32.mrb[0].mxu0
    %3768 = vdwg.mxu0
    %3769 = vmatprep.subr.bf16.mxu0 %v3281
    %3770 = vmatpush1.bf16.msra.mxu0 %v3280
    %3771 = vmatprep.subr.bf16.mxu0 %v3285
    %3772 = vmatpush1.bf16.msra.mxu0 %v3284
    %3773 = vmatprep.subr.bf16.mxu0 %v3289
    %3774 = vmatpush1.bf16.msra.mxu0 %v3288
    %3775 = vmatprep.subr.bf16.mxu0 %v3293
    %3776 = vmatpush1.bf16.msra.mxu0 %v3292
    %3777 = vmatprep.subr.bf16.mxu0 %v3297
    %3778 = vmatpush1.bf16.msra.mxu0 %v3296
    %3779 = vmatprep.subr.bf16.mxu0 %v3301
    %3780 = vmatpush1.bf16.msra.mxu0 %v3300
    %3781 = vmatprep.subr.bf16.mxu0 %v3305
    %3782 = vmatpush1.bf16.msra.mxu0 %v3304
    %3783 = vmatprep.subr.bf16.mxu0 %v3309
    %3784 = vmatpush1.bf16.msra.mxu0 %v3308
    %3785 = vmatprep.subr.bf16.mxu0 %v3313
    %3786 = vmatpush1.bf16.msra.mxu0 %v3312
    %3787 = vmatprep.subr.bf16.mxu0 %v3317
    %3788 = vmatpush1.bf16.msra.mxu0 %v3316
    %3789 = vmatprep.subr.bf16.mxu0 %v3321
    %3790 = vmatpush1.bf16.msra.mxu0 %v3320
    %3791 = vmatprep.subr.bf16.mxu0 %v3325
    %3792 = vmatpush1.bf16.msra.mxu0 %v3324
    %3793 = vmatprep.subr.bf16.mxu0 %v3329
    %3794 = vmatpush1.bf16.msra.mxu0 %v3328
    %3795 = vmatprep.subr.bf16.mxu0 %v3333
    %3796 = vmatpush1.bf16.msra.mxu0 %v3332
    %3797 = vmatprep.subr.bf16.mxu0 %v3337
    %3798 = vmatpush1.bf16.msra.mxu0 %v3336
    %3799 = vmatprep.subr.bf16.mxu0 %v3341
    %3800 = vmatpush1.bf16.msra.mxu0 %v3340
    %3801 = vmatprep.mubr.bf16.mxu0 %v2165
    %3802 = vmatmul.mubr.bf16.gmra.mrb[0].mxu0 %v2164
    %v3803 = vpop.f32.mrb[0].mxu0
    %v3804 = vadd.f32 %v3763, %v3803
    %v3805 = vpop.f32.mrb[0].mxu0
    %v3806 = vadd.f32 %v3765, %v3805
    %v3807 = vpop.f32.mrb[0].mxu0
    %v3808 = vpop.f32.mrb[0].mxu0
    %3809 = vdwg.mxu0
    %3810 = vmatprep.subr.bf16.mxu0 %v3345
    %3811 = vmatpush1.bf16.msra.mxu0 %v3344
    %3812 = vmatprep.subr.bf16.mxu0 %v3349
    %3813 = vmatpush1.bf16.msra.mxu0 %v3348
    %3814 = vmatprep.subr.bf16.mxu0 %v3353
    %3815 = vmatpush1.bf16.msra.mxu0 %v3352
    %3816 = vmatprep.subr.bf16.mxu0 %v3357
    %3817 = vmatpush1.bf16.msra.mxu0 %v3356
    %3818 = vmatprep.subr.bf16.mxu0 %v3361
    %3819 = vmatpush1.bf16.msra.mxu0 %v3360
    %3820 = vmatprep.subr.bf16.mxu0 %v3365
    %3821 = vmatpush1.bf16.msra.mxu0 %v3364
    %3822 = vmatprep.subr.bf16.mxu0 %v3369
    %3823 = vmatpush1.bf16.msra.mxu0 %v3368
    %3824 = vmatprep.subr.bf16.mxu0 %v3373
    %3825 = vmatpush1.bf16.msra.mxu0 %v3372
    %3826 = vmatprep.subr.bf16.mxu0 %v3377
    %3827 = vmatpush1.bf16.msra.mxu0 %v3376
    %3828 = vmatprep.subr.bf16.mxu0 %v3381
    %3829 = vmatpush1.bf16.msra.mxu0 %v3380
    %3830 = vmatprep.subr.bf16.mxu0 %v3385
    %3831 = vmatpush1.bf16.msra.mxu0 %v3384
    %3832 = vmatprep.subr.bf16.mxu0 %v3389
    %3833 = vmatpush1.bf16.msra.mxu0 %v3388
    %3834 = vmatprep.subr.bf16.mxu0 %v3393
    %3835 = vmatpush1.bf16.msra.mxu0 %v3392
    %3836 = vmatprep.subr.bf16.mxu0 %v3397
    %3837 = vmatpush1.bf16.msra.mxu0 %v3396
    %3838 = vmatprep.subr.bf16.mxu0 %v3401
    %3839 = vmatpush1.bf16.msra.mxu0 %v3400
    %3840 = vmatprep.subr.bf16.mxu0 %v3405
    %3841 = vmatpush1.bf16.msra.mxu0 %v3404
    %3842 = vmatprep.mubr.bf16.mxu0 %v2167
    %3843 = vmatmul.mubr.bf16.gmra.mrb[0].mxu0 %v2166
    %v3844 = vpop.f32.mrb[0].mxu0
    %v3845 = vadd.f32 %v3804, %v3844
    %v3846 = vpop.f32.mrb[0].mxu0
    %v3847 = vadd.f32 %v3806, %v3846
    %v3848 = vpop.f32.mrb[0].mxu0
    %v3849 = vpop.f32.mrb[0].mxu0
    %3850 = vdwg.mxu0
    %3851 = vmatprep.subr.bf16.mxu0 %v3409
    %3852 = vmatpush1.bf16.msra.mxu0 %v3408
    %3853 = vmatprep.subr.bf16.mxu0 %v3413
    %3854 = vmatpush1.bf16.msra.mxu0 %v3412
    %3855 = vmatprep.subr.bf16.mxu0 %v3417
    %3856 = vmatpush1.bf16.msra.mxu0 %v3416
    %3857 = vmatprep.subr.bf16.mxu0 %v3421
    %3858 = vmatpush1.bf16.msra.mxu0 %v3420
    %3859 = vmatprep.subr.bf16.mxu0 %v3425
    %3860 = vmatpush1.bf16.msra.mxu0 %v3424
    %3861 = vmatprep.subr.bf16.mxu0 %v3429
    %3862 = vmatpush1.bf16.msra.mxu0 %v3428
    %3863 = vmatprep.subr.bf16.mxu0 %v3433
    %3864 = vmatpush1.bf16.msra.mxu0 %v3432
    %3865 = vmatprep.subr.bf16.mxu0 %v3437
    %3866 = vmatpush1.bf16.msra.mxu0 %v3436
    %3867 = vmatprep.subr.bf16.mxu0 %v3441
    %3868 = vmatpush1.bf16.msra.mxu0 %v3440
    %3869 = vmatprep.subr.bf16.mxu0 %v3445
    %3870 = vmatpush1.bf16.msra.mxu0 %v3444
    %3871 = vmatprep.subr.bf16.mxu0 %v3449
    %3872 = vmatpush1.bf16.msra.mxu0 %v3448
    %3873 = vmatprep.subr.bf16.mxu0 %v3453
    %3874 = vmatpush1.bf16.msra.mxu0 %v3452
    %3875 = vmatprep.subr.bf16.mxu0 %v3457
    %3876 = vmatpush1.bf16.msra.mxu0 %v3456
    %3877 = vmatprep.subr.bf16.mxu0 %v3461
    %3878 = vmatpush1.bf16.msra.mxu0 %v3460
    %3879 = vmatprep.subr.bf16.mxu0 %v3465
    %3880 = vmatpush1.bf16.msra.mxu0 %v3464
    %3881 = vmatprep.subr.bf16.mxu0 %v3469
    %3882 = vmatpush1.bf16.msra.mxu0 %v3468
    %3883 = vmatprep.mubr.bf16.mxu0 %v2169
    %3884 = vmatmul.mubr.bf16.gmra.mrb[0].mxu0 %v2168
    %v3885 = vpop.f32.mrb[0].mxu0
    %v3886 = vadd.f32 %v3845, %v3885
    %v3887 = vpop.f32.mrb[0].mxu0
    %v3888 = vadd.f32 %v3847, %v3887
    %v3889 = vpop.f32.mrb[0].mxu0
    %v3890 = vpop.f32.mrb[0].mxu0
    %3891 = vdwg.mxu0
    %3892 = vmatprep.subr.bf16.mxu0 %v3219
    %3893 = vmatpush1.bf16.msra.mxu0 %v3218
    %3894 = vmatprep.subr.bf16.mxu0 %v3223
    %3895 = vmatpush1.bf16.msra.mxu0 %v3222
    %3896 = vmatprep.subr.bf16.mxu0 %v3227
    %3897 = vmatpush1.bf16.msra.mxu0 %v3226
    %3898 = vmatprep.subr.bf16.mxu0 %v3231
    %3899 = vmatpush1.bf16.msra.mxu0 %v3230
    %3900 = vmatprep.subr.bf16.mxu0 %v3235
    %3901 = vmatpush1.bf16.msra.mxu0 %v3234
    %3902 = vmatprep.subr.bf16.mxu0 %v3239
    %3903 = vmatpush1.bf16.msra.mxu0 %v3238
    %3904 = vmatprep.subr.bf16.mxu0 %v3243
    %3905 = vmatpush1.bf16.msra.mxu0 %v3242
    %3906 = vmatprep.subr.bf16.mxu0 %v3247
    %3907 = vmatpush1.bf16.msra.mxu0 %v3246
    %3908 = vmatprep.subr.bf16.mxu0 %v3251
    %3909 = vmatpush1.bf16.msra.mxu0 %v3250
    %3910 = vmatprep.subr.bf16.mxu0 %v3255
    %3911 = vmatpush1.bf16.msra.mxu0 %v3254
    %3912 = vmatprep.subr.bf16.mxu0 %v3259
    %3913 = vmatpush1.bf16.msra.mxu0 %v3258
    %3914 = vmatprep.subr.bf16.mxu0 %v3263
    %3915 = vmatpush1.bf16.msra.mxu0 %v3262
    %3916 = vmatprep.subr.bf16.mxu0 %v3267
    %3917 = vmatpush1.bf16.msra.mxu0 %v3266
    %3918 = vmatprep.subr.bf16.mxu0 %v3271
    %3919 = vmatpush1.bf16.msra.mxu0 %v3270
    %3920 = vmatprep.subr.bf16.mxu0 %v3275
    %3921 = vmatpush1.bf16.msra.mxu0 %v3274
    %3922 = vmatprep.subr.bf16.mxu0 %v3279
    %3923 = vmatpush1.bf16.msra.mxu0 %v3278
    %3924 = vmatprep.mubr.bf16.mxu0 %v2163
    %3925 = vmatmul.mubr.bf16.gmra.mrb[0].mxu0 %v2162
    %v3926 = vpop.f32.mrb[0].mxu0
    %v3927 = vadd.f32 %v2439, %v3926
    %v3928 = vpop.f32.mrb[0].mxu0
    %v3929 = vadd.f32 %v2443, %v3928
    %v3930 = vpop.f32.mrb[0].mxu0
    %v3931 = vpop.f32.mrb[0].mxu0
    %3932 = vdwg.mxu0
    %3933 = vmatprep.subr.bf16.mxu0 %v3283
    %3934 = vmatpush1.bf16.msra.mxu0 %v3282
    %3935 = vmatprep.subr.bf16.mxu0 %v3287
    %3936 = vmatpush1.bf16.msra.mxu0 %v3286
    %3937 = vmatprep.subr.bf16.mxu0 %v3291
    %3938 = vmatpush1.bf16.msra.mxu0 %v3290
    %3939 = vmatprep.subr.bf16.mxu0 %v3295
    %3940 = vmatpush1.bf16.msra.mxu0 %v3294
    %3941 = vmatprep.subr.bf16.mxu0 %v3299
    %3942 = vmatpush1.bf16.msra.mxu0 %v3298
    %3943 = vmatprep.subr.bf16.mxu0 %v3303
    %3944 = vmatpush1.bf16.msra.mxu0 %v3302
    %3945 = vmatprep.subr.bf16.mxu0 %v3307
    %3946 = vmatpush1.bf16.msra.mxu0 %v3306
    %3947 = vmatprep.subr.bf16.mxu0 %v3311
    %3948 = vmatpush1.bf16.msra.mxu0 %v3310
    %3949 = vmatprep.subr.bf16.mxu0 %v3315
    %3950 = vmatpush1.bf16.msra.mxu0 %v3314
    %3951 = vmatprep.subr.bf16.mxu0 %v3319
    %3952 = vmatpush1.bf16.msra.mxu0 %v3318
    %3953 = vmatprep.subr.bf16.mxu0 %v3323
    %3954 = vmatpush1.bf16.msra.mxu0 %v3322
    %3955 = vmatprep.subr.bf16.mxu0 %v3327
    %3956 = vmatpush1.bf16.msra.mxu0 %v3326
    %3957 = vmatprep.subr.bf16.mxu0 %v3331
    %3958 = vmatpush1.bf16.msra.mxu0 %v3330
    %3959 = vmatprep.subr.bf16.mxu0 %v3335
    %3960 = vmatpush1.bf16.msra.mxu0 %v3334
    %3961 = vmatprep.subr.bf16.mxu0 %v3339
    %3962 = vmatpush1.bf16.msra.mxu0 %v3338
    %3963 = vmatprep.subr.bf16.mxu0 %v3343
    %3964 = vmatpush1.bf16.msra.mxu0 %v3342
    %3965 = vmatprep.mubr.bf16.mxu0 %v2165
    %3966 = vmatmul.mubr.bf16.gmra.mrb[0].mxu0 %v2164
    %v3967 = vpop.f32.mrb[0].mxu0
    %v3968 = vadd.f32 %v3927, %v3967
    %v3969 = vpop.f32.mrb[0].mxu0
    %v3970 = vadd.f32 %v3929, %v3969
    %v3971 = vpop.f32.mrb[0].mxu0
    %v3972 = vpop.f32.mrb[0].mxu0
    %3973 = vdwg.mxu0
    %3974 = vmatprep.subr.bf16.mxu0 %v3347
    %3975 = vmatpush1.bf16.msra.mxu0 %v3346
    %3976 = vmatprep.subr.bf16.mxu0 %v3351
    %3977 = vmatpush1.bf16.msra.mxu0 %v3350
    %3978 = vmatprep.subr.bf16.mxu0 %v3355
    %3979 = vmatpush1.bf16.msra.mxu0 %v3354
    %3980 = vmatprep.subr.bf16.mxu0 %v3359
    %3981 = vmatpush1.bf16.msra.mxu0 %v3358
    %3982 = vmatprep.subr.bf16.mxu0 %v3363
    %3983 = vmatpush1.bf16.msra.mxu0 %v3362
    %3984 = vmatprep.subr.bf16.mxu0 %v3367
    %3985 = vmatpush1.bf16.msra.mxu0 %v3366
    %3986 = vmatprep.subr.bf16.mxu0 %v3371
    %3987 = vmatpush1.bf16.msra.mxu0 %v3370
    %3988 = vmatprep.subr.bf16.mxu0 %v3375
    %3989 = vmatpush1.bf16.msra.mxu0 %v3374
    %3990 = vmatprep.subr.bf16.mxu0 %v3379
    %3991 = vmatpush1.bf16.msra.mxu0 %v3378
    %3992 = vmatprep.subr.bf16.mxu0 %v3383
    %3993 = vmatpush1.bf16.msra.mxu0 %v3382
    %3994 = vmatprep.subr.bf16.mxu0 %v3387
    %3995 = vmatpush1.bf16.msra.mxu0 %v3386
    %3996 = vmatprep.subr.bf16.mxu0 %v3391
    %3997 = vmatpush1.bf16.msra.mxu0 %v3390
    %3998 = vmatprep.subr.bf16.mxu0 %v3395
    %3999 = vmatpush1.bf16.msra.mxu0 %v3394
    %4000 = vmatprep.subr.bf16.mxu0 %v3399
    %4001 = vmatpush1.bf16.msra.mxu0 %v3398
    %4002 = vmatprep.subr.bf16.mxu0 %v3403
    %4003 = vmatpush1.bf16.msra.mxu0 %v3402
    %4004 = vmatprep.subr.bf16.mxu0 %v3407
    %4005 = vmatpush1.bf16.msra.mxu0 %v3406
    %4006 = vmatprep.mubr.bf16.mxu0 %v2167
    %4007 = vmatmul.mubr.bf16.gmra.mrb[0].mxu0 %v2166
    %v4008 = vpop.f32.mrb[0].mxu0
    %v4009 = vadd.f32 %v3968, %v4008
    %v4010 = vpop.f32.mrb[0].mxu0
    %v4011 = vadd.f32 %v3970, %v4010
    %v4012 = vpop.f32.mrb[0].mxu0
    %v4013 = vpop.f32.mrb[0].mxu0
    %4014 = vdwg.mxu0
    %4015 = vmatprep.subr.bf16.mxu0 %v3411
    %4016 = vmatpush1.bf16.msra.mxu0 %v3410
    %4017 = vmatprep.subr.bf16.mxu0 %v3415
    %4018 = vmatpush1.bf16.msra.mxu0 %v3414
    %4019 = vmatprep.subr.bf16.mxu0 %v3419
    %4020 = vmatpush1.bf16.msra.mxu0 %v3418
    %4021 = vmatprep.subr.bf16.mxu0 %v3423
    %4022 = vmatpush1.bf16.msra.mxu0 %v3422
    %4023 = vmatprep.subr.bf16.mxu0 %v3427
    %4024 = vmatpush1.bf16.msra.mxu0 %v3426
    %4025 = vmatprep.subr.bf16.mxu0 %v3431
    %4026 = vmatpush1.bf16.msra.mxu0 %v3430
    %4027 = vmatprep.subr.bf16.mxu0 %v3435
    %4028 = vmatpush1.bf16.msra.mxu0 %v3434
    %4029 = vmatprep.subr.bf16.mxu0 %v3439
    %4030 = vmatpush1.bf16.msra.mxu0 %v3438
    %4031 = vmatprep.subr.bf16.mxu0 %v3443
    %4032 = vmatpush1.bf16.msra.mxu0 %v3442
    %4033 = vmatprep.subr.bf16.mxu0 %v3447
    %4034 = vmatpush1.bf16.msra.mxu0 %v3446
    %4035 = vmatprep.subr.bf16.mxu0 %v3451
    %4036 = vmatpush1.bf16.msra.mxu0 %v3450
    %4037 = vmatprep.subr.bf16.mxu0 %v3455
    %4038 = vmatpush1.bf16.msra.mxu0 %v3454
    %4039 = vmatprep.subr.bf16.mxu0 %v3459
    %4040 = vmatpush1.bf16.msra.mxu0 %v3458
    %4041 = vmatprep.subr.bf16.mxu0 %v3463
    %4042 = vmatpush1.bf16.msra.mxu0 %v3462
    %4043 = vmatprep.subr.bf16.mxu0 %v3467
    %4044 = vmatpush1.bf16.msra.mxu0 %v3466
    %4045 = vmatprep.subr.bf16.mxu0 %v3471
    %4046 = vmatpush1.bf16.msra.mxu0 %v3470
    %4047 = vmatprep.mubr.bf16.mxu0 %v2169
    %4048 = vmatmul.mubr.bf16.gmra.mrb[0].mxu0 %v2168
    %v4049 = vpop.f32.mrb[0].mxu0
    %v4050 = vadd.f32 %v4009, %v4049
    %v4051 = vpop.f32.mrb[0].mxu0
    %v4052 = vadd.f32 %v4011, %v4051
    %v4053 = vpop.f32.mrb[0].mxu0
    %v4054 = vpop.f32.mrb[0].mxu0
    %4055 = vdwg.mxu0
    %vm4056 = vcmp.gt.f32.partialorder %v3886, 0.0
    %vm4057 = vcmp.gt.f32.partialorder %v3888, 0.0
    %vm4058 = vcmp.gt.f32.partialorder %v4050, 0.0
    %vm4059 = vcmp.gt.f32.partialorder %v4052, 0.0
    %v4060 = vmin.f32 %v3886, 0.0
    %v4061 = vmin.f32 %v3888, 0.0
    %v4062 = vmin.f32 %v4050, 0.0
    %v4063 = vmin.f32 %v4052, 0.0
    %v4064 = vmul.f32 %v4060, 1.442695
    %v4065 = vpow.pop %v4064
    %v4066 = vmul.f32 %v4061, 1.442695
    %v4067 = vpow.pop %v4066
    %v4068 = vmul.f32 %v4062, 1.442695
    %v4069 = vpow.pop %v4068
    %v4070 = vmul.f32 %v4063, 1.442695
    %v4071 = vpow.pop %v4070
    %v4072 = vsub.f32 %v4065, 1.0
    %v4073 = vsub.f32 %v4067, 1.0
    %v4074 = vsub.f32 %v4069, 1.0
    %v4075 = vsub.f32 %v4071, 1.0
    %v4076 = vsel %vm4056, %v3886, %v4072
    %v4077 = vsel %vm4057, %v3888, %v4073
    %v4078 = vsel %vm4058, %v4050, %v4074
    %v4079 = vsel %vm4059, %v4052, %v4075
    %v4080 = vpack.c.bf16 %v4076, %v4076
    %v4081 = vpack.c.bf16 %v4077, %v4077
    %v4082 = vpack.c.bf16 %v4078, %v4078
    %v4083 = vpack.c.bf16 %v4079, %v4079
    %v4084 = vld [vmem:[#allocation8] sm:$0xf]
    %v4085 = vld [vmem:[#allocation8 + $0x4] sm:$0xf]
    %v4086 = vld [vmem:[#allocation8 + $0x8] sm:$0xf]
    %v4087 = vld [vmem:[#allocation8 + $0xc] sm:$0xf]
    %v4088 = vld [vmem:[#allocation8 + $0x10] sm:$0xf]
    %v4089 = vld [vmem:[#allocation8 + $0x14] sm:$0xf]
    %v4090 = vld [vmem:[#allocation8 + $0x18] sm:$0xf]
    %v4091 = vld [vmem:[#allocation8 + $0x1c] sm:$0xf]
    %v4092 = vld [vmem:[#allocation8 + $0x20] sm:$0xf]
    %v4093 = vld [vmem:[#allocation8 + $0x24] sm:$0xf]
    %v4094 = vld [vmem:[#allocation8 + $0x28] sm:$0xf]
    %v4095 = vld [vmem:[#allocation8 + $0x2c] sm:$0xf]
    %v4096 = vld [vmem:[#allocation8 + $0x30] sm:$0xf]
    %v4097 = vld [vmem:[#allocation8 + $0x34] sm:$0xf]
    %v4098 = vld [vmem:[#allocation8 + $0x38] sm:$0xf]
    %v4099 = vld [vmem:[#allocation8 + $0x3c] sm:$0xf]
    %v4100 = vld [vmem:[#allocation8 + $0x40] sm:$0xf]
    %v4101 = vld [vmem:[#allocation8 + $0x44] sm:$0xf]
    %v4102 = vld [vmem:[#allocation8 + $0x48] sm:$0xf]
    %v4103 = vld [vmem:[#allocation8 + $0x4c] sm:$0xf]
    %v4104 = vld [vmem:[#allocation8 + $0x50] sm:$0xf]
    %v4105 = vld [vmem:[#allocation8 + $0x54] sm:$0xf]
    %v4106 = vld [vmem:[#allocation8 + $0x58] sm:$0xf]
    %v4107 = vld [vmem:[#allocation8 + $0x5c] sm:$0xf]
    %v4108 = vld [vmem:[#allocation8 + $0x60] sm:$0xf]
    %v4109 = vld [vmem:[#allocation8 + $0x64] sm:$0xf]
    %v4110 = vld [vmem:[#allocation8 + $0x68] sm:$0xf]
    %v4111 = vld [vmem:[#allocation8 + $0x6c] sm:$0xf]
    %v4112 = vld [vmem:[#allocation8 + $0x70] sm:$0xf]
    %v4113 = vld [vmem:[#allocation8 + $0x74] sm:$0xf]
    %v4114 = vld [vmem:[#allocation8 + $0x78] sm:$0xf]
    %v4115 = vld [vmem:[#allocation8 + $0x7c] sm:$0xf]
    %v4116 = vld [vmem:[#allocation8 + $0x80] sm:$0xf]
    %v4117 = vld [vmem:[#allocation8 + $0x84] sm:$0xf]
    %v4118 = vld [vmem:[#allocation8 + $0x88] sm:$0xf]
    %v4119 = vld [vmem:[#allocation8 + $0x8c] sm:$0xf]
    %v4120 = vld [vmem:[#allocation8 + $0x90] sm:$0xf]
    %v4121 = vld [vmem:[#allocation8 + $0x94] sm:$0xf]
    %v4122 = vld [vmem:[#allocation8 + $0x98] sm:$0xf]
    %v4123 = vld [vmem:[#allocation8 + $0x9c] sm:$0xf]
    %v4124 = vld [vmem:[#allocation8 + $0xa0] sm:$0xf]
    %v4125 = vld [vmem:[#allocation8 + $0xa4] sm:$0xf]
    %v4126 = vld [vmem:[#allocation8 + $0xa8] sm:$0xf]
    %v4127 = vld [vmem:[#allocation8 + $0xac] sm:$0xf]
    %v4128 = vld [vmem:[#allocation8 + $0xb0] sm:$0xf]
    %v4129 = vld [vmem:[#allocation8 + $0xb4] sm:$0xf]
    %v4130 = vld [vmem:[#allocation8 + $0xb8] sm:$0xf]
    %v4131 = vld [vmem:[#allocation8 + $0xbc] sm:$0xf]
    %v4132 = vld [vmem:[#allocation8 + $0xc0] sm:$0xf]
    %v4133 = vld [vmem:[#allocation8 + $0xc4] sm:$0xf]
    %v4134 = vld [vmem:[#allocation8 + $0xc8] sm:$0xf]
    %v4135 = vld [vmem:[#allocation8 + $0xcc] sm:$0xf]
    %v4136 = vld [vmem:[#allocation8 + $0xd0] sm:$0xf]
    %v4137 = vld [vmem:[#allocation8 + $0xd4] sm:$0xf]
    %v4138 = vld [vmem:[#allocation8 + $0xd8] sm:$0xf]
    %v4139 = vld [vmem:[#allocation8 + $0xdc] sm:$0xf]
    %v4140 = vld [vmem:[#allocation8 + $0xe0] sm:$0xf]
    %v4141 = vld [vmem:[#allocation8 + $0xe4] sm:$0xf]
    %v4142 = vld [vmem:[#allocation8 + $0xe8] sm:$0xf]
    %v4143 = vld [vmem:[#allocation8 + $0xec] sm:$0xf]
    %v4144 = vld [vmem:[#allocation8 + $0xf0] sm:$0xf]
    %v4145 = vld [vmem:[#allocation8 + $0xf4] sm:$0xf]
    %v4146 = vld [vmem:[#allocation8 + $0xf8] sm:$0xf]
    %v4147 = vld [vmem:[#allocation8 + $0xfc] sm:$0xf]
    %v4148 = vld [vmem:[%s8] sm:$0x1]
    %v4150 = vlaneseq
    %v4151 = vshrl.u32 %v4150, 7
    %v4152 = vsub.s32 0, %v4151
    %v4153 = vrot.slane %v4148, %v4152
    %v4219 = vunpack.c.l.b16 %v4084
    %v4220 = vunpack.c.l.b16 %v4085
    %v4221 = vunpack.c.l.b16 %v4086
    %v4222 = vunpack.c.l.b16 %v4087
    %v4223 = vunpack.c.l.b16 %v4088
    %v4224 = vunpack.c.l.b16 %v4089
    %v4225 = vunpack.c.l.b16 %v4090
    %v4226 = vunpack.c.l.b16 %v4091
    %v4227 = vunpack.c.l.b16 %v4092
    %v4228 = vunpack.c.l.b16 %v4093
    %v4229 = vunpack.c.l.b16 %v4094
    %v4230 = vunpack.c.l.b16 %v4095
    %v4231 = vunpack.c.l.b16 %v4096
    %v4232 = vunpack.c.l.b16 %v4097
    %v4233 = vunpack.c.l.b16 %v4098
    %v4234 = vunpack.c.l.b16 %v4099
    %v4235 = vunpack.c.l.b16 %v4100
    %v4236 = vunpack.c.l.b16 %v4101
    %v4237 = vunpack.c.l.b16 %v4102
    %v4238 = vunpack.c.l.b16 %v4103
    %v4239 = vunpack.c.l.b16 %v4104
    %v4240 = vunpack.c.l.b16 %v4105
    %v4241 = vunpack.c.l.b16 %v4106
    %v4242 = vunpack.c.l.b16 %v4107
    %v4243 = vunpack.c.l.b16 %v4108
    %v4244 = vunpack.c.l.b16 %v4109
    %v4245 = vunpack.c.l.b16 %v4110
    %v4246 = vunpack.c.l.b16 %v4111
    %v4247 = vunpack.c.l.b16 %v4112
    %v4248 = vunpack.c.l.b16 %v4113
    %v4249 = vunpack.c.l.b16 %v4114
    %v4250 = vunpack.c.l.b16 %v4115
    %v4251 = vunpack.c.l.b16 %v4116
    %v4252 = vunpack.c.l.b16 %v4117
    %v4253 = vunpack.c.l.b16 %v4118
    %v4254 = vunpack.c.l.b16 %v4119
    %v4255 = vunpack.c.l.b16 %v4120
    %v4256 = vunpack.c.l.b16 %v4121
    %v4257 = vunpack.c.l.b16 %v4122
    %v4258 = vunpack.c.l.b16 %v4123
    %v4259 = vunpack.c.l.b16 %v4124
    %v4260 = vunpack.c.l.b16 %v4125
    %v4261 = vunpack.c.l.b16 %v4126
    %v4262 = vunpack.c.l.b16 %v4127
    %v4263 = vunpack.c.l.b16 %v4128
    %v4264 = vunpack.c.l.b16 %v4129
    %v4265 = vunpack.c.l.b16 %v4130
    %v4266 = vunpack.c.l.b16 %v4131
    %v4267 = vunpack.c.l.b16 %v4132
    %v4268 = vunpack.c.l.b16 %v4133
    %v4269 = vunpack.c.l.b16 %v4134
    %v4270 = vunpack.c.l.b16 %v4135
    %v4271 = vunpack.c.l.b16 %v4136
    %v4272 = vunpack.c.l.b16 %v4137
    %v4273 = vunpack.c.l.b16 %v4138
    %v4274 = vunpack.c.l.b16 %v4139
    %v4275 = vunpack.c.l.b16 %v4140
    %v4276 = vunpack.c.l.b16 %v4141
    %v4277 = vunpack.c.l.b16 %v4142
    %v4278 = vunpack.c.l.b16 %v4143
    %v4279 = vunpack.c.l.b16 %v4144
    %v4280 = vunpack.c.l.b16 %v4145
    %v4281 = vunpack.c.l.b16 %v4146
    %v4282 = vunpack.c.l.b16 %v4147
    %v4283 = vpack.c.b16 %v4220, %v4219
    %v4284 = vpack.c.b16 %v4222, %v4221
    %v4285 = vpack.c.b16 %v4224, %v4223
    %v4286 = vpack.c.b16 %v4226, %v4225
    %v4287 = vpack.c.b16 %v4228, %v4227
    %v4288 = vpack.c.b16 %v4230, %v4229
    %v4289 = vpack.c.b16 %v4232, %v4231
    %v4290 = vpack.c.b16 %v4234, %v4233
    %v4291 = vpack.c.b16 %v4236, %v4235
    %v4292 = vpack.c.b16 %v4238, %v4237
    %v4293 = vpack.c.b16 %v4240, %v4239
    %v4294 = vpack.c.b16 %v4242, %v4241
    %v4295 = vpack.c.b16 %v4244, %v4243
    %v4296 = vpack.c.b16 %v4246, %v4245
    %v4297 = vpack.c.b16 %v4248, %v4247
    %v4298 = vpack.c.b16 %v4250, %v4249
    %v4299 = vpack.c.b16 %v4252, %v4251
    %v4300 = vpack.c.b16 %v4254, %v4253
    %v4301 = vpack.c.b16 %v4256, %v4255
    %v4302 = vpack.c.b16 %v4258, %v4257
    %v4303 = vpack.c.b16 %v4260, %v4259
    %v4304 = vpack.c.b16 %v4262, %v4261
    %v4305 = vpack.c.b16 %v4264, %v4263
    %v4306 = vpack.c.b16 %v4266, %v4265
    %v4307 = vpack.c.b16 %v4268, %v4267
    %v4308 = vpack.c.b16 %v4270, %v4269
    %v4309 = vpack.c.b16 %v4272, %v4271
    %v4310 = vpack.c.b16 %v4274, %v4273
    %v4311 = vpack.c.b16 %v4276, %v4275
    %v4312 = vpack.c.b16 %v4278, %v4277
    %v4313 = vpack.c.b16 %v4280, %v4279
    %v4314 = vpack.c.b16 %v4282, %v4281
    %4347 = vmatprep.subr.bf16.mxu0 0
    %4348 = vmatpush1.bf16.msra.mxu0 %v4283
    %4349 = vmatprep.subr.bf16.mxu0 0
    %4350 = vmatpush1.bf16.msra.mxu0 %v4284
    %4351 = vmatprep.subr.bf16.mxu0 0
    %4352 = vmatpush1.bf16.msra.mxu0 %v4285
    %4353 = vmatprep.subr.bf16.mxu0 0
    %4354 = vmatpush1.bf16.msra.mxu0 %v4286
    %4355 = vmatprep.subr.bf16.mxu0 0
    %4356 = vmatpush1.bf16.msra.mxu0 %v4287
    %4357 = vmatprep.subr.bf16.mxu0 0
    %4358 = vmatpush1.bf16.msra.mxu0 %v4288
    %4359 = vmatprep.subr.bf16.mxu0 0
    %4360 = vmatpush1.bf16.msra.mxu0 %v4289
    %4361 = vmatprep.subr.bf16.mxu0 0
    %4362 = vmatpush1.bf16.msra.mxu0 %v4290
    %4363 = vmatprep.subr.bf16.mxu0 0
    %4364 = vmatpush1.bf16.msra.mxu0 %v4291
    %4365 = vmatprep.subr.bf16.mxu0 0
    %4366 = vmatpush1.bf16.msra.mxu0 %v4292
    %4367 = vmatprep.subr.bf16.mxu0 0
    %4368 = vmatpush1.bf16.msra.mxu0 %v4293
    %4369 = vmatprep.subr.bf16.mxu0 0
    %4370 = vmatpush1.bf16.msra.mxu0 %v4294
    %4371 = vmatprep.subr.bf16.mxu0 0
    %4372 = vmatpush1.bf16.msra.mxu0 %v4295
    %4373 = vmatprep.subr.bf16.mxu0 0
    %4374 = vmatpush1.bf16.msra.mxu0 %v4296
    %4375 = vmatprep.subr.bf16.mxu0 0
    %4376 = vmatpush1.bf16.msra.mxu0 %v4297
    %4377 = vmatprep.subr.bf16.mxu0 0
    %4378 = vmatpush1.bf16.msra.mxu0 %v4298
    %4379 = vmatprep.mubr.bf16.mxu0 %v4081
    %4380 = vmatmul.mubr.bf16.gmra.mrb[0].mxu0 %v4080
    %v4381 = vpop.f32.mrb[0].mxu0
    %v4382 = vadd.f32 %v4153, %v4381
    %v4383 = vpop.f32.mrb[0].mxu0
    %v4384 = vpop.f32.mrb[0].mxu0
    %v4385 = vpop.f32.mrb[0].mxu0
    %4386 = vdwg.mxu0
    %4387 = vmatprep.subr.bf16.mxu0 0
    %4388 = vmatpush1.bf16.msra.mxu0 %v4299
    %4389 = vmatprep.subr.bf16.mxu0 0
    %4390 = vmatpush1.bf16.msra.mxu0 %v4300
    %4391 = vmatprep.subr.bf16.mxu0 0
    %4392 = vmatpush1.bf16.msra.mxu0 %v4301
    %4393 = vmatprep.subr.bf16.mxu0 0
    %4394 = vmatpush1.bf16.msra.mxu0 %v4302
    %4395 = vmatprep.subr.bf16.mxu0 0
    %4396 = vmatpush1.bf16.msra.mxu0 %v4303
    %4397 = vmatprep.subr.bf16.mxu0 0
    %4398 = vmatpush1.bf16.msra.mxu0 %v4304
    %4399 = vmatprep.subr.bf16.mxu0 0
    %4400 = vmatpush1.bf16.msra.mxu0 %v4305
    %4401 = vmatprep.subr.bf16.mxu0 0
    %4402 = vmatpush1.bf16.msra.mxu0 %v4306
    %4403 = vmatprep.subr.bf16.mxu0 0
    %4404 = vmatpush1.bf16.msra.mxu0 %v4307
    %4405 = vmatprep.subr.bf16.mxu0 0
    %4406 = vmatpush1.bf16.msra.mxu0 %v4308
    %4407 = vmatprep.subr.bf16.mxu0 0
    %4408 = vmatpush1.bf16.msra.mxu0 %v4309
    %4409 = vmatprep.subr.bf16.mxu0 0
    %4410 = vmatpush1.bf16.msra.mxu0 %v4310
    %4411 = vmatprep.subr.bf16.mxu0 0
    %4412 = vmatpush1.bf16.msra.mxu0 %v4311
    %4413 = vmatprep.subr.bf16.mxu0 0
    %4414 = vmatpush1.bf16.msra.mxu0 %v4312
    %4415 = vmatprep.subr.bf16.mxu0 0
    %4416 = vmatpush1.bf16.msra.mxu0 %v4313
    %4417 = vmatprep.subr.bf16.mxu0 0
    %4418 = vmatpush1.bf16.msra.mxu0 %v4314
    %4419 = vmatprep.mubr.bf16.mxu0 %v4083
    %4420 = vmatmul.mubr.bf16.gmra.mrb[0].mxu0 %v4082
    %v4421 = vpop.f32.mrb[0].mxu0
    %v4422 = vadd.f32 %v4382, %v4421
    %v4423 = vpop.f32.mrb[0].mxu0
    %v4424 = vpop.f32.mrb[0].mxu0
    %v4425 = vpop.f32.mrb[0].mxu0
    %4426 = vdwg.mxu0
    %v4427 = vmax.f32 %v4422, 0.0
    %4428 = vst [vmem:[#allocation10] sm:$0xff] %v4427
    // Predicated region
    $region54: #{tpu_custom_call.1} parent=1 // pred_check
      _
    $region55: #{tpu_custom_call.1} parent=1 // pred_check_branch
      %4430 = sbr.rel (0) target = $region57
    $region56: #{tpu_custom_call.1} parent=1 // pred_region
      %s4432 = ssub.s32 128, 128
      %4433 = vsyncadd [#allocation4], %s4432
      %s4435 = sshll.u32 [#allocation10], 4
      %s4436 = int_to_ptr.vmem [resolvable:$true] %s4435
      %4438 = dma.vmem_to_hbm [thread:$0]  %s4436, 128, %s9, [#allocation4]
    $region57: #{tpu_custom_call.1} parent=1 // pred_fallthru
      _
    // Predicated region
    $region58: #{tpu_custom_call.1} parent=1 // pred_check
      _
    $region59: #{tpu_custom_call.1} parent=1 // pred_check_branch
      %4440 = sbr.rel (0) target = $region61
    $region60: #{tpu_custom_call.1} parent=1 // pred_region
      %4441 = dma.done [#allocation4], 128
    $region61: #{tpu_custom_call.1} parent=1 // pred_fallthru
      _
    %4442 = vsyncpa [#allocation3], 1
    %4443 = vsyncpa [#allocation6], 1
    %4444 = vsyncpa [#allocation9], 1
    %4445 = vsyncpa [#allocation4], 1

</llo_original>
